<compile_context>
chip_gen: v5e
topology: v5e:2x2
jax: 0.10.0
libtpu: 0.0.40
codegen_flags: <defaults>
</compile_context>

<pallas_src>
import functools

import jax
import jax.numpy as jnp
from jax.experimental import pallas as pl
from jax.experimental.pallas import tpu as pltpu


def clip_embedding_kernel(tok_ref, emb_hbm, pos_ref, out_ref, emb_buf, sem,
                          *, T_pad, TT):
    # tok_ref : SMEM (B*T_pad,) int32 token ids (scalar prefetch)
    # emb_hbm : HBM  (V, D) embedding table (manual DMA row gather)
    # pos_ref : VMEM (T_pad, D) position table (resident, constant index_map)
    # out_ref : VMEM (1, TT, D) output tile
    # emb_buf : VMEM (2, TT, D) double-buffered gathered rows
    # sem     : DMA semaphores (2,) -- one per buffer slot
    b = pl.program_id(0)
    t = pl.program_id(1)
    n_tiles = pl.num_programs(1)
    slot = t % 2

    def gather_tile(tile_idx, dst_slot):
        base = b * T_pad + tile_idx * TT
        # Statically unrolled: TT independent row DMAs issued back-to-back so
        # the DMA engines can run them concurrently; all share one per-slot
        # semaphore so completion can be tracked with a single aggregated wait.
        for r in range(TT):
            tok = tok_ref[base + r]
            pltpu.make_async_copy(
                emb_hbm.at[pl.ds(tok, 1), :],
                emb_buf.at[dst_slot, pl.ds(r, 1), :],
                sem.at[dst_slot],
            ).start()

    # Prime the pipeline on the first tile of each batch row.
    @pl.when(t == 0)
    def _():
        gather_tile(0, 0)

    # Prefetch the next tile's rows into the other buffer slot BEFORE waiting
    # on the current tile, so the next tile's DMA latency is hidden behind
    # this tile's wait + add + store.  Guarded so no DMA is left unwaited.
    @pl.when(t + 1 < n_tiles)
    def _():
        gather_tile(t + 1, 1 - slot)

    # Single aggregated wait: DMA semaphores accumulate bytes, so waiting on a
    # (TT, D)-shaped descriptor waits for the sum of all TT row copies.
    pltpu.make_async_copy(
        emb_hbm.at[pl.ds(0, TT), :],
        emb_buf.at[slot],
        sem.at[slot],
    ).wait()

    rows = emb_buf[slot]                              # (TT, D)
    start = pl.multiple_of(t * TT, TT)
    pos_rows = pos_ref[pl.ds(start, TT), :]           # (TT, D)
    out_ref[0] = (rows + pos_rows).astype(out_ref.dtype)


def clip_embedding(tokens, token_embedding, position_value, *, token_tile=64):
    """tokens: (B, T) int; returns (B, T, D) = token_embedding[tokens] + position_value."""
    B, T = tokens.shape
    V, D = token_embedding.shape
    assert position_value.shape == (T, D)
    assert token_tile >= 8 and token_tile % 8 == 0

    # Tile size: multiple of 8 sublanes, no larger than T rounded up to 8.
    TT = min(token_tile, ((T + 7) // 8) * 8)
    n_tiles = (T + TT - 1) // TT
    T_pad = n_tiles * TT

    # Clamp ids so every gather DMA stays in-bounds; pad seq dim to tile size.
    tok = jnp.clip(tokens.astype(jnp.int32), 0, V - 1)
    pos = position_value
    if T_pad != T:
        tok = jnp.pad(tok, ((0, 0), (0, T_pad - T)))
        pos = jnp.pad(pos, ((0, T_pad - T), (0, 0)))
    tok_flat = tok.reshape(B * T_pad)   # 1-D SMEM array (cheapest padding)

    kernel = functools.partial(clip_embedding_kernel, T_pad=T_pad, TT=TT)

    grid_spec = pltpu.PrefetchScalarGridSpec(
        num_scalar_prefetch=1,
        grid=(B, n_tiles),
        in_specs=[
            # Embedding table stays in HBM; rows are gathered with manual DMAs.
            pl.BlockSpec(memory_space=pl.ANY),
            # Position table: constant block index -> fetched once, VMEM-resident.
            pl.BlockSpec((T_pad, D), lambda b, t, tok: (0, 0)),
        ],
        out_specs=pl.BlockSpec((1, TT, D), lambda b, t, tok: (b, t, 0)),
        scratch_shapes=[
            pltpu.VMEM((2, TT, D), token_embedding.dtype),
            pltpu.SemaphoreType.DMA((2,)),
        ],
    )

    out = pl.pallas_call(
        kernel,
        grid_spec=grid_spec,
        out_shape=jax.ShapeDtypeStruct((B, T_pad, D), token_embedding.dtype),
        compiler_params=pltpu.CompilerParams(
            dimension_semantics=("parallel", "arbitrary")),
    )(tok_flat, token_embedding, pos)

    return out[:, :T, :] if T_pad != T else out


if __name__ == "__main__":
    # Small shapes consistent with CLIPEmbedding(n_vocab, n_embd, n_token).
    # T=77 (real CLIP seq len) exercises the tile-padding path; TT=40 gives
    # 2 tiles per batch row (minimal padding) so priming + cross-tile prefetch
    # double-buffering is exercised.
    n_vocab, n_embd, n_token, batch = 512, 128, 77, 2

    key = jax.random.PRNGKey(0)
    k_emb, k_pos, k_tok = jax.random.split(key, 3)

    token_embedding = jax.random.normal(k_emb, (n_vocab, n_embd), jnp.float32)
    # position_value is zeros in __init__; use small random values so the add
    # is actually exercised.
    position_value = 0.02 * jax.random.normal(k_pos, (n_token, n_embd), jnp.float32)
    tokens = jax.random.randint(k_tok, (batch, n_token), 0, n_vocab, jnp.int32)

    out = clip_embedding(tokens, token_embedding, position_value, token_tile=40)
    out = jax.block_until_ready(out)

    # Pure-JAX reference of the forward semantics.
    ref = jnp.take(token_embedding, tokens, axis=0) + position_value[None, :, :]
    assert out.shape == (batch, n_token, n_embd)
    assert out.dtype == jnp.float32
    assert jnp.allclose(out, ref, atol=1e-6), "kernel output mismatch vs reference"

    print("KERNEL_OK")
</pallas_src>

<mosaic_0001>
module attributes {stable_mosaic.version = 11 : i64} {
  func.func @clip_embedding_kernel(%arg0: i32, %arg1: i32, %arg2: memref<160xi32, #tpu.memory_space<smem>>, %arg3: memref<512x128xf32, #tpu.memory_space<any>>, %arg4: memref<80x128xf32, #tpu.memory_space<vmem>>, %arg5: memref<1x40x128xf32, #tpu.memory_space<vmem>>, %arg6: memref<2x40x128xf32, #tpu.memory_space<vmem>>, %arg7: memref<2x!tpu.dma_semaphore, #tpu.memory_space<semaphore_mem>>) attributes {dimension_semantics = [#tpu.dimension_semantics<parallel>, #tpu.dimension_semantics<arbitrary>], iteration_bounds = array<i64: 2, 2>, scalar_prefetch = 1 : i64, scratch_operands = 2 : i64, tpu.core_type = #tpu.core_type<tc>, window_params = [{}, {pipeline_mode = #tpu.pipeline_mode<synchronous>, transform_indices = @transform_1, window_bounds = array<i64: 80, 128>}, {transform_indices = @transform_2, window_bounds = array<i64: 1, 40, 128>}]} {
    %c2_i32 = arith.constant 2 : i32
    %c0_i32 = arith.constant 0 : i32
    %0 = arith.cmpi eq, %c2_i32, %c0_i32 : i32
    %c1_i32 = arith.constant 1 : i32
    %1 = arith.select %0, %c1_i32, %c2_i32 : i32
    %2 = arith.remsi %arg1, %1 : i32
    %c0_i32_0 = arith.constant 0 : i32
    %3 = arith.cmpi ne, %2, %c0_i32_0 : i32
    %c0_i32_1 = arith.constant 0 : i32
    %4 = arith.cmpi slt, %2, %c0_i32_1 : i32
    %c0_i32_2 = arith.constant 0 : i32
    %5 = arith.cmpi slt, %1, %c0_i32_2 : i32
    %6 = arith.xori %4, %5 : i1
    %7 = arith.andi %6, %3 : i1
    %8 = arith.addi %2, %1 : i32
    %9 = arith.select %7, %8, %2 : i32
    %c0_i32_3 = arith.constant 0 : i32
    %10 = arith.cmpi eq, %arg1, %c0_i32_3 : i32
    %11 = arith.extui %10 : i1 to i32
    %c0_i32_4 = arith.constant 0 : i32
    %12 = arith.cmpi ne, %11, %c0_i32_4 : i32
    scf.if %12 {
      %c80_i32 = arith.constant 80 : i32
      %33 = arith.muli %arg0, %c80_i32 : i32
      %c0_i32_17 = arith.constant 0 : i32
      %34 = arith.addi %33, %c0_i32_17 : i32
      %c0_i32_18 = arith.constant 0 : i32
      %35 = arith.addi %34, %c0_i32_18 : i32
      %36 = arith.index_cast %35 : i32 to index
      %37 = memref.load %arg2[%36] : memref<160xi32, #tpu.memory_space<smem>>
      %c0_i32_19 = arith.constant 0 : i32
      %c0_i32_20 = arith.constant 0 : i32
      %c0_i32_21 = arith.constant 0 : i32
      %38 = tpu.memref_slice %arg3[%37, %c0_i32_21] : memref<512x128xf32, #tpu.memory_space<any>> -> memref<1x128xf32, #tpu.memory_space<any>>
      %c0_i32_22 = arith.constant 0 : i32
      %c0_i32_23 = arith.constant 0 : i32
      %39 = tpu.memref_slice %arg6[%c0_i32_19, %c0_i32_22, %c0_i32_23] : memref<2x40x128xf32, #tpu.memory_space<vmem>> -> memref<1x1x128xf32, #tpu.memory_space<vmem>>
      %40 = tpu.memref_squeeze %39 : memref<1x1x128xf32, #tpu.memory_space<vmem>> -> memref<1x128xf32, #tpu.memory_space<vmem>>
      %41 = tpu.memref_slice %arg7[%c0_i32_20] : memref<2x!tpu.dma_semaphore, #tpu.memory_space<semaphore_mem>> -> memref<1x!tpu.dma_semaphore, #tpu.memory_space<semaphore_mem>>
      %42 = tpu.memref_squeeze %41 : memref<1x!tpu.dma_semaphore, #tpu.memory_space<semaphore_mem>> -> memref<!tpu.dma_semaphore, #tpu.memory_space<semaphore_mem>>
      tpu.enqueue_dma source(%38 : memref<1x128xf32, #tpu.memory_space<any>>) target(%40 : memref<1x128xf32, #tpu.memory_space<vmem>>) target_semaphore(%42 : memref<!tpu.dma_semaphore, #tpu.memory_space<semaphore_mem>>)
      %c1_i32_24 = arith.constant 1 : i32
      %43 = arith.addi %34, %c1_i32_24 : i32
      %44 = arith.index_cast %43 : i32 to index
      %45 = memref.load %arg2[%44] : memref<160xi32, #tpu.memory_space<smem>>
      %c0_i32_25 = arith.constant 0 : i32
      %c0_i32_26 = arith.constant 0 : i32
      %c0_i32_27 = arith.constant 0 : i32
      %46 = tpu.memref_slice %arg3[%45, %c0_i32_27] : memref<512x128xf32, #tpu.memory_space<any>> -> memref<1x128xf32, #tpu.memory_space<any>>
      %c1_i32_28 = arith.constant 1 : i32
      %c0_i32_29 = arith.constant 0 : i32
      %47 = tpu.memref_slice %arg6[%c0_i32_25, %c1_i32_28, %c0_i32_29] : memref<2x40x128xf32, #tpu.memory_space<vmem>> -> memref<1x1x128xf32, #tpu.memory_space<vmem>>
      %48 = tpu.memref_squeeze %47 : memref<1x1x128xf32, #tpu.memory_space<vmem>> -> memref<1x128xf32, #tpu.memory_space<vmem>>
      %49 = tpu.memref_slice %arg7[%c0_i32_26] : memref<2x!tpu.dma_semaphore, #tpu.memory_space<semaphore_mem>> -> memref<1x!tpu.dma_semaphore, #tpu.memory_space<semaphore_mem>>
      %50 = tpu.memref_squeeze %49 : memref<1x!tpu.dma_semaphore, #tpu.memory_space<semaphore_mem>> -> memref<!tpu.dma_semaphore, #tpu.memory_space<semaphore_mem>>
      tpu.enqueue_dma source(%46 : memref<1x128xf32, #tpu.memory_space<any>>) target(%48 : memref<1x128xf32, #tpu.memory_space<vmem>>) target_semaphore(%50 : memref<!tpu.dma_semaphore, #tpu.memory_space<semaphore_mem>>)
      %c2_i32_30 = arith.constant 2 : i32
      %51 = arith.addi %34, %c2_i32_30 : i32
      %52 = arith.index_cast %51 : i32 to index
      %53 = memref.load %arg2[%52] : memref<160xi32, #tpu.memory_space<smem>>
      %c0_i32_31 = arith.constant 0 : i32
      %c0_i32_32 = arith.constant 0 : i32
      %c0_i32_33 = arith.constant 0 : i32
      %54 = tpu.memref_slice %arg3[%53, %c0_i32_33] : memref<512x128xf32, #tpu.memory_space<any>> -> memref<1x128xf32, #tpu.memory_space<any>>
      %c2_i32_34 = arith.constant 2 : i32
      %c0_i32_35 = arith.constant 0 : i32
      %55 = tpu.memref_slice %arg6[%c0_i32_31, %c2_i32_34, %c0_i32_35] : memref<2x40x128xf32, #tpu.memory_space<vmem>> -> memref<1x1x128xf32, #tpu.memory_space<vmem>>
      %56 = tpu.memref_squeeze %55 : memref<1x1x128xf32, #tpu.memory_space<vmem>> -> memref<1x128xf32, #tpu.memory_space<vmem>>
      %57 = tpu.memref_slice %arg7[%c0_i32_32] : memref<2x!tpu.dma_semaphore, #tpu.memory_space<semaphore_mem>> -> memref<1x!tpu.dma_semaphore, #tpu.memory_space<semaphore_mem>>
      %58 = tpu.memref_squeeze %57 : memref<1x!tpu.dma_semaphore, #tpu.memory_space<semaphore_mem>> -> memref<!tpu.dma_semaphore, #tpu.memory_space<semaphore_mem>>
      tpu.enqueue_dma source(%54 : memref<1x128xf32, #tpu.memory_space<any>>) target(%56 : memref<1x128xf32, #tpu.memory_space<vmem>>) target_semaphore(%58 : memref<!tpu.dma_semaphore, #tpu.memory_space<semaphore_mem>>)
      %c3_i32 = arith.constant 3 : i32
      %59 = arith.addi %34, %c3_i32 : i32
      %60 = arith.index_cast %59 : i32 to index
      %61 = memref.load %arg2[%60] : memref<160xi32, #tpu.memory_space<smem>>
      %c0_i32_36 = arith.constant 0 : i32
      %c0_i32_37 = arith.constant 0 : i32
      %c0_i32_38 = arith.constant 0 : i32
      %62 = tpu.memref_slice %arg3[%61, %c0_i32_38] : memref<512x128xf32, #tpu.memory_space<any>> -> memref<1x128xf32, #tpu.memory_space<any>>
      %c3_i32_39 = arith.constant 3 : i32
      %c0_i32_40 = arith.constant 0 : i32
      %63 = tpu.memref_slice %arg6[%c0_i32_36, %c3_i32_39, %c0_i32_40] : memref<2x40x128xf32, #tpu.memory_space<vmem>> -> memref<1x1x128xf32, #tpu.memory_space<vmem>>
      %64 = tpu.memref_squeeze %63 : memref<1x1x128xf32, #tpu.memory_space<vmem>> -> memref<1x128xf32, #tpu.memory_space<vmem>>
      %65 = tpu.memref_slice %arg7[%c0_i32_37] : memref<2x!tpu.dma_semaphore, #tpu.memory_space<semaphore_mem>> -> memref<1x!tpu.dma_semaphore, #tpu.memory_space<semaphore_mem>>
      %66 = tpu.memref_squeeze %65 : memref<1x!tpu.dma_semaphore, #tpu.memory_space<semaphore_mem>> -> memref<!tpu.dma_semaphore, #tpu.memory_space<semaphore_mem>>
      tpu.enqueue_dma source(%62 : memref<1x128xf32, #tpu.memory_space<any>>) target(%64 : memref<1x128xf32, #tpu.memory_space<vmem>>) target_semaphore(%66 : memref<!tpu.dma_semaphore, #tpu.memory_space<semaphore_mem>>)
      %c4_i32 = arith.constant 4 : i32
      %67 = arith.addi %34, %c4_i32 : i32
      %68 = arith.index_cast %67 : i32 to index
      %69 = memref.load %arg2[%68] : memref<160xi32, #tpu.memory_space<smem>>
      %c0_i32_41 = arith.constant 0 : i32
      %c0_i32_42 = arith.constant 0 : i32
      %c0_i32_43 = arith.constant 0 : i32
      %70 = tpu.memref_slice %arg3[%69, %c0_i32_43] : memref<512x128xf32, #tpu.memory_space<any>> -> memref<1x128xf32, #tpu.memory_space<any>>
      %c4_i32_44 = arith.constant 4 : i32
      %c0_i32_45 = arith.constant 0 : i32
      %71 = tpu.memref_slice %arg6[%c0_i32_41, %c4_i32_44, %c0_i32_45] : memref<2x40x128xf32, #tpu.memory_space<vmem>> -> memref<1x1x128xf32, #tpu.memory_space<vmem>>
      %72 = tpu.memref_squeeze %71 : memref<1x1x128xf32, #tpu.memory_space<vmem>> -> memref<1x128xf32, #tpu.memory_space<vmem>>
      %73 = tpu.memref_slice %arg7[%c0_i32_42] : memref<2x!tpu.dma_semaphore, #tpu.memory_space<semaphore_mem>> -> memref<1x!tpu.dma_semaphore, #tpu.memory_space<semaphore_mem>>
      %74 = tpu.memref_squeeze %73 : memref<1x!tpu.dma_semaphore, #tpu.memory_space<semaphore_mem>> -> memref<!tpu.dma_semaphore, #tpu.memory_space<semaphore_mem>>
      tpu.enqueue_dma source(%70 : memref<1x128xf32, #tpu.memory_space<any>>) target(%72 : memref<1x128xf32, #tpu.memory_space<vmem>>) target_semaphore(%74 : memref<!tpu.dma_semaphore, #tpu.memory_space<semaphore_mem>>)
      %c5_i32 = arith.constant 5 : i32
      %75 = arith.addi %34, %c5_i32 : i32
      %76 = arith.index_cast %75 : i32 to index
      %77 = memref.load %arg2[%76] : memref<160xi32, #tpu.memory_space<smem>>
      %c0_i32_46 = arith.constant 0 : i32
      %c0_i32_47 = arith.constant 0 : i32
      %c0_i32_48 = arith.constant 0 : i32
      %78 = tpu.memref_slice %arg3[%77, %c0_i32_48] : memref<512x128xf32, #tpu.memory_space<any>> -> memref<1x128xf32, #tpu.memory_space<any>>
      %c5_i32_49 = arith.constant 5 : i32
      %c0_i32_50 = arith.constant 0 : i32
      %79 = tpu.memref_slice %arg6[%c0_i32_46, %c5_i32_49, %c0_i32_50] : memref<2x40x128xf32, #tpu.memory_space<vmem>> -> memref<1x1x128xf32, #tpu.memory_space<vmem>>
      %80 = tpu.memref_squeeze %79 : memref<1x1x128xf32, #tpu.memory_space<vmem>> -> memref<1x128xf32, #tpu.memory_space<vmem>>
      %81 = tpu.memref_slice %arg7[%c0_i32_47] : memref<2x!tpu.dma_semaphore, #tpu.memory_space<semaphore_mem>> -> memref<1x!tpu.dma_semaphore, #tpu.memory_space<semaphore_mem>>
      %82 = tpu.memref_squeeze %81 : memref<1x!tpu.dma_semaphore, #tpu.memory_space<semaphore_mem>> -> memref<!tpu.dma_semaphore, #tpu.memory_space<semaphore_mem>>
      tpu.enqueue_dma source(%78 : memref<1x128xf32, #tpu.memory_space<any>>) target(%80 : memref<1x128xf32, #tpu.memory_space<vmem>>) target_semaphore(%82 : memref<!tpu.dma_semaphore, #tpu.memory_space<semaphore_mem>>)
      %c6_i32 = arith.constant 6 : i32
      %83 = arith.addi %34, %c6_i32 : i32
      %84 = arith.index_cast %83 : i32 to index
      %85 = memref.load %arg2[%84] : memref<160xi32, #tpu.memory_space<smem>>
      %c0_i32_51 = arith.constant 0 : i32
      %c0_i32_52 = arith.constant 0 : i32
      %c0_i32_53 = arith.constant 0 : i32
      %86 = tpu.memref_slice %arg3[%85, %c0_i32_53] : memref<512x128xf32, #tpu.memory_space<any>> -> memref<1x128xf32, #tpu.memory_space<any>>
      %c6_i32_54 = arith.constant 6 : i32
      %c0_i32_55 = arith.constant 0 : i32
      %87 = tpu.memref_slice %arg6[%c0_i32_51, %c6_i32_54, %c0_i32_55] : memref<2x40x128xf32, #tpu.memory_space<vmem>> -> memref<1x1x128xf32, #tpu.memory_space<vmem>>
      %88 = tpu.memref_squeeze %87 : memref<1x1x128xf32, #tpu.memory_space<vmem>> -> memref<1x128xf32, #tpu.memory_space<vmem>>
      %89 = tpu.memref_slice %arg7[%c0_i32_52] : memref<2x!tpu.dma_semaphore, #tpu.memory_space<semaphore_mem>> -> memref<1x!tpu.dma_semaphore, #tpu.memory_space<semaphore_mem>>
      %90 = tpu.memref_squeeze %89 : memref<1x!tpu.dma_semaphore, #tpu.memory_space<semaphore_mem>> -> memref<!tpu.dma_semaphore, #tpu.memory_space<semaphore_mem>>
      tpu.enqueue_dma source(%86 : memref<1x128xf32, #tpu.memory_space<any>>) target(%88 : memref<1x128xf32, #tpu.memory_space<vmem>>) target_semaphore(%90 : memref<!tpu.dma_semaphore, #tpu.memory_space<semaphore_mem>>)
      %c7_i32 = arith.constant 7 : i32
      %91 = arith.addi %34, %c7_i32 : i32
      %92 = arith.index_cast %91 : i32 to index
      %93 = memref.load %arg2[%92] : memref<160xi32, #tpu.memory_space<smem>>
      %c0_i32_56 = arith.constant 0 : i32
      %c0_i32_57 = arith.constant 0 : i32
      %c0_i32_58 = arith.constant 0 : i32
      %94 = tpu.memref_slice %arg3[%93, %c0_i32_58] : memref<512x128xf32, #tpu.memory_space<any>> -> memref<1x128xf32, #tpu.memory_space<any>>
      %c7_i32_59 = arith.constant 7 : i32
      %c0_i32_60 = arith.constant 0 : i32
      %95 = tpu.memref_slice %arg6[%c0_i32_56, %c7_i32_59, %c0_i32_60] : memref<2x40x128xf32, #tpu.memory_space<vmem>> -> memref<1x1x128xf32, #tpu.memory_space<vmem>>
      %96 = tpu.memref_squeeze %95 : memref<1x1x128xf32, #tpu.memory_space<vmem>> -> memref<1x128xf32, #tpu.memory_space<vmem>>
      %97 = tpu.memref_slice %arg7[%c0_i32_57] : memref<2x!tpu.dma_semaphore, #tpu.memory_space<semaphore_mem>> -> memref<1x!tpu.dma_semaphore, #tpu.memory_space<semaphore_mem>>
      %98 = tpu.memref_squeeze %97 : memref<1x!tpu.dma_semaphore, #tpu.memory_space<semaphore_mem>> -> memref<!tpu.dma_semaphore, #tpu.memory_space<semaphore_mem>>
      tpu.enqueue_dma source(%94 : memref<1x128xf32, #tpu.memory_space<any>>) target(%96 : memref<1x128xf32, #tpu.memory_space<vmem>>) target_semaphore(%98 : memref<!tpu.dma_semaphore, #tpu.memory_space<semaphore_mem>>)
      %c8_i32 = arith.constant 8 : i32
      %99 = arith.addi %34, %c8_i32 : i32
      %100 = arith.index_cast %99 : i32 to index
      %101 = memref.load %arg2[%100] : memref<160xi32, #tpu.memory_space<smem>>
      %c0_i32_61 = arith.constant 0 : i32
      %c0_i32_62 = arith.constant 0 : i32
      %c0_i32_63 = arith.constant 0 : i32
      %102 = tpu.memref_slice %arg3[%101, %c0_i32_63] : memref<512x128xf32, #tpu.memory_space<any>> -> memref<1x128xf32, #tpu.memory_space<any>>
      %c8_i32_64 = arith.constant 8 : i32
      %c0_i32_65 = arith.constant 0 : i32
      %103 = tpu.memref_slice %arg6[%c0_i32_61, %c8_i32_64, %c0_i32_65] : memref<2x40x128xf32, #tpu.memory_space<vmem>> -> memref<1x1x128xf32, #tpu.memory_space<vmem>>
      %104 = tpu.memref_squeeze %103 : memref<1x1x128xf32, #tpu.memory_space<vmem>> -> memref<1x128xf32, #tpu.memory_space<vmem>>
      %105 = tpu.memref_slice %arg7[%c0_i32_62] : memref<2x!tpu.dma_semaphore, #tpu.memory_space<semaphore_mem>> -> memref<1x!tpu.dma_semaphore, #tpu.memory_space<semaphore_mem>>
      %106 = tpu.memref_squeeze %105 : memref<1x!tpu.dma_semaphore, #tpu.memory_space<semaphore_mem>> -> memref<!tpu.dma_semaphore, #tpu.memory_space<semaphore_mem>>
      tpu.enqueue_dma source(%102 : memref<1x128xf32, #tpu.memory_space<any>>) target(%104 : memref<1x128xf32, #tpu.memory_space<vmem>>) target_semaphore(%106 : memref<!tpu.dma_semaphore, #tpu.memory_space<semaphore_mem>>)
      %c9_i32 = arith.constant 9 : i32
      %107 = arith.addi %34, %c9_i32 : i32
      %108 = arith.index_cast %107 : i32 to index
      %109 = memref.load %arg2[%108] : memref<160xi32, #tpu.memory_space<smem>>
      %c0_i32_66 = arith.constant 0 : i32
      %c0_i32_67 = arith.constant 0 : i32
      %c0_i32_68 = arith.constant 0 : i32
      %110 = tpu.memref_slice %arg3[%109, %c0_i32_68] : memref<512x128xf32, #tpu.memory_space<any>> -> memref<1x128xf32, #tpu.memory_space<any>>
      %c9_i32_69 = arith.constant 9 : i32
      %c0_i32_70 = arith.constant 0 : i32
      %111 = tpu.memref_slice %arg6[%c0_i32_66, %c9_i32_69, %c0_i32_70] : memref<2x40x128xf32, #tpu.memory_space<vmem>> -> memref<1x1x128xf32, #tpu.memory_space<vmem>>
      %112 = tpu.memref_squeeze %111 : memref<1x1x128xf32, #tpu.memory_space<vmem>> -> memref<1x128xf32, #tpu.memory_space<vmem>>
      %113 = tpu.memref_slice %arg7[%c0_i32_67] : memref<2x!tpu.dma_semaphore, #tpu.memory_space<semaphore_mem>> -> memref<1x!tpu.dma_semaphore, #tpu.memory_space<semaphore_mem>>
      %114 = tpu.memref_squeeze %113 : memref<1x!tpu.dma_semaphore, #tpu.memory_space<semaphore_mem>> -> memref<!tpu.dma_semaphore, #tpu.memory_space<semaphore_mem>>
      tpu.enqueue_dma source(%110 : memref<1x128xf32, #tpu.memory_space<any>>) target(%112 : memref<1x128xf32, #tpu.memory_space<vmem>>) target_semaphore(%114 : memref<!tpu.dma_semaphore, #tpu.memory_space<semaphore_mem>>)
      %c10_i32 = arith.constant 10 : i32
      %115 = arith.addi %34, %c10_i32 : i32
      %116 = arith.index_cast %115 : i32 to index
      %117 = memref.load %arg2[%116] : memref<160xi32, #tpu.memory_space<smem>>
      %c0_i32_71 = arith.constant 0 : i32
      %c0_i32_72 = arith.constant 0 : i32
      %c0_i32_73 = arith.constant 0 : i32
      %118 = tpu.memref_slice %arg3[%117, %c0_i32_73] : memref<512x128xf32, #tpu.memory_space<any>> -> memref<1x128xf32, #tpu.memory_space<any>>
      %c10_i32_74 = arith.constant 10 : i32
      %c0_i32_75 = arith.constant 0 : i32
      %119 = tpu.memref_slice %arg6[%c0_i32_71, %c10_i32_74, %c0_i32_75] : memref<2x40x128xf32, #tpu.memory_space<vmem>> -> memref<1x1x128xf32, #tpu.memory_space<vmem>>
      %120 = tpu.memref_squeeze %119 : memref<1x1x128xf32, #tpu.memory_space<vmem>> -> memref<1x128xf32, #tpu.memory_space<vmem>>
      %121 = tpu.memref_slice %arg7[%c0_i32_72] : memref<2x!tpu.dma_semaphore, #tpu.memory_space<semaphore_mem>> -> memref<1x!tpu.dma_semaphore, #tpu.memory_space<semaphore_mem>>
      %122 = tpu.memref_squeeze %121 : memref<1x!tpu.dma_semaphore, #tpu.memory_space<semaphore_mem>> -> memref<!tpu.dma_semaphore, #tpu.memory_space<semaphore_mem>>
      tpu.enqueue_dma source(%118 : memref<1x128xf32, #tpu.memory_space<any>>) target(%120 : memref<1x128xf32, #tpu.memory_space<vmem>>) target_semaphore(%122 : memref<!tpu.dma_semaphore, #tpu.memory_space<semaphore_mem>>)
      %c11_i32 = arith.constant 11 : i32
      %123 = arith.addi %34, %c11_i32 : i32
      %124 = arith.index_cast %123 : i32 to index
      %125 = memref.load %arg2[%124] : memref<160xi32, #tpu.memory_space<smem>>
      %c0_i32_76 = arith.constant 0 : i32
      %c0_i32_77 = arith.constant 0 : i32
      %c0_i32_78 = arith.constant 0 : i32
      %126 = tpu.memref_slice %arg3[%125, %c0_i32_78] : memref<512x128xf32, #tpu.memory_space<any>> -> memref<1x128xf32, #tpu.memory_space<any>>
      %c11_i32_79 = arith.constant 11 : i32
      %c0_i32_80 = arith.constant 0 : i32
      %127 = tpu.memref_slice %arg6[%c0_i32_76, %c11_i32_79, %c0_i32_80] : memref<2x40x128xf32, #tpu.memory_space<vmem>> -> memref<1x1x128xf32, #tpu.memory_space<vmem>>
      %128 = tpu.memref_squeeze %127 : memref<1x1x128xf32, #tpu.memory_space<vmem>> -> memref<1x128xf32, #tpu.memory_space<vmem>>
      %129 = tpu.memref_slice %arg7[%c0_i32_77] : memref<2x!tpu.dma_semaphore, #tpu.memory_space<semaphore_mem>> -> memref<1x!tpu.dma_semaphore, #tpu.memory_space<semaphore_mem>>
      %130 = tpu.memref_squeeze %129 : memref<1x!tpu.dma_semaphore, #tpu.memory_space<semaphore_mem>> -> memref<!tpu.dma_semaphore, #tpu.memory_space<semaphore_mem>>
      tpu.enqueue_dma source(%126 : memref<1x128xf32, #tpu.memory_space<any>>) target(%128 : memref<1x128xf32, #tpu.memory_space<vmem>>) target_semaphore(%130 : memref<!tpu.dma_semaphore, #tpu.memory_space<semaphore_mem>>)
      %c12_i32 = arith.constant 12 : i32
      %131 = arith.addi %34, %c12_i32 : i32
      %132 = arith.index_cast %131 : i32 to index
      %133 = memref.load %arg2[%132] : memref<160xi32, #tpu.memory_space<smem>>
      %c0_i32_81 = arith.constant 0 : i32
      %c0_i32_82 = arith.constant 0 : i32
      %c0_i32_83 = arith.constant 0 : i32
      %134 = tpu.memref_slice %arg3[%133, %c0_i32_83] : memref<512x128xf32, #tpu.memory_space<any>> -> memref<1x128xf32, #tpu.memory_space<any>>
      %c12_i32_84 = arith.constant 12 : i32
      %c0_i32_85 = arith.constant 0 : i32
      %135 = tpu.memref_slice %arg6[%c0_i32_81, %c12_i32_84, %c0_i32_85] : memref<2x40x128xf32, #tpu.memory_space<vmem>> -> memref<1x1x128xf32, #tpu.memory_space<vmem>>
      %136 = tpu.memref_squeeze %135 : memref<1x1x128xf32, #tpu.memory_space<vmem>> -> memref<1x128xf32, #tpu.memory_space<vmem>>
      %137 = tpu.memref_slice %arg7[%c0_i32_82] : memref<2x!tpu.dma_semaphore, #tpu.memory_space<semaphore_mem>> -> memref<1x!tpu.dma_semaphore, #tpu.memory_space<semaphore_mem>>
      %138 = tpu.memref_squeeze %137 : memref<1x!tpu.dma_semaphore, #tpu.memory_space<semaphore_mem>> -> memref<!tpu.dma_semaphore, #tpu.memory_space<semaphore_mem>>
      tpu.enqueue_dma source(%134 : memref<1x128xf32, #tpu.memory_space<any>>) target(%136 : memref<1x128xf32, #tpu.memory_space<vmem>>) target_semaphore(%138 : memref<!tpu.dma_semaphore, #tpu.memory_space<semaphore_mem>>)
      %c13_i32 = arith.constant 13 : i32
      %139 = arith.addi %34, %c13_i32 : i32
      %140 = arith.index_cast %139 : i32 to index
      %141 = memref.load %arg2[%140] : memref<160xi32, #tpu.memory_space<smem>>
      %c0_i32_86 = arith.constant 0 : i32
      %c0_i32_87 = arith.constant 0 : i32
      %c0_i32_88 = arith.constant 0 : i32
      %142 = tpu.memref_slice %arg3[%141, %c0_i32_88] : memref<512x128xf32, #tpu.memory_space<any>> -> memref<1x128xf32, #tpu.memory_space<any>>
      %c13_i32_89 = arith.constant 13 : i32
      %c0_i32_90 = arith.constant 0 : i32
      %143 = tpu.memref_slice %arg6[%c0_i32_86, %c13_i32_89, %c0_i32_90] : memref<2x40x128xf32, #tpu.memory_space<vmem>> -> memref<1x1x128xf32, #tpu.memory_space<vmem>>
      %144 = tpu.memref_squeeze %143 : memref<1x1x128xf32, #tpu.memory_space<vmem>> -> memref<1x128xf32, #tpu.memory_space<vmem>>
      %145 = tpu.memref_slice %arg7[%c0_i32_87] : memref<2x!tpu.dma_semaphore, #tpu.memory_space<semaphore_mem>> -> memref<1x!tpu.dma_semaphore, #tpu.memory_space<semaphore_mem>>
      %146 = tpu.memref_squeeze %145 : memref<1x!tpu.dma_semaphore, #tpu.memory_space<semaphore_mem>> -> memref<!tpu.dma_semaphore, #tpu.memory_space<semaphore_mem>>
      tpu.enqueue_dma source(%142 : memref<1x128xf32, #tpu.memory_space<any>>) target(%144 : memref<1x128xf32, #tpu.memory_space<vmem>>) target_semaphore(%146 : memref<!tpu.dma_semaphore, #tpu.memory_space<semaphore_mem>>)
      %c14_i32 = arith.constant 14 : i32
      %147 = arith.addi %34, %c14_i32 : i32
      %148 = arith.index_cast %147 : i32 to index
      %149 = memref.load %arg2[%148] : memref<160xi32, #tpu.memory_space<smem>>
      %c0_i32_91 = arith.constant 0 : i32
      %c0_i32_92 = arith.constant 0 : i32
      %c0_i32_93 = arith.constant 0 : i32
      %150 = tpu.memref_slice %arg3[%149, %c0_i32_93] : memref<512x128xf32, #tpu.memory_space<any>> -> memref<1x128xf32, #tpu.memory_space<any>>
      %c14_i32_94 = arith.constant 14 : i32
      %c0_i32_95 = arith.constant 0 : i32
      %151 = tpu.memref_slice %arg6[%c0_i32_91, %c14_i32_94, %c0_i32_95] : memref<2x40x128xf32, #tpu.memory_space<vmem>> -> memref<1x1x128xf32, #tpu.memory_space<vmem>>
      %152 = tpu.memref_squeeze %151 : memref<1x1x128xf32, #tpu.memory_space<vmem>> -> memref<1x128xf32, #tpu.memory_space<vmem>>
      %153 = tpu.memref_slice %arg7[%c0_i32_92] : memref<2x!tpu.dma_semaphore, #tpu.memory_space<semaphore_mem>> -> memref<1x!tpu.dma_semaphore, #tpu.memory_space<semaphore_mem>>
      %154 = tpu.memref_squeeze %153 : memref<1x!tpu.dma_semaphore, #tpu.memory_space<semaphore_mem>> -> memref<!tpu.dma_semaphore, #tpu.memory_space<semaphore_mem>>
      tpu.enqueue_dma source(%150 : memref<1x128xf32, #tpu.memory_space<any>>) target(%152 : memref<1x128xf32, #tpu.memory_space<vmem>>) target_semaphore(%154 : memref<!tpu.dma_semaphore, #tpu.memory_space<semaphore_mem>>)
      %c15_i32 = arith.constant 15 : i32
      %155 = arith.addi %34, %c15_i32 : i32
      %156 = arith.index_cast %155 : i32 to index
      %157 = memref.load %arg2[%156] : memref<160xi32, #tpu.memory_space<smem>>
      %c0_i32_96 = arith.constant 0 : i32
      %c0_i32_97 = arith.constant 0 : i32
      %c0_i32_98 = arith.constant 0 : i32
      %158 = tpu.memref_slice %arg3[%157, %c0_i32_98] : memref<512x128xf32, #tpu.memory_space<any>> -> memref<1x128xf32, #tpu.memory_space<any>>
      %c15_i32_99 = arith.constant 15 : i32
      %c0_i32_100 = arith.constant 0 : i32
      %159 = tpu.memref_slice %arg6[%c0_i32_96, %c15_i32_99, %c0_i32_100] : memref<2x40x128xf32, #tpu.memory_space<vmem>> -> memref<1x1x128xf32, #tpu.memory_space<vmem>>
      %160 = tpu.memref_squeeze %159 : memref<1x1x128xf32, #tpu.memory_space<vmem>> -> memref<1x128xf32, #tpu.memory_space<vmem>>
      %161 = tpu.memref_slice %arg7[%c0_i32_97] : memref<2x!tpu.dma_semaphore, #tpu.memory_space<semaphore_mem>> -> memref<1x!tpu.dma_semaphore, #tpu.memory_space<semaphore_mem>>
      %162 = tpu.memref_squeeze %161 : memref<1x!tpu.dma_semaphore, #tpu.memory_space<semaphore_mem>> -> memref<!tpu.dma_semaphore, #tpu.memory_space<semaphore_mem>>
      tpu.enqueue_dma source(%158 : memref<1x128xf32, #tpu.memory_space<any>>) target(%160 : memref<1x128xf32, #tpu.memory_space<vmem>>) target_semaphore(%162 : memref<!tpu.dma_semaphore, #tpu.memory_space<semaphore_mem>>)
      %c16_i32 = arith.constant 16 : i32
      %163 = arith.addi %34, %c16_i32 : i32
      %164 = arith.index_cast %163 : i32 to index
      %165 = memref.load %arg2[%164] : memref<160xi32, #tpu.memory_space<smem>>
      %c0_i32_101 = arith.constant 0 : i32
      %c0_i32_102 = arith.constant 0 : i32
      %c0_i32_103 = arith.constant 0 : i32
      %166 = tpu.memref_slice %arg3[%165, %c0_i32_103] : memref<512x128xf32, #tpu.memory_space<any>> -> memref<1x128xf32, #tpu.memory_space<any>>
      %c16_i32_104 = arith.constant 16 : i32
      %c0_i32_105 = arith.constant 0 : i32
      %167 = tpu.memref_slice %arg6[%c0_i32_101, %c16_i32_104, %c0_i32_105] : memref<2x40x128xf32, #tpu.memory_space<vmem>> -> memref<1x1x128xf32, #tpu.memory_space<vmem>>
      %168 = tpu.memref_squeeze %167 : memref<1x1x128xf32, #tpu.memory_space<vmem>> -> memref<1x128xf32, #tpu.memory_space<vmem>>
      %169 = tpu.memref_slice %arg7[%c0_i32_102] : memref<2x!tpu.dma_semaphore, #tpu.memory_space<semaphore_mem>> -> memref<1x!tpu.dma_semaphore, #tpu.memory_space<semaphore_mem>>
      %170 = tpu.memref_squeeze %169 : memref<1x!tpu.dma_semaphore, #tpu.memory_space<semaphore_mem>> -> memref<!tpu.dma_semaphore, #tpu.memory_space<semaphore_mem>>
      tpu.enqueue_dma source(%166 : memref<1x128xf32, #tpu.memory_space<any>>) target(%168 : memref<1x128xf32, #tpu.memory_space<vmem>>) target_semaphore(%170 : memref<!tpu.dma_semaphore, #tpu.memory_space<semaphore_mem>>)
      %c17_i32 = arith.constant 17 : i32
      %171 = arith.addi %34, %c17_i32 : i32
      %172 = arith.index_cast %171 : i32 to index
      %173 = memref.load %arg2[%172] : memref<160xi32, #tpu.memory_space<smem>>
      %c0_i32_106 = arith.constant 0 : i32
      %c0_i32_107 = arith.constant 0 : i32
      %c0_i32_108 = arith.constant 0 : i32
      %174 = tpu.memref_slice %arg3[%173, %c0_i32_108] : memref<512x128xf32, #tpu.memory_space<any>> -> memref<1x128xf32, #tpu.memory_space<any>>
      %c17_i32_109 = arith.constant 17 : i32
      %c0_i32_110 = arith.constant 0 : i32
      %175 = tpu.memref_slice %arg6[%c0_i32_106, %c17_i32_109, %c0_i32_110] : memref<2x40x128xf32, #tpu.memory_space<vmem>> -> memref<1x1x128xf32, #tpu.memory_space<vmem>>
      %176 = tpu.memref_squeeze %175 : memref<1x1x128xf32, #tpu.memory_space<vmem>> -> memref<1x128xf32, #tpu.memory_space<vmem>>
      %177 = tpu.memref_slice %arg7[%c0_i32_107] : memref<2x!tpu.dma_semaphore, #tpu.memory_space<semaphore_mem>> -> memref<1x!tpu.dma_semaphore, #tpu.memory_space<semaphore_mem>>
      %178 = tpu.memref_squeeze %177 : memref<1x!tpu.dma_semaphore, #tpu.memory_space<semaphore_mem>> -> memref<!tpu.dma_semaphore, #tpu.memory_space<semaphore_mem>>
      tpu.enqueue_dma source(%174 : memref<1x128xf32, #tpu.memory_space<any>>) target(%176 : memref<1x128xf32, #tpu.memory_space<vmem>>) target_semaphore(%178 : memref<!tpu.dma_semaphore, #tpu.memory_space<semaphore_mem>>)
      %c18_i32 = arith.constant 18 : i32
      %179 = arith.addi %34, %c18_i32 : i32
      %180 = arith.index_cast %179 : i32 to index
      %181 = memref.load %arg2[%180] : memref<160xi32, #tpu.memory_space<smem>>
      %c0_i32_111 = arith.constant 0 : i32
      %c0_i32_112 = arith.constant 0 : i32
      %c0_i32_113 = arith.constant 0 : i32
      %182 = tpu.memref_slice %arg3[%181, %c0_i32_113] : memref<512x128xf32, #tpu.memory_space<any>> -> memref<1x128xf32, #tpu.memory_space<any>>
      %c18_i32_114 = arith.constant 18 : i32
      %c0_i32_115 = arith.constant 0 : i32
      %183 = tpu.memref_slice %arg6[%c0_i32_111, %c18_i32_114, %c0_i32_115] : memref<2x40x128xf32, #tpu.memory_space<vmem>> -> memref<1x1x128xf32, #tpu.memory_space<vmem>>
      %184 = tpu.memref_squeeze %183 : memref<1x1x128xf32, #tpu.memory_space<vmem>> -> memref<1x128xf32, #tpu.memory_space<vmem>>
      %185 = tpu.memref_slice %arg7[%c0_i32_112] : memref<2x!tpu.dma_semaphore, #tpu.memory_space<semaphore_mem>> -> memref<1x!tpu.dma_semaphore, #tpu.memory_space<semaphore_mem>>
      %186 = tpu.memref_squeeze %185 : memref<1x!tpu.dma_semaphore, #tpu.memory_space<semaphore_mem>> -> memref<!tpu.dma_semaphore, #tpu.memory_space<semaphore_mem>>
      tpu.enqueue_dma source(%182 : memref<1x128xf32, #tpu.memory_space<any>>) target(%184 : memref<1x128xf32, #tpu.memory_space<vmem>>) target_semaphore(%186 : memref<!tpu.dma_semaphore, #tpu.memory_space<semaphore_mem>>)
      %c19_i32 = arith.constant 19 : i32
      %187 = arith.addi %34, %c19_i32 : i32
      %188 = arith.index_cast %187 : i32 to index
      %189 = memref.load %arg2[%188] : memref<160xi32, #tpu.memory_space<smem>>
      %c0_i32_116 = arith.constant 0 : i32
      %c0_i32_117 = arith.constant 0 : i32
      %c0_i32_118 = arith.constant 0 : i32
      %190 = tpu.memref_slice %arg3[%189, %c0_i32_118] : memref<512x128xf32, #tpu.memory_space<any>> -> memref<1x128xf32, #tpu.memory_space<any>>
      %c19_i32_119 = arith.constant 19 : i32
      %c0_i32_120 = arith.constant 0 : i32
      %191 = tpu.memref_slice %arg6[%c0_i32_116, %c19_i32_119, %c0_i32_120] : memref<2x40x128xf32, #tpu.memory_space<vmem>> -> memref<1x1x128xf32, #tpu.memory_space<vmem>>
      %192 = tpu.memref_squeeze %191 : memref<1x1x128xf32, #tpu.memory_space<vmem>> -> memref<1x128xf32, #tpu.memory_space<vmem>>
      %193 = tpu.memref_slice %arg7[%c0_i32_117] : memref<2x!tpu.dma_semaphore, #tpu.memory_space<semaphore_mem>> -> memref<1x!tpu.dma_semaphore, #tpu.memory_space<semaphore_mem>>
      %194 = tpu.memref_squeeze %193 : memref<1x!tpu.dma_semaphore, #tpu.memory_space<semaphore_mem>> -> memref<!tpu.dma_semaphore, #tpu.memory_space<semaphore_mem>>
      tpu.enqueue_dma source(%190 : memref<1x128xf32, #tpu.memory_space<any>>) target(%192 : memref<1x128xf32, #tpu.memory_space<vmem>>) target_semaphore(%194 : memref<!tpu.dma_semaphore, #tpu.memory_space<semaphore_mem>>)
      %c20_i32 = arith.constant 20 : i32
      %195 = arith.addi %34, %c20_i32 : i32
      %196 = arith.index_cast %195 : i32 to index
      %197 = memref.load %arg2[%196] : memref<160xi32, #tpu.memory_space<smem>>
      %c0_i32_121 = arith.constant 0 : i32
      %c0_i32_122 = arith.constant 0 : i32
      %c0_i32_123 = arith.constant 0 : i32
      %198 = tpu.memref_slice %arg3[%197, %c0_i32_123] : memref<512x128xf32, #tpu.memory_space<any>> -> memref<1x128xf32, #tpu.memory_space<any>>
      %c20_i32_124 = arith.constant 20 : i32
      %c0_i32_125 = arith.constant 0 : i32
      %199 = tpu.memref_slice %arg6[%c0_i32_121, %c20_i32_124, %c0_i32_125] : memref<2x40x128xf32, #tpu.memory_space<vmem>> -> memref<1x1x128xf32, #tpu.memory_space<vmem>>
      %200 = tpu.memref_squeeze %199 : memref<1x1x128xf32, #tpu.memory_space<vmem>> -> memref<1x128xf32, #tpu.memory_space<vmem>>
      %201 = tpu.memref_slice %arg7[%c0_i32_122] : memref<2x!tpu.dma_semaphore, #tpu.memory_space<semaphore_mem>> -> memref<1x!tpu.dma_semaphore, #tpu.memory_space<semaphore_mem>>
      %202 = tpu.memref_squeeze %201 : memref<1x!tpu.dma_semaphore, #tpu.memory_space<semaphore_mem>> -> memref<!tpu.dma_semaphore, #tpu.memory_space<semaphore_mem>>
      tpu.enqueue_dma source(%198 : memref<1x128xf32, #tpu.memory_space<any>>) target(%200 : memref<1x128xf32, #tpu.memory_space<vmem>>) target_semaphore(%202 : memref<!tpu.dma_semaphore, #tpu.memory_space<semaphore_mem>>)
      %c21_i32 = arith.constant 21 : i32
      %203 = arith.addi %34, %c21_i32 : i32
      %204 = arith.index_cast %203 : i32 to index
      %205 = memref.load %arg2[%204] : memref<160xi32, #tpu.memory_space<smem>>
      %c0_i32_126 = arith.constant 0 : i32
      %c0_i32_127 = arith.constant 0 : i32
      %c0_i32_128 = arith.constant 0 : i32
      %206 = tpu.memref_slice %arg3[%205, %c0_i32_128] : memref<512x128xf32, #tpu.memory_space<any>> -> memref<1x128xf32, #tpu.memory_space<any>>
      %c21_i32_129 = arith.constant 21 : i32
      %c0_i32_130 = arith.constant 0 : i32
      %207 = tpu.memref_slice %arg6[%c0_i32_126, %c21_i32_129, %c0_i32_130] : memref<2x40x128xf32, #tpu.memory_space<vmem>> -> memref<1x1x128xf32, #tpu.memory_space<vmem>>
      %208 = tpu.memref_squeeze %207 : memref<1x1x128xf32, #tpu.memory_space<vmem>> -> memref<1x128xf32, #tpu.memory_space<vmem>>
      %209 = tpu.memref_slice %arg7[%c0_i32_127] : memref<2x!tpu.dma_semaphore, #tpu.memory_space<semaphore_mem>> -> memref<1x!tpu.dma_semaphore, #tpu.memory_space<semaphore_mem>>
      %210 = tpu.memref_squeeze %209 : memref<1x!tpu.dma_semaphore, #tpu.memory_space<semaphore_mem>> -> memref<!tpu.dma_semaphore, #tpu.memory_space<semaphore_mem>>
      tpu.enqueue_dma source(%206 : memref<1x128xf32, #tpu.memory_space<any>>) target(%208 : memref<1x128xf32, #tpu.memory_space<vmem>>) target_semaphore(%210 : memref<!tpu.dma_semaphore, #tpu.memory_space<semaphore_mem>>)
      %c22_i32 = arith.constant 22 : i32
      %211 = arith.addi %34, %c22_i32 : i32
      %212 = arith.index_cast %211 : i32 to index
      %213 = memref.load %arg2[%212] : memref<160xi32, #tpu.memory_space<smem>>
      %c0_i32_131 = arith.constant 0 : i32
      %c0_i32_132 = arith.constant 0 : i32
      %c0_i32_133 = arith.constant 0 : i32
      %214 = tpu.memref_slice %arg3[%213, %c0_i32_133] : memref<512x128xf32, #tpu.memory_space<any>> -> memref<1x128xf32, #tpu.memory_space<any>>
      %c22_i32_134 = arith.constant 22 : i32
      %c0_i32_135 = arith.constant 0 : i32
      %215 = tpu.memref_slice %arg6[%c0_i32_131, %c22_i32_134, %c0_i32_135] : memref<2x40x128xf32, #tpu.memory_space<vmem>> -> memref<1x1x128xf32, #tpu.memory_space<vmem>>
      %216 = tpu.memref_squeeze %215 : memref<1x1x128xf32, #tpu.memory_space<vmem>> -> memref<1x128xf32, #tpu.memory_space<vmem>>
      %217 = tpu.memref_slice %arg7[%c0_i32_132] : memref<2x!tpu.dma_semaphore, #tpu.memory_space<semaphore_mem>> -> memref<1x!tpu.dma_semaphore, #tpu.memory_space<semaphore_mem>>
      %218 = tpu.memref_squeeze %217 : memref<1x!tpu.dma_semaphore, #tpu.memory_space<semaphore_mem>> -> memref<!tpu.dma_semaphore, #tpu.memory_space<semaphore_mem>>
      tpu.enqueue_dma source(%214 : memref<1x128xf32, #tpu.memory_space<any>>) target(%216 : memref<1x128xf32, #tpu.memory_space<vmem>>) target_semaphore(%218 : memref<!tpu.dma_semaphore, #tpu.memory_space<semaphore_mem>>)
      %c23_i32 = arith.constant 23 : i32
      %219 = arith.addi %34, %c23_i32 : i32
      %220 = arith.index_cast %219 : i32 to index
      %221 = memref.load %arg2[%220] : memref<160xi32, #tpu.memory_space<smem>>
      %c0_i32_136 = arith.constant 0 : i32
      %c0_i32_137 = arith.constant 0 : i32
      %c0_i32_138 = arith.constant 0 : i32
      %222 = tpu.memref_slice %arg3[%221, %c0_i32_138] : memref<512x128xf32, #tpu.memory_space<any>> -> memref<1x128xf32, #tpu.memory_space<any>>
      %c23_i32_139 = arith.constant 23 : i32
      %c0_i32_140 = arith.constant 0 : i32
      %223 = tpu.memref_slice %arg6[%c0_i32_136, %c23_i32_139, %c0_i32_140] : memref<2x40x128xf32, #tpu.memory_space<vmem>> -> memref<1x1x128xf32, #tpu.memory_space<vmem>>
      %224 = tpu.memref_squeeze %223 : memref<1x1x128xf32, #tpu.memory_space<vmem>> -> memref<1x128xf32, #tpu.memory_space<vmem>>
      %225 = tpu.memref_slice %arg7[%c0_i32_137] : memref<2x!tpu.dma_semaphore, #tpu.memory_space<semaphore_mem>> -> memref<1x!tpu.dma_semaphore, #tpu.memory_space<semaphore_mem>>
      %226 = tpu.memref_squeeze %225 : memref<1x!tpu.dma_semaphore, #tpu.memory_space<semaphore_mem>> -> memref<!tpu.dma_semaphore, #tpu.memory_space<semaphore_mem>>
      tpu.enqueue_dma source(%222 : memref<1x128xf32, #tpu.memory_space<any>>) target(%224 : memref<1x128xf32, #tpu.memory_space<vmem>>) target_semaphore(%226 : memref<!tpu.dma_semaphore, #tpu.memory_space<semaphore_mem>>)
      %c24_i32 = arith.constant 24 : i32
      %227 = arith.addi %34, %c24_i32 : i32
      %228 = arith.index_cast %227 : i32 to index
      %229 = memref.load %arg2[%228] : memref<160xi32, #tpu.memory_space<smem>>
      %c0_i32_141 = arith.constant 0 : i32
      %c0_i32_142 = arith.constant 0 : i32
      %c0_i32_143 = arith.constant 0 : i32
      %230 = tpu.memref_slice %arg3[%229, %c0_i32_143] : memref<512x128xf32, #tpu.memory_space<any>> -> memref<1x128xf32, #tpu.memory_space<any>>
      %c24_i32_144 = arith.constant 24 : i32
      %c0_i32_145 = arith.constant 0 : i32
      %231 = tpu.memref_slice %arg6[%c0_i32_141, %c24_i32_144, %c0_i32_145] : memref<2x40x128xf32, #tpu.memory_space<vmem>> -> memref<1x1x128xf32, #tpu.memory_space<vmem>>
      %232 = tpu.memref_squeeze %231 : memref<1x1x128xf32, #tpu.memory_space<vmem>> -> memref<1x128xf32, #tpu.memory_space<vmem>>
      %233 = tpu.memref_slice %arg7[%c0_i32_142] : memref<2x!tpu.dma_semaphore, #tpu.memory_space<semaphore_mem>> -> memref<1x!tpu.dma_semaphore, #tpu.memory_space<semaphore_mem>>
      %234 = tpu.memref_squeeze %233 : memref<1x!tpu.dma_semaphore, #tpu.memory_space<semaphore_mem>> -> memref<!tpu.dma_semaphore, #tpu.memory_space<semaphore_mem>>
      tpu.enqueue_dma source(%230 : memref<1x128xf32, #tpu.memory_space<any>>) target(%232 : memref<1x128xf32, #tpu.memory_space<vmem>>) target_semaphore(%234 : memref<!tpu.dma_semaphore, #tpu.memory_space<semaphore_mem>>)
      %c25_i32 = arith.constant 25 : i32
      %235 = arith.addi %34, %c25_i32 : i32
      %236 = arith.index_cast %235 : i32 to index
      %237 = memref.load %arg2[%236] : memref<160xi32, #tpu.memory_space<smem>>
      %c0_i32_146 = arith.constant 0 : i32
      %c0_i32_147 = arith.constant 0 : i32
      %c0_i32_148 = arith.constant 0 : i32
      %238 = tpu.memref_slice %arg3[%237, %c0_i32_148] : memref<512x128xf32, #tpu.memory_space<any>> -> memref<1x128xf32, #tpu.memory_space<any>>
      %c25_i32_149 = arith.constant 25 : i32
      %c0_i32_150 = arith.constant 0 : i32
      %239 = tpu.memref_slice %arg6[%c0_i32_146, %c25_i32_149, %c0_i32_150] : memref<2x40x128xf32, #tpu.memory_space<vmem>> -> memref<1x1x128xf32, #tpu.memory_space<vmem>>
      %240 = tpu.memref_squeeze %239 : memref<1x1x128xf32, #tpu.memory_space<vmem>> -> memref<1x128xf32, #tpu.memory_space<vmem>>
      %241 = tpu.memref_slice %arg7[%c0_i32_147] : memref<2x!tpu.dma_semaphore, #tpu.memory_space<semaphore_mem>> -> memref<1x!tpu.dma_semaphore, #tpu.memory_space<semaphore_mem>>
      %242 = tpu.memref_squeeze %241 : memref<1x!tpu.dma_semaphore, #tpu.memory_space<semaphore_mem>> -> memref<!tpu.dma_semaphore, #tpu.memory_space<semaphore_mem>>
      tpu.enqueue_dma source(%238 : memref<1x128xf32, #tpu.memory_space<any>>) target(%240 : memref<1x128xf32, #tpu.memory_space<vmem>>) target_semaphore(%242 : memref<!tpu.dma_semaphore, #tpu.memory_space<semaphore_mem>>)
      %c26_i32 = arith.constant 26 : i32
      %243 = arith.addi %34, %c26_i32 : i32
      %244 = arith.index_cast %243 : i32 to index
      %245 = memref.load %arg2[%244] : memref<160xi32, #tpu.memory_space<smem>>
      %c0_i32_151 = arith.constant 0 : i32
      %c0_i32_152 = arith.constant 0 : i32
      %c0_i32_153 = arith.constant 0 : i32
      %246 = tpu.memref_slice %arg3[%245, %c0_i32_153] : memref<512x128xf32, #tpu.memory_space<any>> -> memref<1x128xf32, #tpu.memory_space<any>>
      %c26_i32_154 = arith.constant 26 : i32
      %c0_i32_155 = arith.constant 0 : i32
      %247 = tpu.memref_slice %arg6[%c0_i32_151, %c26_i32_154, %c0_i32_155] : memref<2x40x128xf32, #tpu.memory_space<vmem>> -> memref<1x1x128xf32, #tpu.memory_space<vmem>>
      %248 = tpu.memref_squeeze %247 : memref<1x1x128xf32, #tpu.memory_space<vmem>> -> memref<1x128xf32, #tpu.memory_space<vmem>>
      %249 = tpu.memref_slice %arg7[%c0_i32_152] : memref<2x!tpu.dma_semaphore, #tpu.memory_space<semaphore_mem>> -> memref<1x!tpu.dma_semaphore, #tpu.memory_space<semaphore_mem>>
      %250 = tpu.memref_squeeze %249 : memref<1x!tpu.dma_semaphore, #tpu.memory_space<semaphore_mem>> -> memref<!tpu.dma_semaphore, #tpu.memory_space<semaphore_mem>>
      tpu.enqueue_dma source(%246 : memref<1x128xf32, #tpu.memory_space<any>>) target(%248 : memref<1x128xf32, #tpu.memory_space<vmem>>) target_semaphore(%250 : memref<!tpu.dma_semaphore, #tpu.memory_space<semaphore_mem>>)
      %c27_i32 = arith.constant 27 : i32
      %251 = arith.addi %34, %c27_i32 : i32
      %252 = arith.index_cast %251 : i32 to index
      %253 = memref.load %arg2[%252] : memref<160xi32, #tpu.memory_space<smem>>
      %c0_i32_156 = arith.constant 0 : i32
      %c0_i32_157 = arith.constant 0 : i32
      %c0_i32_158 = arith.constant 0 : i32
      %254 = tpu.memref_slice %arg3[%253, %c0_i32_158] : memref<512x128xf32, #tpu.memory_space<any>> -> memref<1x128xf32, #tpu.memory_space<any>>
      %c27_i32_159 = arith.constant 27 : i32
      %c0_i32_160 = arith.constant 0 : i32
      %255 = tpu.memref_slice %arg6[%c0_i32_156, %c27_i32_159, %c0_i32_160] : memref<2x40x128xf32, #tpu.memory_space<vmem>> -> memref<1x1x128xf32, #tpu.memory_space<vmem>>
      %256 = tpu.memref_squeeze %255 : memref<1x1x128xf32, #tpu.memory_space<vmem>> -> memref<1x128xf32, #tpu.memory_space<vmem>>
      %257 = tpu.memref_slice %arg7[%c0_i32_157] : memref<2x!tpu.dma_semaphore, #tpu.memory_space<semaphore_mem>> -> memref<1x!tpu.dma_semaphore, #tpu.memory_space<semaphore_mem>>
      %258 = tpu.memref_squeeze %257 : memref<1x!tpu.dma_semaphore, #tpu.memory_space<semaphore_mem>> -> memref<!tpu.dma_semaphore, #tpu.memory_space<semaphore_mem>>
      tpu.enqueue_dma source(%254 : memref<1x128xf32, #tpu.memory_space<any>>) target(%256 : memref<1x128xf32, #tpu.memory_space<vmem>>) target_semaphore(%258 : memref<!tpu.dma_semaphore, #tpu.memory_space<semaphore_mem>>)
      %c28_i32 = arith.constant 28 : i32
      %259 = arith.addi %34, %c28_i32 : i32
      %260 = arith.index_cast %259 : i32 to index
      %261 = memref.load %arg2[%260] : memref<160xi32, #tpu.memory_space<smem>>
      %c0_i32_161 = arith.constant 0 : i32
      %c0_i32_162 = arith.constant 0 : i32
      %c0_i32_163 = arith.constant 0 : i32
      %262 = tpu.memref_slice %arg3[%261, %c0_i32_163] : memref<512x128xf32, #tpu.memory_space<any>> -> memref<1x128xf32, #tpu.memory_space<any>>
      %c28_i32_164 = arith.constant 28 : i32
      %c0_i32_165 = arith.constant 0 : i32
      %263 = tpu.memref_slice %arg6[%c0_i32_161, %c28_i32_164, %c0_i32_165] : memref<2x40x128xf32, #tpu.memory_space<vmem>> -> memref<1x1x128xf32, #tpu.memory_space<vmem>>
      %264 = tpu.memref_squeeze %263 : memref<1x1x128xf32, #tpu.memory_space<vmem>> -> memref<1x128xf32, #tpu.memory_space<vmem>>
      %265 = tpu.memref_slice %arg7[%c0_i32_162] : memref<2x!tpu.dma_semaphore, #tpu.memory_space<semaphore_mem>> -> memref<1x!tpu.dma_semaphore, #tpu.memory_space<semaphore_mem>>
      %266 = tpu.memref_squeeze %265 : memref<1x!tpu.dma_semaphore, #tpu.memory_space<semaphore_mem>> -> memref<!tpu.dma_semaphore, #tpu.memory_space<semaphore_mem>>
      tpu.enqueue_dma source(%262 : memref<1x128xf32, #tpu.memory_space<any>>) target(%264 : memref<1x128xf32, #tpu.memory_space<vmem>>) target_semaphore(%266 : memref<!tpu.dma_semaphore, #tpu.memory_space<semaphore_mem>>)
      %c29_i32 = arith.constant 29 : i32
      %267 = arith.addi %34, %c29_i32 : i32
      %268 = arith.index_cast %267 : i32 to index
      %269 = memref.load %arg2[%268] : memref<160xi32, #tpu.memory_space<smem>>
      %c0_i32_166 = arith.constant 0 : i32
      %c0_i32_167 = arith.constant 0 : i32
      %c0_i32_168 = arith.constant 0 : i32
      %270 = tpu.memref_slice %arg3[%269, %c0_i32_168] : memref<512x128xf32, #tpu.memory_space<any>> -> memref<1x128xf32, #tpu.memory_space<any>>
      %c29_i32_169 = arith.constant 29 : i32
      %c0_i32_170 = arith.constant 0 : i32
      %271 = tpu.memref_slice %arg6[%c0_i32_166, %c29_i32_169, %c0_i32_170] : memref<2x40x128xf32, #tpu.memory_space<vmem>> -> memref<1x1x128xf32, #tpu.memory_space<vmem>>
      %272 = tpu.memref_squeeze %271 : memref<1x1x128xf32, #tpu.memory_space<vmem>> -> memref<1x128xf32, #tpu.memory_space<vmem>>
      %273 = tpu.memref_slice %arg7[%c0_i32_167] : memref<2x!tpu.dma_semaphore, #tpu.memory_space<semaphore_mem>> -> memref<1x!tpu.dma_semaphore, #tpu.memory_space<semaphore_mem>>
      %274 = tpu.memref_squeeze %273 : memref<1x!tpu.dma_semaphore, #tpu.memory_space<semaphore_mem>> -> memref<!tpu.dma_semaphore, #tpu.memory_space<semaphore_mem>>
      tpu.enqueue_dma source(%270 : memref<1x128xf32, #tpu.memory_space<any>>) target(%272 : memref<1x128xf32, #tpu.memory_space<vmem>>) target_semaphore(%274 : memref<!tpu.dma_semaphore, #tpu.memory_space<semaphore_mem>>)
      %c30_i32 = arith.constant 30 : i32
      %275 = arith.addi %34, %c30_i32 : i32
      %276 = arith.index_cast %275 : i32 to index
      %277 = memref.load %arg2[%276] : memref<160xi32, #tpu.memory_space<smem>>
      %c0_i32_171 = arith.constant 0 : i32
      %c0_i32_172 = arith.constant 0 : i32
      %c0_i32_173 = arith.constant 0 : i32
      %278 = tpu.memref_slice %arg3[%277, %c0_i32_173] : memref<512x128xf32, #tpu.memory_space<any>> -> memref<1x128xf32, #tpu.memory_space<any>>
      %c30_i32_174 = arith.constant 30 : i32
      %c0_i32_175 = arith.constant 0 : i32
      %279 = tpu.memref_slice %arg6[%c0_i32_171, %c30_i32_174, %c0_i32_175] : memref<2x40x128xf32, #tpu.memory_space<vmem>> -> memref<1x1x128xf32, #tpu.memory_space<vmem>>
      %280 = tpu.memref_squeeze %279 : memref<1x1x128xf32, #tpu.memory_space<vmem>> -> memref<1x128xf32, #tpu.memory_space<vmem>>
      %281 = tpu.memref_slice %arg7[%c0_i32_172] : memref<2x!tpu.dma_semaphore, #tpu.memory_space<semaphore_mem>> -> memref<1x!tpu.dma_semaphore, #tpu.memory_space<semaphore_mem>>
      %282 = tpu.memref_squeeze %281 : memref<1x!tpu.dma_semaphore, #tpu.memory_space<semaphore_mem>> -> memref<!tpu.dma_semaphore, #tpu.memory_space<semaphore_mem>>
      tpu.enqueue_dma source(%278 : memref<1x128xf32, #tpu.memory_space<any>>) target(%280 : memref<1x128xf32, #tpu.memory_space<vmem>>) target_semaphore(%282 : memref<!tpu.dma_semaphore, #tpu.memory_space<semaphore_mem>>)
      %c31_i32 = arith.constant 31 : i32
      %283 = arith.addi %34, %c31_i32 : i32
      %284 = arith.index_cast %283 : i32 to index
      %285 = memref.load %arg2[%284] : memref<160xi32, #tpu.memory_space<smem>>
      %c0_i32_176 = arith.constant 0 : i32
      %c0_i32_177 = arith.constant 0 : i32
      %c0_i32_178 = arith.constant 0 : i32
      %286 = tpu.memref_slice %arg3[%285, %c0_i32_178] : memref<512x128xf32, #tpu.memory_space<any>> -> memref<1x128xf32, #tpu.memory_space<any>>
      %c31_i32_179 = arith.constant 31 : i32
      %c0_i32_180 = arith.constant 0 : i32
      %287 = tpu.memref_slice %arg6[%c0_i32_176, %c31_i32_179, %c0_i32_180] : memref<2x40x128xf32, #tpu.memory_space<vmem>> -> memref<1x1x128xf32, #tpu.memory_space<vmem>>
      %288 = tpu.memref_squeeze %287 : memref<1x1x128xf32, #tpu.memory_space<vmem>> -> memref<1x128xf32, #tpu.memory_space<vmem>>
      %289 = tpu.memref_slice %arg7[%c0_i32_177] : memref<2x!tpu.dma_semaphore, #tpu.memory_space<semaphore_mem>> -> memref<1x!tpu.dma_semaphore, #tpu.memory_space<semaphore_mem>>
      %290 = tpu.memref_squeeze %289 : memref<1x!tpu.dma_semaphore, #tpu.memory_space<semaphore_mem>> -> memref<!tpu.dma_semaphore, #tpu.memory_space<semaphore_mem>>
      tpu.enqueue_dma source(%286 : memref<1x128xf32, #tpu.memory_space<any>>) target(%288 : memref<1x128xf32, #tpu.memory_space<vmem>>) target_semaphore(%290 : memref<!tpu.dma_semaphore, #tpu.memory_space<semaphore_mem>>)
      %c32_i32 = arith.constant 32 : i32
      %291 = arith.addi %34, %c32_i32 : i32
      %292 = arith.index_cast %291 : i32 to index
      %293 = memref.load %arg2[%292] : memref<160xi32, #tpu.memory_space<smem>>
      %c0_i32_181 = arith.constant 0 : i32
      %c0_i32_182 = arith.constant 0 : i32
      %c0_i32_183 = arith.constant 0 : i32
      %294 = tpu.memref_slice %arg3[%293, %c0_i32_183] : memref<512x128xf32, #tpu.memory_space<any>> -> memref<1x128xf32, #tpu.memory_space<any>>
      %c32_i32_184 = arith.constant 32 : i32
      %c0_i32_185 = arith.constant 0 : i32
      %295 = tpu.memref_slice %arg6[%c0_i32_181, %c32_i32_184, %c0_i32_185] : memref<2x40x128xf32, #tpu.memory_space<vmem>> -> memref<1x1x128xf32, #tpu.memory_space<vmem>>
      %296 = tpu.memref_squeeze %295 : memref<1x1x128xf32, #tpu.memory_space<vmem>> -> memref<1x128xf32, #tpu.memory_space<vmem>>
      %297 = tpu.memref_slice %arg7[%c0_i32_182] : memref<2x!tpu.dma_semaphore, #tpu.memory_space<semaphore_mem>> -> memref<1x!tpu.dma_semaphore, #tpu.memory_space<semaphore_mem>>
      %298 = tpu.memref_squeeze %297 : memref<1x!tpu.dma_semaphore, #tpu.memory_space<semaphore_mem>> -> memref<!tpu.dma_semaphore, #tpu.memory_space<semaphore_mem>>
      tpu.enqueue_dma source(%294 : memref<1x128xf32, #tpu.memory_space<any>>) target(%296 : memref<1x128xf32, #tpu.memory_space<vmem>>) target_semaphore(%298 : memref<!tpu.dma_semaphore, #tpu.memory_space<semaphore_mem>>)
      %c33_i32 = arith.constant 33 : i32
      %299 = arith.addi %34, %c33_i32 : i32
      %300 = arith.index_cast %299 : i32 to index
      %301 = memref.load %arg2[%300] : memref<160xi32, #tpu.memory_space<smem>>
      %c0_i32_186 = arith.constant 0 : i32
      %c0_i32_187 = arith.constant 0 : i32
      %c0_i32_188 = arith.constant 0 : i32
      %302 = tpu.memref_slice %arg3[%301, %c0_i32_188] : memref<512x128xf32, #tpu.memory_space<any>> -> memref<1x128xf32, #tpu.memory_space<any>>
      %c33_i32_189 = arith.constant 33 : i32
      %c0_i32_190 = arith.constant 0 : i32
      %303 = tpu.memref_slice %arg6[%c0_i32_186, %c33_i32_189, %c0_i32_190] : memref<2x40x128xf32, #tpu.memory_space<vmem>> -> memref<1x1x128xf32, #tpu.memory_space<vmem>>
      %304 = tpu.memref_squeeze %303 : memref<1x1x128xf32, #tpu.memory_space<vmem>> -> memref<1x128xf32, #tpu.memory_space<vmem>>
      %305 = tpu.memref_slice %arg7[%c0_i32_187] : memref<2x!tpu.dma_semaphore, #tpu.memory_space<semaphore_mem>> -> memref<1x!tpu.dma_semaphore, #tpu.memory_space<semaphore_mem>>
      %306 = tpu.memref_squeeze %305 : memref<1x!tpu.dma_semaphore, #tpu.memory_space<semaphore_mem>> -> memref<!tpu.dma_semaphore, #tpu.memory_space<semaphore_mem>>
      tpu.enqueue_dma source(%302 : memref<1x128xf32, #tpu.memory_space<any>>) target(%304 : memref<1x128xf32, #tpu.memory_space<vmem>>) target_semaphore(%306 : memref<!tpu.dma_semaphore, #tpu.memory_space<semaphore_mem>>)
      %c34_i32 = arith.constant 34 : i32
      %307 = arith.addi %34, %c34_i32 : i32
      %308 = arith.index_cast %307 : i32 to index
      %309 = memref.load %arg2[%308] : memref<160xi32, #tpu.memory_space<smem>>
      %c0_i32_191 = arith.constant 0 : i32
      %c0_i32_192 = arith.constant 0 : i32
      %c0_i32_193 = arith.constant 0 : i32
      %310 = tpu.memref_slice %arg3[%309, %c0_i32_193] : memref<512x128xf32, #tpu.memory_space<any>> -> memref<1x128xf32, #tpu.memory_space<any>>
      %c34_i32_194 = arith.constant 34 : i32
      %c0_i32_195 = arith.constant 0 : i32
      %311 = tpu.memref_slice %arg6[%c0_i32_191, %c34_i32_194, %c0_i32_195] : memref<2x40x128xf32, #tpu.memory_space<vmem>> -> memref<1x1x128xf32, #tpu.memory_space<vmem>>
      %312 = tpu.memref_squeeze %311 : memref<1x1x128xf32, #tpu.memory_space<vmem>> -> memref<1x128xf32, #tpu.memory_space<vmem>>
      %313 = tpu.memref_slice %arg7[%c0_i32_192] : memref<2x!tpu.dma_semaphore, #tpu.memory_space<semaphore_mem>> -> memref<1x!tpu.dma_semaphore, #tpu.memory_space<semaphore_mem>>
      %314 = tpu.memref_squeeze %313 : memref<1x!tpu.dma_semaphore, #tpu.memory_space<semaphore_mem>> -> memref<!tpu.dma_semaphore, #tpu.memory_space<semaphore_mem>>
      tpu.enqueue_dma source(%310 : memref<1x128xf32, #tpu.memory_space<any>>) target(%312 : memref<1x128xf32, #tpu.memory_space<vmem>>) target_semaphore(%314 : memref<!tpu.dma_semaphore, #tpu.memory_space<semaphore_mem>>)
      %c35_i32 = arith.constant 35 : i32
      %315 = arith.addi %34, %c35_i32 : i32
      %316 = arith.index_cast %315 : i32 to index
      %317 = memref.load %arg2[%316] : memref<160xi32, #tpu.memory_space<smem>>
      %c0_i32_196 = arith.constant 0 : i32
      %c0_i32_197 = arith.constant 0 : i32
      %c0_i32_198 = arith.constant 0 : i32
      %318 = tpu.memref_slice %arg3[%317, %c0_i32_198] : memref<512x128xf32, #tpu.memory_space<any>> -> memref<1x128xf32, #tpu.memory_space<any>>
      %c35_i32_199 = arith.constant 35 : i32
      %c0_i32_200 = arith.constant 0 : i32
      %319 = tpu.memref_slice %arg6[%c0_i32_196, %c35_i32_199, %c0_i32_200] : memref<2x40x128xf32, #tpu.memory_space<vmem>> -> memref<1x1x128xf32, #tpu.memory_space<vmem>>
      %320 = tpu.memref_squeeze %319 : memref<1x1x128xf32, #tpu.memory_space<vmem>> -> memref<1x128xf32, #tpu.memory_space<vmem>>
      %321 = tpu.memref_slice %arg7[%c0_i32_197] : memref<2x!tpu.dma_semaphore, #tpu.memory_space<semaphore_mem>> -> memref<1x!tpu.dma_semaphore, #tpu.memory_space<semaphore_mem>>
      %322 = tpu.memref_squeeze %321 : memref<1x!tpu.dma_semaphore, #tpu.memory_space<semaphore_mem>> -> memref<!tpu.dma_semaphore, #tpu.memory_space<semaphore_mem>>
      tpu.enqueue_dma source(%318 : memref<1x128xf32, #tpu.memory_space<any>>) target(%320 : memref<1x128xf32, #tpu.memory_space<vmem>>) target_semaphore(%322 : memref<!tpu.dma_semaphore, #tpu.memory_space<semaphore_mem>>)
      %c36_i32 = arith.constant 36 : i32
      %323 = arith.addi %34, %c36_i32 : i32
      %324 = arith.index_cast %323 : i32 to index
      %325 = memref.load %arg2[%324] : memref<160xi32, #tpu.memory_space<smem>>
      %c0_i32_201 = arith.constant 0 : i32
      %c0_i32_202 = arith.constant 0 : i32
      %c0_i32_203 = arith.constant 0 : i32
      %326 = tpu.memref_slice %arg3[%325, %c0_i32_203] : memref<512x128xf32, #tpu.memory_space<any>> -> memref<1x128xf32, #tpu.memory_space<any>>
      %c36_i32_204 = arith.constant 36 : i32
      %c0_i32_205 = arith.constant 0 : i32
      %327 = tpu.memref_slice %arg6[%c0_i32_201, %c36_i32_204, %c0_i32_205] : memref<2x40x128xf32, #tpu.memory_space<vmem>> -> memref<1x1x128xf32, #tpu.memory_space<vmem>>
      %328 = tpu.memref_squeeze %327 : memref<1x1x128xf32, #tpu.memory_space<vmem>> -> memref<1x128xf32, #tpu.memory_space<vmem>>
      %329 = tpu.memref_slice %arg7[%c0_i32_202] : memref<2x!tpu.dma_semaphore, #tpu.memory_space<semaphore_mem>> -> memref<1x!tpu.dma_semaphore, #tpu.memory_space<semaphore_mem>>
      %330 = tpu.memref_squeeze %329 : memref<1x!tpu.dma_semaphore, #tpu.memory_space<semaphore_mem>> -> memref<!tpu.dma_semaphore, #tpu.memory_space<semaphore_mem>>
      tpu.enqueue_dma source(%326 : memref<1x128xf32, #tpu.memory_space<any>>) target(%328 : memref<1x128xf32, #tpu.memory_space<vmem>>) target_semaphore(%330 : memref<!tpu.dma_semaphore, #tpu.memory_space<semaphore_mem>>)
      %c37_i32 = arith.constant 37 : i32
      %331 = arith.addi %34, %c37_i32 : i32
      %332 = arith.index_cast %331 : i32 to index
      %333 = memref.load %arg2[%332] : memref<160xi32, #tpu.memory_space<smem>>
      %c0_i32_206 = arith.constant 0 : i32
      %c0_i32_207 = arith.constant 0 : i32
      %c0_i32_208 = arith.constant 0 : i32
      %334 = tpu.memref_slice %arg3[%333, %c0_i32_208] : memref<512x128xf32, #tpu.memory_space<any>> -> memref<1x128xf32, #tpu.memory_space<any>>
      %c37_i32_209 = arith.constant 37 : i32
      %c0_i32_210 = arith.constant 0 : i32
      %335 = tpu.memref_slice %arg6[%c0_i32_206, %c37_i32_209, %c0_i32_210] : memref<2x40x128xf32, #tpu.memory_space<vmem>> -> memref<1x1x128xf32, #tpu.memory_space<vmem>>
      %336 = tpu.memref_squeeze %335 : memref<1x1x128xf32, #tpu.memory_space<vmem>> -> memref<1x128xf32, #tpu.memory_space<vmem>>
      %337 = tpu.memref_slice %arg7[%c0_i32_207] : memref<2x!tpu.dma_semaphore, #tpu.memory_space<semaphore_mem>> -> memref<1x!tpu.dma_semaphore, #tpu.memory_space<semaphore_mem>>
      %338 = tpu.memref_squeeze %337 : memref<1x!tpu.dma_semaphore, #tpu.memory_space<semaphore_mem>> -> memref<!tpu.dma_semaphore, #tpu.memory_space<semaphore_mem>>
      tpu.enqueue_dma source(%334 : memref<1x128xf32, #tpu.memory_space<any>>) target(%336 : memref<1x128xf32, #tpu.memory_space<vmem>>) target_semaphore(%338 : memref<!tpu.dma_semaphore, #tpu.memory_space<semaphore_mem>>)
      %c38_i32 = arith.constant 38 : i32
      %339 = arith.addi %34, %c38_i32 : i32
      %340 = arith.index_cast %339 : i32 to index
      %341 = memref.load %arg2[%340] : memref<160xi32, #tpu.memory_space<smem>>
      %c0_i32_211 = arith.constant 0 : i32
      %c0_i32_212 = arith.constant 0 : i32
      %c0_i32_213 = arith.constant 0 : i32
      %342 = tpu.memref_slice %arg3[%341, %c0_i32_213] : memref<512x128xf32, #tpu.memory_space<any>> -> memref<1x128xf32, #tpu.memory_space<any>>
      %c38_i32_214 = arith.constant 38 : i32
      %c0_i32_215 = arith.constant 0 : i32
      %343 = tpu.memref_slice %arg6[%c0_i32_211, %c38_i32_214, %c0_i32_215] : memref<2x40x128xf32, #tpu.memory_space<vmem>> -> memref<1x1x128xf32, #tpu.memory_space<vmem>>
      %344 = tpu.memref_squeeze %343 : memref<1x1x128xf32, #tpu.memory_space<vmem>> -> memref<1x128xf32, #tpu.memory_space<vmem>>
      %345 = tpu.memref_slice %arg7[%c0_i32_212] : memref<2x!tpu.dma_semaphore, #tpu.memory_space<semaphore_mem>> -> memref<1x!tpu.dma_semaphore, #tpu.memory_space<semaphore_mem>>
      %346 = tpu.memref_squeeze %345 : memref<1x!tpu.dma_semaphore, #tpu.memory_space<semaphore_mem>> -> memref<!tpu.dma_semaphore, #tpu.memory_space<semaphore_mem>>
      tpu.enqueue_dma source(%342 : memref<1x128xf32, #tpu.memory_space<any>>) target(%344 : memref<1x128xf32, #tpu.memory_space<vmem>>) target_semaphore(%346 : memref<!tpu.dma_semaphore, #tpu.memory_space<semaphore_mem>>)
      %c39_i32 = arith.constant 39 : i32
      %347 = arith.addi %34, %c39_i32 : i32
      %348 = arith.index_cast %347 : i32 to index
      %349 = memref.load %arg2[%348] : memref<160xi32, #tpu.memory_space<smem>>
      %c0_i32_216 = arith.constant 0 : i32
      %c0_i32_217 = arith.constant 0 : i32
      %c0_i32_218 = arith.constant 0 : i32
      %350 = tpu.memref_slice %arg3[%349, %c0_i32_218] : memref<512x128xf32, #tpu.memory_space<any>> -> memref<1x128xf32, #tpu.memory_space<any>>
      %c39_i32_219 = arith.constant 39 : i32
      %c0_i32_220 = arith.constant 0 : i32
      %351 = tpu.memref_slice %arg6[%c0_i32_216, %c39_i32_219, %c0_i32_220] : memref<2x40x128xf32, #tpu.memory_space<vmem>> -> memref<1x1x128xf32, #tpu.memory_space<vmem>>
      %352 = tpu.memref_squeeze %351 : memref<1x1x128xf32, #tpu.memory_space<vmem>> -> memref<1x128xf32, #tpu.memory_space<vmem>>
      %353 = tpu.memref_slice %arg7[%c0_i32_217] : memref<2x!tpu.dma_semaphore, #tpu.memory_space<semaphore_mem>> -> memref<1x!tpu.dma_semaphore, #tpu.memory_space<semaphore_mem>>
      %354 = tpu.memref_squeeze %353 : memref<1x!tpu.dma_semaphore, #tpu.memory_space<semaphore_mem>> -> memref<!tpu.dma_semaphore, #tpu.memory_space<semaphore_mem>>
      tpu.enqueue_dma source(%350 : memref<1x128xf32, #tpu.memory_space<any>>) target(%352 : memref<1x128xf32, #tpu.memory_space<vmem>>) target_semaphore(%354 : memref<!tpu.dma_semaphore, #tpu.memory_space<semaphore_mem>>)
    } else {
    }
    %c1_i32_5 = arith.constant 1 : i32
    %13 = arith.addi %arg1, %c1_i32_5 : i32
    %c2_i32_6 = arith.constant 2 : i32
    %14 = arith.cmpi slt, %13, %c2_i32_6 : i32
    %15 = arith.extui %14 : i1 to i32
    %c0_i32_7 = arith.constant 0 : i32
    %16 = arith.cmpi ne, %15, %c0_i32_7 : i32
    scf.if %16 {
      %c1_i32_17 = arith.constant 1 : i32
      %33 = arith.addi %arg1, %c1_i32_17 : i32
      %c1_i32_18 = arith.constant 1 : i32
      %34 = arith.subi %c1_i32_18, %9 : i32
      %c80_i32 = arith.constant 80 : i32
      %35 = arith.muli %arg0, %c80_i32 : i32
      %c40_i32_19 = arith.constant 40 : i32
      %36 = arith.muli %33, %c40_i32_19 : i32
      %37 = arith.addi %35, %36 : i32
      %c0_i32_20 = arith.constant 0 : i32
      %38 = arith.addi %37, %c0_i32_20 : i32
      %39 = arith.index_cast %38 : i32 to index
      %40 = memref.load %arg2[%39] : memref<160xi32, #tpu.memory_space<smem>>
      %c0_i32_21 = arith.constant 0 : i32
      %41 = tpu.memref_slice %arg3[%40, %c0_i32_21] : memref<512x128xf32, #tpu.memory_space<any>> -> memref<1x128xf32, #tpu.memory_space<any>>
      %c0_i32_22 = arith.constant 0 : i32
      %c0_i32_23 = arith.constant 0 : i32
      %42 = tpu.memref_slice %arg6[%34, %c0_i32_22, %c0_i32_23] : memref<2x40x128xf32, #tpu.memory_space<vmem>> -> memref<1x1x128xf32, #tpu.memory_space<vmem>>
      %43 = tpu.memref_squeeze %42 : memref<1x1x128xf32, #tpu.memory_space<vmem>> -> memref<1x128xf32, #tpu.memory_space<vmem>>
      %44 = tpu.memref_slice %arg7[%34] : memref<2x!tpu.dma_semaphore, #tpu.memory_space<semaphore_mem>> -> memref<1x!tpu.dma_semaphore, #tpu.memory_space<semaphore_mem>>
      %45 = tpu.memref_squeeze %44 : memref<1x!tpu.dma_semaphore, #tpu.memory_space<semaphore_mem>> -> memref<!tpu.dma_semaphore, #tpu.memory_space<semaphore_mem>>
      tpu.enqueue_dma source(%41 : memref<1x128xf32, #tpu.memory_space<any>>) target(%43 : memref<1x128xf32, #tpu.memory_space<vmem>>) target_semaphore(%45 : memref<!tpu.dma_semaphore, #tpu.memory_space<semaphore_mem>>)
      %c1_i32_24 = arith.constant 1 : i32
      %46 = arith.addi %37, %c1_i32_24 : i32
      %47 = arith.index_cast %46 : i32 to index
      %48 = memref.load %arg2[%47] : memref<160xi32, #tpu.memory_space<smem>>
      %c0_i32_25 = arith.constant 0 : i32
      %49 = tpu.memref_slice %arg3[%48, %c0_i32_25] : memref<512x128xf32, #tpu.memory_space<any>> -> memref<1x128xf32, #tpu.memory_space<any>>
      %c1_i32_26 = arith.constant 1 : i32
      %c0_i32_27 = arith.constant 0 : i32
      %50 = tpu.memref_slice %arg6[%34, %c1_i32_26, %c0_i32_27] : memref<2x40x128xf32, #tpu.memory_space<vmem>> -> memref<1x1x128xf32, #tpu.memory_space<vmem>>
      %51 = tpu.memref_squeeze %50 : memref<1x1x128xf32, #tpu.memory_space<vmem>> -> memref<1x128xf32, #tpu.memory_space<vmem>>
      %52 = tpu.memref_slice %arg7[%34] : memref<2x!tpu.dma_semaphore, #tpu.memory_space<semaphore_mem>> -> memref<1x!tpu.dma_semaphore, #tpu.memory_space<semaphore_mem>>
      %53 = tpu.memref_squeeze %52 : memref<1x!tpu.dma_semaphore, #tpu.memory_space<semaphore_mem>> -> memref<!tpu.dma_semaphore, #tpu.memory_space<semaphore_mem>>
      tpu.enqueue_dma source(%49 : memref<1x128xf32, #tpu.memory_space<any>>) target(%51 : memref<1x128xf32, #tpu.memory_space<vmem>>) target_semaphore(%53 : memref<!tpu.dma_semaphore, #tpu.memory_space<semaphore_mem>>)
      %c2_i32_28 = arith.constant 2 : i32
      %54 = arith.addi %37, %c2_i32_28 : i32
      %55 = arith.index_cast %54 : i32 to index
      %56 = memref.load %arg2[%55] : memref<160xi32, #tpu.memory_space<smem>>
      %c0_i32_29 = arith.constant 0 : i32
      %57 = tpu.memref_slice %arg3[%56, %c0_i32_29] : memref<512x128xf32, #tpu.memory_space<any>> -> memref<1x128xf32, #tpu.memory_space<any>>
      %c2_i32_30 = arith.constant 2 : i32
      %c0_i32_31 = arith.constant 0 : i32
      %58 = tpu.memref_slice %arg6[%34, %c2_i32_30, %c0_i32_31] : memref<2x40x128xf32, #tpu.memory_space<vmem>> -> memref<1x1x128xf32, #tpu.memory_space<vmem>>
      %59 = tpu.memref_squeeze %58 : memref<1x1x128xf32, #tpu.memory_space<vmem>> -> memref<1x128xf32, #tpu.memory_space<vmem>>
      %60 = tpu.memref_slice %arg7[%34] : memref<2x!tpu.dma_semaphore, #tpu.memory_space<semaphore_mem>> -> memref<1x!tpu.dma_semaphore, #tpu.memory_space<semaphore_mem>>
      %61 = tpu.memref_squeeze %60 : memref<1x!tpu.dma_semaphore, #tpu.memory_space<semaphore_mem>> -> memref<!tpu.dma_semaphore, #tpu.memory_space<semaphore_mem>>
      tpu.enqueue_dma source(%57 : memref<1x128xf32, #tpu.memory_space<any>>) target(%59 : memref<1x128xf32, #tpu.memory_space<vmem>>) target_semaphore(%61 : memref<!tpu.dma_semaphore, #tpu.memory_space<semaphore_mem>>)
      %c3_i32 = arith.constant 3 : i32
      %62 = arith.addi %37, %c3_i32 : i32
      %63 = arith.index_cast %62 : i32 to index
      %64 = memref.load %arg2[%63] : memref<160xi32, #tpu.memory_space<smem>>
      %c0_i32_32 = arith.constant 0 : i32
      %65 = tpu.memref_slice %arg3[%64, %c0_i32_32] : memref<512x128xf32, #tpu.memory_space<any>> -> memref<1x128xf32, #tpu.memory_space<any>>
      %c3_i32_33 = arith.constant 3 : i32
      %c0_i32_34 = arith.constant 0 : i32
      %66 = tpu.memref_slice %arg6[%34, %c3_i32_33, %c0_i32_34] : memref<2x40x128xf32, #tpu.memory_space<vmem>> -> memref<1x1x128xf32, #tpu.memory_space<vmem>>
      %67 = tpu.memref_squeeze %66 : memref<1x1x128xf32, #tpu.memory_space<vmem>> -> memref<1x128xf32, #tpu.memory_space<vmem>>
      %68 = tpu.memref_slice %arg7[%34] : memref<2x!tpu.dma_semaphore, #tpu.memory_space<semaphore_mem>> -> memref<1x!tpu.dma_semaphore, #tpu.memory_space<semaphore_mem>>
      %69 = tpu.memref_squeeze %68 : memref<1x!tpu.dma_semaphore, #tpu.memory_space<semaphore_mem>> -> memref<!tpu.dma_semaphore, #tpu.memory_space<semaphore_mem>>
      tpu.enqueue_dma source(%65 : memref<1x128xf32, #tpu.memory_space<any>>) target(%67 : memref<1x128xf32, #tpu.memory_space<vmem>>) target_semaphore(%69 : memref<!tpu.dma_semaphore, #tpu.memory_space<semaphore_mem>>)
      %c4_i32 = arith.constant 4 : i32
      %70 = arith.addi %37, %c4_i32 : i32
      %71 = arith.index_cast %70 : i32 to index
      %72 = memref.load %arg2[%71] : memref<160xi32, #tpu.memory_space<smem>>
      %c0_i32_35 = arith.constant 0 : i32
      %73 = tpu.memref_slice %arg3[%72, %c0_i32_35] : memref<512x128xf32, #tpu.memory_space<any>> -> memref<1x128xf32, #tpu.memory_space<any>>
      %c4_i32_36 = arith.constant 4 : i32
      %c0_i32_37 = arith.constant 0 : i32
      %74 = tpu.memref_slice %arg6[%34, %c4_i32_36, %c0_i32_37] : memref<2x40x128xf32, #tpu.memory_space<vmem>> -> memref<1x1x128xf32, #tpu.memory_space<vmem>>
      %75 = tpu.memref_squeeze %74 : memref<1x1x128xf32, #tpu.memory_space<vmem>> -> memref<1x128xf32, #tpu.memory_space<vmem>>
      %76 = tpu.memref_slice %arg7[%34] : memref<2x!tpu.dma_semaphore, #tpu.memory_space<semaphore_mem>> -> memref<1x!tpu.dma_semaphore, #tpu.memory_space<semaphore_mem>>
      %77 = tpu.memref_squeeze %76 : memref<1x!tpu.dma_semaphore, #tpu.memory_space<semaphore_mem>> -> memref<!tpu.dma_semaphore, #tpu.memory_space<semaphore_mem>>
      tpu.enqueue_dma source(%73 : memref<1x128xf32, #tpu.memory_space<any>>) target(%75 : memref<1x128xf32, #tpu.memory_space<vmem>>) target_semaphore(%77 : memref<!tpu.dma_semaphore, #tpu.memory_space<semaphore_mem>>)
      %c5_i32 = arith.constant 5 : i32
      %78 = arith.addi %37, %c5_i32 : i32
      %79 = arith.index_cast %78 : i32 to index
      %80 = memref.load %arg2[%79] : memref<160xi32, #tpu.memory_space<smem>>
      %c0_i32_38 = arith.constant 0 : i32
      %81 = tpu.memref_slice %arg3[%80, %c0_i32_38] : memref<512x128xf32, #tpu.memory_space<any>> -> memref<1x128xf32, #tpu.memory_space<any>>
      %c5_i32_39 = arith.constant 5 : i32
      %c0_i32_40 = arith.constant 0 : i32
      %82 = tpu.memref_slice %arg6[%34, %c5_i32_39, %c0_i32_40] : memref<2x40x128xf32, #tpu.memory_space<vmem>> -> memref<1x1x128xf32, #tpu.memory_space<vmem>>
      %83 = tpu.memref_squeeze %82 : memref<1x1x128xf32, #tpu.memory_space<vmem>> -> memref<1x128xf32, #tpu.memory_space<vmem>>
      %84 = tpu.memref_slice %arg7[%34] : memref<2x!tpu.dma_semaphore, #tpu.memory_space<semaphore_mem>> -> memref<1x!tpu.dma_semaphore, #tpu.memory_space<semaphore_mem>>
      %85 = tpu.memref_squeeze %84 : memref<1x!tpu.dma_semaphore, #tpu.memory_space<semaphore_mem>> -> memref<!tpu.dma_semaphore, #tpu.memory_space<semaphore_mem>>
      tpu.enqueue_dma source(%81 : memref<1x128xf32, #tpu.memory_space<any>>) target(%83 : memref<1x128xf32, #tpu.memory_space<vmem>>) target_semaphore(%85 : memref<!tpu.dma_semaphore, #tpu.memory_space<semaphore_mem>>)
      %c6_i32 = arith.constant 6 : i32
      %86 = arith.addi %37, %c6_i32 : i32
      %87 = arith.index_cast %86 : i32 to index
      %88 = memref.load %arg2[%87] : memref<160xi32, #tpu.memory_space<smem>>
      %c0_i32_41 = arith.constant 0 : i32
      %89 = tpu.memref_slice %arg3[%88, %c0_i32_41] : memref<512x128xf32, #tpu.memory_space<any>> -> memref<1x128xf32, #tpu.memory_space<any>>
      %c6_i32_42 = arith.constant 6 : i32
      %c0_i32_43 = arith.constant 0 : i32
      %90 = tpu.memref_slice %arg6[%34, %c6_i32_42, %c0_i32_43] : memref<2x40x128xf32, #tpu.memory_space<vmem>> -> memref<1x1x128xf32, #tpu.memory_space<vmem>>
      %91 = tpu.memref_squeeze %90 : memref<1x1x128xf32, #tpu.memory_space<vmem>> -> memref<1x128xf32, #tpu.memory_space<vmem>>
      %92 = tpu.memref_slice %arg7[%34] : memref<2x!tpu.dma_semaphore, #tpu.memory_space<semaphore_mem>> -> memref<1x!tpu.dma_semaphore, #tpu.memory_space<semaphore_mem>>
      %93 = tpu.memref_squeeze %92 : memref<1x!tpu.dma_semaphore, #tpu.memory_space<semaphore_mem>> -> memref<!tpu.dma_semaphore, #tpu.memory_space<semaphore_mem>>
      tpu.enqueue_dma source(%89 : memref<1x128xf32, #tpu.memory_space<any>>) target(%91 : memref<1x128xf32, #tpu.memory_space<vmem>>) target_semaphore(%93 : memref<!tpu.dma_semaphore, #tpu.memory_space<semaphore_mem>>)
      %c7_i32 = arith.constant 7 : i32
      %94 = arith.addi %37, %c7_i32 : i32
      %95 = arith.index_cast %94 : i32 to index
      %96 = memref.load %arg2[%95] : memref<160xi32, #tpu.memory_space<smem>>
      %c0_i32_44 = arith.constant 0 : i32
      %97 = tpu.memref_slice %arg3[%96, %c0_i32_44] : memref<512x128xf32, #tpu.memory_space<any>> -> memref<1x128xf32, #tpu.memory_space<any>>
      %c7_i32_45 = arith.constant 7 : i32
      %c0_i32_46 = arith.constant 0 : i32
      %98 = tpu.memref_slice %arg6[%34, %c7_i32_45, %c0_i32_46] : memref<2x40x128xf32, #tpu.memory_space<vmem>> -> memref<1x1x128xf32, #tpu.memory_space<vmem>>
      %99 = tpu.memref_squeeze %98 : memref<1x1x128xf32, #tpu.memory_space<vmem>> -> memref<1x128xf32, #tpu.memory_space<vmem>>
      %100 = tpu.memref_slice %arg7[%34] : memref<2x!tpu.dma_semaphore, #tpu.memory_space<semaphore_mem>> -> memref<1x!tpu.dma_semaphore, #tpu.memory_space<semaphore_mem>>
      %101 = tpu.memref_squeeze %100 : memref<1x!tpu.dma_semaphore, #tpu.memory_space<semaphore_mem>> -> memref<!tpu.dma_semaphore, #tpu.memory_space<semaphore_mem>>
      tpu.enqueue_dma source(%97 : memref<1x128xf32, #tpu.memory_space<any>>) target(%99 : memref<1x128xf32, #tpu.memory_space<vmem>>) target_semaphore(%101 : memref<!tpu.dma_semaphore, #tpu.memory_space<semaphore_mem>>)
      %c8_i32 = arith.constant 8 : i32
      %102 = arith.addi %37, %c8_i32 : i32
      %103 = arith.index_cast %102 : i32 to index
      %104 = memref.load %arg2[%103] : memref<160xi32, #tpu.memory_space<smem>>
      %c0_i32_47 = arith.constant 0 : i32
      %105 = tpu.memref_slice %arg3[%104, %c0_i32_47] : memref<512x128xf32, #tpu.memory_space<any>> -> memref<1x128xf32, #tpu.memory_space<any>>
      %c8_i32_48 = arith.constant 8 : i32
      %c0_i32_49 = arith.constant 0 : i32
      %106 = tpu.memref_slice %arg6[%34, %c8_i32_48, %c0_i32_49] : memref<2x40x128xf32, #tpu.memory_space<vmem>> -> memref<1x1x128xf32, #tpu.memory_space<vmem>>
      %107 = tpu.memref_squeeze %106 : memref<1x1x128xf32, #tpu.memory_space<vmem>> -> memref<1x128xf32, #tpu.memory_space<vmem>>
      %108 = tpu.memref_slice %arg7[%34] : memref<2x!tpu.dma_semaphore, #tpu.memory_space<semaphore_mem>> -> memref<1x!tpu.dma_semaphore, #tpu.memory_space<semaphore_mem>>
      %109 = tpu.memref_squeeze %108 : memref<1x!tpu.dma_semaphore, #tpu.memory_space<semaphore_mem>> -> memref<!tpu.dma_semaphore, #tpu.memory_space<semaphore_mem>>
      tpu.enqueue_dma source(%105 : memref<1x128xf32, #tpu.memory_space<any>>) target(%107 : memref<1x128xf32, #tpu.memory_space<vmem>>) target_semaphore(%109 : memref<!tpu.dma_semaphore, #tpu.memory_space<semaphore_mem>>)
      %c9_i32 = arith.constant 9 : i32
      %110 = arith.addi %37, %c9_i32 : i32
      %111 = arith.index_cast %110 : i32 to index
      %112 = memref.load %arg2[%111] : memref<160xi32, #tpu.memory_space<smem>>
      %c0_i32_50 = arith.constant 0 : i32
      %113 = tpu.memref_slice %arg3[%112, %c0_i32_50] : memref<512x128xf32, #tpu.memory_space<any>> -> memref<1x128xf32, #tpu.memory_space<any>>
      %c9_i32_51 = arith.constant 9 : i32
      %c0_i32_52 = arith.constant 0 : i32
      %114 = tpu.memref_slice %arg6[%34, %c9_i32_51, %c0_i32_52] : memref<2x40x128xf32, #tpu.memory_space<vmem>> -> memref<1x1x128xf32, #tpu.memory_space<vmem>>
      %115 = tpu.memref_squeeze %114 : memref<1x1x128xf32, #tpu.memory_space<vmem>> -> memref<1x128xf32, #tpu.memory_space<vmem>>
      %116 = tpu.memref_slice %arg7[%34] : memref<2x!tpu.dma_semaphore, #tpu.memory_space<semaphore_mem>> -> memref<1x!tpu.dma_semaphore, #tpu.memory_space<semaphore_mem>>
      %117 = tpu.memref_squeeze %116 : memref<1x!tpu.dma_semaphore, #tpu.memory_space<semaphore_mem>> -> memref<!tpu.dma_semaphore, #tpu.memory_space<semaphore_mem>>
      tpu.enqueue_dma source(%113 : memref<1x128xf32, #tpu.memory_space<any>>) target(%115 : memref<1x128xf32, #tpu.memory_space<vmem>>) target_semaphore(%117 : memref<!tpu.dma_semaphore, #tpu.memory_space<semaphore_mem>>)
      %c10_i32 = arith.constant 10 : i32
      %118 = arith.addi %37, %c10_i32 : i32
      %119 = arith.index_cast %118 : i32 to index
      %120 = memref.load %arg2[%119] : memref<160xi32, #tpu.memory_space<smem>>
      %c0_i32_53 = arith.constant 0 : i32
      %121 = tpu.memref_slice %arg3[%120, %c0_i32_53] : memref<512x128xf32, #tpu.memory_space<any>> -> memref<1x128xf32, #tpu.memory_space<any>>
      %c10_i32_54 = arith.constant 10 : i32
      %c0_i32_55 = arith.constant 0 : i32
      %122 = tpu.memref_slice %arg6[%34, %c10_i32_54, %c0_i32_55] : memref<2x40x128xf32, #tpu.memory_space<vmem>> -> memref<1x1x128xf32, #tpu.memory_space<vmem>>
      %123 = tpu.memref_squeeze %122 : memref<1x1x128xf32, #tpu.memory_space<vmem>> -> memref<1x128xf32, #tpu.memory_space<vmem>>
      %124 = tpu.memref_slice %arg7[%34] : memref<2x!tpu.dma_semaphore, #tpu.memory_space<semaphore_mem>> -> memref<1x!tpu.dma_semaphore, #tpu.memory_space<semaphore_mem>>
      %125 = tpu.memref_squeeze %124 : memref<1x!tpu.dma_semaphore, #tpu.memory_space<semaphore_mem>> -> memref<!tpu.dma_semaphore, #tpu.memory_space<semaphore_mem>>
      tpu.enqueue_dma source(%121 : memref<1x128xf32, #tpu.memory_space<any>>) target(%123 : memref<1x128xf32, #tpu.memory_space<vmem>>) target_semaphore(%125 : memref<!tpu.dma_semaphore, #tpu.memory_space<semaphore_mem>>)
      %c11_i32 = arith.constant 11 : i32
      %126 = arith.addi %37, %c11_i32 : i32
      %127 = arith.index_cast %126 : i32 to index
      %128 = memref.load %arg2[%127] : memref<160xi32, #tpu.memory_space<smem>>
      %c0_i32_56 = arith.constant 0 : i32
      %129 = tpu.memref_slice %arg3[%128, %c0_i32_56] : memref<512x128xf32, #tpu.memory_space<any>> -> memref<1x128xf32, #tpu.memory_space<any>>
      %c11_i32_57 = arith.constant 11 : i32
      %c0_i32_58 = arith.constant 0 : i32
      %130 = tpu.memref_slice %arg6[%34, %c11_i32_57, %c0_i32_58] : memref<2x40x128xf32, #tpu.memory_space<vmem>> -> memref<1x1x128xf32, #tpu.memory_space<vmem>>
      %131 = tpu.memref_squeeze %130 : memref<1x1x128xf32, #tpu.memory_space<vmem>> -> memref<1x128xf32, #tpu.memory_space<vmem>>
      %132 = tpu.memref_slice %arg7[%34] : memref<2x!tpu.dma_semaphore, #tpu.memory_space<semaphore_mem>> -> memref<1x!tpu.dma_semaphore, #tpu.memory_space<semaphore_mem>>
      %133 = tpu.memref_squeeze %132 : memref<1x!tpu.dma_semaphore, #tpu.memory_space<semaphore_mem>> -> memref<!tpu.dma_semaphore, #tpu.memory_space<semaphore_mem>>
      tpu.enqueue_dma source(%129 : memref<1x128xf32, #tpu.memory_space<any>>) target(%131 : memref<1x128xf32, #tpu.memory_space<vmem>>) target_semaphore(%133 : memref<!tpu.dma_semaphore, #tpu.memory_space<semaphore_mem>>)
      %c12_i32 = arith.constant 12 : i32
      %134 = arith.addi %37, %c12_i32 : i32
      %135 = arith.index_cast %134 : i32 to index
      %136 = memref.load %arg2[%135] : memref<160xi32, #tpu.memory_space<smem>>
      %c0_i32_59 = arith.constant 0 : i32
      %137 = tpu.memref_slice %arg3[%136, %c0_i32_59] : memref<512x128xf32, #tpu.memory_space<any>> -> memref<1x128xf32, #tpu.memory_space<any>>
      %c12_i32_60 = arith.constant 12 : i32
      %c0_i32_61 = arith.constant 0 : i32
      %138 = tpu.memref_slice %arg6[%34, %c12_i32_60, %c0_i32_61] : memref<2x40x128xf32, #tpu.memory_space<vmem>> -> memref<1x1x128xf32, #tpu.memory_space<vmem>>
      %139 = tpu.memref_squeeze %138 : memref<1x1x128xf32, #tpu.memory_space<vmem>> -> memref<1x128xf32, #tpu.memory_space<vmem>>
      %140 = tpu.memref_slice %arg7[%34] : memref<2x!tpu.dma_semaphore, #tpu.memory_space<semaphore_mem>> -> memref<1x!tpu.dma_semaphore, #tpu.memory_space<semaphore_mem>>
      %141 = tpu.memref_squeeze %140 : memref<1x!tpu.dma_semaphore, #tpu.memory_space<semaphore_mem>> -> memref<!tpu.dma_semaphore, #tpu.memory_space<semaphore_mem>>
      tpu.enqueue_dma source(%137 : memref<1x128xf32, #tpu.memory_space<any>>) target(%139 : memref<1x128xf32, #tpu.memory_space<vmem>>) target_semaphore(%141 : memref<!tpu.dma_semaphore, #tpu.memory_space<semaphore_mem>>)
      %c13_i32 = arith.constant 13 : i32
      %142 = arith.addi %37, %c13_i32 : i32
      %143 = arith.index_cast %142 : i32 to index
      %144 = memref.load %arg2[%143] : memref<160xi32, #tpu.memory_space<smem>>
      %c0_i32_62 = arith.constant 0 : i32
      %145 = tpu.memref_slice %arg3[%144, %c0_i32_62] : memref<512x128xf32, #tpu.memory_space<any>> -> memref<1x128xf32, #tpu.memory_space<any>>
      %c13_i32_63 = arith.constant 13 : i32
      %c0_i32_64 = arith.constant 0 : i32
      %146 = tpu.memref_slice %arg6[%34, %c13_i32_63, %c0_i32_64] : memref<2x40x128xf32, #tpu.memory_space<vmem>> -> memref<1x1x128xf32, #tpu.memory_space<vmem>>
      %147 = tpu.memref_squeeze %146 : memref<1x1x128xf32, #tpu.memory_space<vmem>> -> memref<1x128xf32, #tpu.memory_space<vmem>>
      %148 = tpu.memref_slice %arg7[%34] : memref<2x!tpu.dma_semaphore, #tpu.memory_space<semaphore_mem>> -> memref<1x!tpu.dma_semaphore, #tpu.memory_space<semaphore_mem>>
      %149 = tpu.memref_squeeze %148 : memref<1x!tpu.dma_semaphore, #tpu.memory_space<semaphore_mem>> -> memref<!tpu.dma_semaphore, #tpu.memory_space<semaphore_mem>>
      tpu.enqueue_dma source(%145 : memref<1x128xf32, #tpu.memory_space<any>>) target(%147 : memref<1x128xf32, #tpu.memory_space<vmem>>) target_semaphore(%149 : memref<!tpu.dma_semaphore, #tpu.memory_space<semaphore_mem>>)
      %c14_i32 = arith.constant 14 : i32
      %150 = arith.addi %37, %c14_i32 : i32
      %151 = arith.index_cast %150 : i32 to index
      %152 = memref.load %arg2[%151] : memref<160xi32, #tpu.memory_space<smem>>
      %c0_i32_65 = arith.constant 0 : i32
      %153 = tpu.memref_slice %arg3[%152, %c0_i32_65] : memref<512x128xf32, #tpu.memory_space<any>> -> memref<1x128xf32, #tpu.memory_space<any>>
      %c14_i32_66 = arith.constant 14 : i32
      %c0_i32_67 = arith.constant 0 : i32
      %154 = tpu.memref_slice %arg6[%34, %c14_i32_66, %c0_i32_67] : memref<2x40x128xf32, #tpu.memory_space<vmem>> -> memref<1x1x128xf32, #tpu.memory_space<vmem>>
      %155 = tpu.memref_squeeze %154 : memref<1x1x128xf32, #tpu.memory_space<vmem>> -> memref<1x128xf32, #tpu.memory_space<vmem>>
      %156 = tpu.memref_slice %arg7[%34] : memref<2x!tpu.dma_semaphore, #tpu.memory_space<semaphore_mem>> -> memref<1x!tpu.dma_semaphore, #tpu.memory_space<semaphore_mem>>
      %157 = tpu.memref_squeeze %156 : memref<1x!tpu.dma_semaphore, #tpu.memory_space<semaphore_mem>> -> memref<!tpu.dma_semaphore, #tpu.memory_space<semaphore_mem>>
      tpu.enqueue_dma source(%153 : memref<1x128xf32, #tpu.memory_space<any>>) target(%155 : memref<1x128xf32, #tpu.memory_space<vmem>>) target_semaphore(%157 : memref<!tpu.dma_semaphore, #tpu.memory_space<semaphore_mem>>)
      %c15_i32 = arith.constant 15 : i32
      %158 = arith.addi %37, %c15_i32 : i32
      %159 = arith.index_cast %158 : i32 to index
      %160 = memref.load %arg2[%159] : memref<160xi32, #tpu.memory_space<smem>>
      %c0_i32_68 = arith.constant 0 : i32
      %161 = tpu.memref_slice %arg3[%160, %c0_i32_68] : memref<512x128xf32, #tpu.memory_space<any>> -> memref<1x128xf32, #tpu.memory_space<any>>
      %c15_i32_69 = arith.constant 15 : i32
      %c0_i32_70 = arith.constant 0 : i32
      %162 = tpu.memref_slice %arg6[%34, %c15_i32_69, %c0_i32_70] : memref<2x40x128xf32, #tpu.memory_space<vmem>> -> memref<1x1x128xf32, #tpu.memory_space<vmem>>
      %163 = tpu.memref_squeeze %162 : memref<1x1x128xf32, #tpu.memory_space<vmem>> -> memref<1x128xf32, #tpu.memory_space<vmem>>
      %164 = tpu.memref_slice %arg7[%34] : memref<2x!tpu.dma_semaphore, #tpu.memory_space<semaphore_mem>> -> memref<1x!tpu.dma_semaphore, #tpu.memory_space<semaphore_mem>>
      %165 = tpu.memref_squeeze %164 : memref<1x!tpu.dma_semaphore, #tpu.memory_space<semaphore_mem>> -> memref<!tpu.dma_semaphore, #tpu.memory_space<semaphore_mem>>
      tpu.enqueue_dma source(%161 : memref<1x128xf32, #tpu.memory_space<any>>) target(%163 : memref<1x128xf32, #tpu.memory_space<vmem>>) target_semaphore(%165 : memref<!tpu.dma_semaphore, #tpu.memory_space<semaphore_mem>>)
      %c16_i32 = arith.constant 16 : i32
      %166 = arith.addi %37, %c16_i32 : i32
      %167 = arith.index_cast %166 : i32 to index
      %168 = memref.load %arg2[%167] : memref<160xi32, #tpu.memory_space<smem>>
      %c0_i32_71 = arith.constant 0 : i32
      %169 = tpu.memref_slice %arg3[%168, %c0_i32_71] : memref<512x128xf32, #tpu.memory_space<any>> -> memref<1x128xf32, #tpu.memory_space<any>>
      %c16_i32_72 = arith.constant 16 : i32
      %c0_i32_73 = arith.constant 0 : i32
      %170 = tpu.memref_slice %arg6[%34, %c16_i32_72, %c0_i32_73] : memref<2x40x128xf32, #tpu.memory_space<vmem>> -> memref<1x1x128xf32, #tpu.memory_space<vmem>>
      %171 = tpu.memref_squeeze %170 : memref<1x1x128xf32, #tpu.memory_space<vmem>> -> memref<1x128xf32, #tpu.memory_space<vmem>>
      %172 = tpu.memref_slice %arg7[%34] : memref<2x!tpu.dma_semaphore, #tpu.memory_space<semaphore_mem>> -> memref<1x!tpu.dma_semaphore, #tpu.memory_space<semaphore_mem>>
      %173 = tpu.memref_squeeze %172 : memref<1x!tpu.dma_semaphore, #tpu.memory_space<semaphore_mem>> -> memref<!tpu.dma_semaphore, #tpu.memory_space<semaphore_mem>>
      tpu.enqueue_dma source(%169 : memref<1x128xf32, #tpu.memory_space<any>>) target(%171 : memref<1x128xf32, #tpu.memory_space<vmem>>) target_semaphore(%173 : memref<!tpu.dma_semaphore, #tpu.memory_space<semaphore_mem>>)
      %c17_i32 = arith.constant 17 : i32
      %174 = arith.addi %37, %c17_i32 : i32
      %175 = arith.index_cast %174 : i32 to index
      %176 = memref.load %arg2[%175] : memref<160xi32, #tpu.memory_space<smem>>
      %c0_i32_74 = arith.constant 0 : i32
      %177 = tpu.memref_slice %arg3[%176, %c0_i32_74] : memref<512x128xf32, #tpu.memory_space<any>> -> memref<1x128xf32, #tpu.memory_space<any>>
      %c17_i32_75 = arith.constant 17 : i32
      %c0_i32_76 = arith.constant 0 : i32
      %178 = tpu.memref_slice %arg6[%34, %c17_i32_75, %c0_i32_76] : memref<2x40x128xf32, #tpu.memory_space<vmem>> -> memref<1x1x128xf32, #tpu.memory_space<vmem>>
      %179 = tpu.memref_squeeze %178 : memref<1x1x128xf32, #tpu.memory_space<vmem>> -> memref<1x128xf32, #tpu.memory_space<vmem>>
      %180 = tpu.memref_slice %arg7[%34] : memref<2x!tpu.dma_semaphore, #tpu.memory_space<semaphore_mem>> -> memref<1x!tpu.dma_semaphore, #tpu.memory_space<semaphore_mem>>
      %181 = tpu.memref_squeeze %180 : memref<1x!tpu.dma_semaphore, #tpu.memory_space<semaphore_mem>> -> memref<!tpu.dma_semaphore, #tpu.memory_space<semaphore_mem>>
      tpu.enqueue_dma source(%177 : memref<1x128xf32, #tpu.memory_space<any>>) target(%179 : memref<1x128xf32, #tpu.memory_space<vmem>>) target_semaphore(%181 : memref<!tpu.dma_semaphore, #tpu.memory_space<semaphore_mem>>)
      %c18_i32 = arith.constant 18 : i32
      %182 = arith.addi %37, %c18_i32 : i32
      %183 = arith.index_cast %182 : i32 to index
      %184 = memref.load %arg2[%183] : memref<160xi32, #tpu.memory_space<smem>>
      %c0_i32_77 = arith.constant 0 : i32
      %185 = tpu.memref_slice %arg3[%184, %c0_i32_77] : memref<512x128xf32, #tpu.memory_space<any>> -> memref<1x128xf32, #tpu.memory_space<any>>
      %c18_i32_78 = arith.constant 18 : i32
      %c0_i32_79 = arith.constant 0 : i32
      %186 = tpu.memref_slice %arg6[%34, %c18_i32_78, %c0_i32_79] : memref<2x40x128xf32, #tpu.memory_space<vmem>> -> memref<1x1x128xf32, #tpu.memory_space<vmem>>
      %187 = tpu.memref_squeeze %186 : memref<1x1x128xf32, #tpu.memory_space<vmem>> -> memref<1x128xf32, #tpu.memory_space<vmem>>
      %188 = tpu.memref_slice %arg7[%34] : memref<2x!tpu.dma_semaphore, #tpu.memory_space<semaphore_mem>> -> memref<1x!tpu.dma_semaphore, #tpu.memory_space<semaphore_mem>>
      %189 = tpu.memref_squeeze %188 : memref<1x!tpu.dma_semaphore, #tpu.memory_space<semaphore_mem>> -> memref<!tpu.dma_semaphore, #tpu.memory_space<semaphore_mem>>
      tpu.enqueue_dma source(%185 : memref<1x128xf32, #tpu.memory_space<any>>) target(%187 : memref<1x128xf32, #tpu.memory_space<vmem>>) target_semaphore(%189 : memref<!tpu.dma_semaphore, #tpu.memory_space<semaphore_mem>>)
      %c19_i32 = arith.constant 19 : i32
      %190 = arith.addi %37, %c19_i32 : i32
      %191 = arith.index_cast %190 : i32 to index
      %192 = memref.load %arg2[%191] : memref<160xi32, #tpu.memory_space<smem>>
      %c0_i32_80 = arith.constant 0 : i32
      %193 = tpu.memref_slice %arg3[%192, %c0_i32_80] : memref<512x128xf32, #tpu.memory_space<any>> -> memref<1x128xf32, #tpu.memory_space<any>>
      %c19_i32_81 = arith.constant 19 : i32
      %c0_i32_82 = arith.constant 0 : i32
      %194 = tpu.memref_slice %arg6[%34, %c19_i32_81, %c0_i32_82] : memref<2x40x128xf32, #tpu.memory_space<vmem>> -> memref<1x1x128xf32, #tpu.memory_space<vmem>>
      %195 = tpu.memref_squeeze %194 : memref<1x1x128xf32, #tpu.memory_space<vmem>> -> memref<1x128xf32, #tpu.memory_space<vmem>>
      %196 = tpu.memref_slice %arg7[%34] : memref<2x!tpu.dma_semaphore, #tpu.memory_space<semaphore_mem>> -> memref<1x!tpu.dma_semaphore, #tpu.memory_space<semaphore_mem>>
      %197 = tpu.memref_squeeze %196 : memref<1x!tpu.dma_semaphore, #tpu.memory_space<semaphore_mem>> -> memref<!tpu.dma_semaphore, #tpu.memory_space<semaphore_mem>>
      tpu.enqueue_dma source(%193 : memref<1x128xf32, #tpu.memory_space<any>>) target(%195 : memref<1x128xf32, #tpu.memory_space<vmem>>) target_semaphore(%197 : memref<!tpu.dma_semaphore, #tpu.memory_space<semaphore_mem>>)
      %c20_i32 = arith.constant 20 : i32
      %198 = arith.addi %37, %c20_i32 : i32
      %199 = arith.index_cast %198 : i32 to index
      %200 = memref.load %arg2[%199] : memref<160xi32, #tpu.memory_space<smem>>
      %c0_i32_83 = arith.constant 0 : i32
      %201 = tpu.memref_slice %arg3[%200, %c0_i32_83] : memref<512x128xf32, #tpu.memory_space<any>> -> memref<1x128xf32, #tpu.memory_space<any>>
      %c20_i32_84 = arith.constant 20 : i32
      %c0_i32_85 = arith.constant 0 : i32
      %202 = tpu.memref_slice %arg6[%34, %c20_i32_84, %c0_i32_85] : memref<2x40x128xf32, #tpu.memory_space<vmem>> -> memref<1x1x128xf32, #tpu.memory_space<vmem>>
      %203 = tpu.memref_squeeze %202 : memref<1x1x128xf32, #tpu.memory_space<vmem>> -> memref<1x128xf32, #tpu.memory_space<vmem>>
      %204 = tpu.memref_slice %arg7[%34] : memref<2x!tpu.dma_semaphore, #tpu.memory_space<semaphore_mem>> -> memref<1x!tpu.dma_semaphore, #tpu.memory_space<semaphore_mem>>
      %205 = tpu.memref_squeeze %204 : memref<1x!tpu.dma_semaphore, #tpu.memory_space<semaphore_mem>> -> memref<!tpu.dma_semaphore, #tpu.memory_space<semaphore_mem>>
      tpu.enqueue_dma source(%201 : memref<1x128xf32, #tpu.memory_space<any>>) target(%203 : memref<1x128xf32, #tpu.memory_space<vmem>>) target_semaphore(%205 : memref<!tpu.dma_semaphore, #tpu.memory_space<semaphore_mem>>)
      %c21_i32 = arith.constant 21 : i32
      %206 = arith.addi %37, %c21_i32 : i32
      %207 = arith.index_cast %206 : i32 to index
      %208 = memref.load %arg2[%207] : memref<160xi32, #tpu.memory_space<smem>>
      %c0_i32_86 = arith.constant 0 : i32
      %209 = tpu.memref_slice %arg3[%208, %c0_i32_86] : memref<512x128xf32, #tpu.memory_space<any>> -> memref<1x128xf32, #tpu.memory_space<any>>
      %c21_i32_87 = arith.constant 21 : i32
      %c0_i32_88 = arith.constant 0 : i32
      %210 = tpu.memref_slice %arg6[%34, %c21_i32_87, %c0_i32_88] : memref<2x40x128xf32, #tpu.memory_space<vmem>> -> memref<1x1x128xf32, #tpu.memory_space<vmem>>
      %211 = tpu.memref_squeeze %210 : memref<1x1x128xf32, #tpu.memory_space<vmem>> -> memref<1x128xf32, #tpu.memory_space<vmem>>
      %212 = tpu.memref_slice %arg7[%34] : memref<2x!tpu.dma_semaphore, #tpu.memory_space<semaphore_mem>> -> memref<1x!tpu.dma_semaphore, #tpu.memory_space<semaphore_mem>>
      %213 = tpu.memref_squeeze %212 : memref<1x!tpu.dma_semaphore, #tpu.memory_space<semaphore_mem>> -> memref<!tpu.dma_semaphore, #tpu.memory_space<semaphore_mem>>
      tpu.enqueue_dma source(%209 : memref<1x128xf32, #tpu.memory_space<any>>) target(%211 : memref<1x128xf32, #tpu.memory_space<vmem>>) target_semaphore(%213 : memref<!tpu.dma_semaphore, #tpu.memory_space<semaphore_mem>>)
      %c22_i32 = arith.constant 22 : i32
      %214 = arith.addi %37, %c22_i32 : i32
      %215 = arith.index_cast %214 : i32 to index
      %216 = memref.load %arg2[%215] : memref<160xi32, #tpu.memory_space<smem>>
      %c0_i32_89 = arith.constant 0 : i32
      %217 = tpu.memref_slice %arg3[%216, %c0_i32_89] : memref<512x128xf32, #tpu.memory_space<any>> -> memref<1x128xf32, #tpu.memory_space<any>>
      %c22_i32_90 = arith.constant 22 : i32
      %c0_i32_91 = arith.constant 0 : i32
      %218 = tpu.memref_slice %arg6[%34, %c22_i32_90, %c0_i32_91] : memref<2x40x128xf32, #tpu.memory_space<vmem>> -> memref<1x1x128xf32, #tpu.memory_space<vmem>>
      %219 = tpu.memref_squeeze %218 : memref<1x1x128xf32, #tpu.memory_space<vmem>> -> memref<1x128xf32, #tpu.memory_space<vmem>>
      %220 = tpu.memref_slice %arg7[%34] : memref<2x!tpu.dma_semaphore, #tpu.memory_space<semaphore_mem>> -> memref<1x!tpu.dma_semaphore, #tpu.memory_space<semaphore_mem>>
      %221 = tpu.memref_squeeze %220 : memref<1x!tpu.dma_semaphore, #tpu.memory_space<semaphore_mem>> -> memref<!tpu.dma_semaphore, #tpu.memory_space<semaphore_mem>>
      tpu.enqueue_dma source(%217 : memref<1x128xf32, #tpu.memory_space<any>>) target(%219 : memref<1x128xf32, #tpu.memory_space<vmem>>) target_semaphore(%221 : memref<!tpu.dma_semaphore, #tpu.memory_space<semaphore_mem>>)
      %c23_i32 = arith.constant 23 : i32
      %222 = arith.addi %37, %c23_i32 : i32
      %223 = arith.index_cast %222 : i32 to index
      %224 = memref.load %arg2[%223] : memref<160xi32, #tpu.memory_space<smem>>
      %c0_i32_92 = arith.constant 0 : i32
      %225 = tpu.memref_slice %arg3[%224, %c0_i32_92] : memref<512x128xf32, #tpu.memory_space<any>> -> memref<1x128xf32, #tpu.memory_space<any>>
      %c23_i32_93 = arith.constant 23 : i32
      %c0_i32_94 = arith.constant 0 : i32
      %226 = tpu.memref_slice %arg6[%34, %c23_i32_93, %c0_i32_94] : memref<2x40x128xf32, #tpu.memory_space<vmem>> -> memref<1x1x128xf32, #tpu.memory_space<vmem>>
      %227 = tpu.memref_squeeze %226 : memref<1x1x128xf32, #tpu.memory_space<vmem>> -> memref<1x128xf32, #tpu.memory_space<vmem>>
      %228 = tpu.memref_slice %arg7[%34] : memref<2x!tpu.dma_semaphore, #tpu.memory_space<semaphore_mem>> -> memref<1x!tpu.dma_semaphore, #tpu.memory_space<semaphore_mem>>
      %229 = tpu.memref_squeeze %228 : memref<1x!tpu.dma_semaphore, #tpu.memory_space<semaphore_mem>> -> memref<!tpu.dma_semaphore, #tpu.memory_space<semaphore_mem>>
      tpu.enqueue_dma source(%225 : memref<1x128xf32, #tpu.memory_space<any>>) target(%227 : memref<1x128xf32, #tpu.memory_space<vmem>>) target_semaphore(%229 : memref<!tpu.dma_semaphore, #tpu.memory_space<semaphore_mem>>)
      %c24_i32 = arith.constant 24 : i32
      %230 = arith.addi %37, %c24_i32 : i32
      %231 = arith.index_cast %230 : i32 to index
      %232 = memref.load %arg2[%231] : memref<160xi32, #tpu.memory_space<smem>>
      %c0_i32_95 = arith.constant 0 : i32
      %233 = tpu.memref_slice %arg3[%232, %c0_i32_95] : memref<512x128xf32, #tpu.memory_space<any>> -> memref<1x128xf32, #tpu.memory_space<any>>
      %c24_i32_96 = arith.constant 24 : i32
      %c0_i32_97 = arith.constant 0 : i32
      %234 = tpu.memref_slice %arg6[%34, %c24_i32_96, %c0_i32_97] : memref<2x40x128xf32, #tpu.memory_space<vmem>> -> memref<1x1x128xf32, #tpu.memory_space<vmem>>
      %235 = tpu.memref_squeeze %234 : memref<1x1x128xf32, #tpu.memory_space<vmem>> -> memref<1x128xf32, #tpu.memory_space<vmem>>
      %236 = tpu.memref_slice %arg7[%34] : memref<2x!tpu.dma_semaphore, #tpu.memory_space<semaphore_mem>> -> memref<1x!tpu.dma_semaphore, #tpu.memory_space<semaphore_mem>>
      %237 = tpu.memref_squeeze %236 : memref<1x!tpu.dma_semaphore, #tpu.memory_space<semaphore_mem>> -> memref<!tpu.dma_semaphore, #tpu.memory_space<semaphore_mem>>
      tpu.enqueue_dma source(%233 : memref<1x128xf32, #tpu.memory_space<any>>) target(%235 : memref<1x128xf32, #tpu.memory_space<vmem>>) target_semaphore(%237 : memref<!tpu.dma_semaphore, #tpu.memory_space<semaphore_mem>>)
      %c25_i32 = arith.constant 25 : i32
      %238 = arith.addi %37, %c25_i32 : i32
      %239 = arith.index_cast %238 : i32 to index
      %240 = memref.load %arg2[%239] : memref<160xi32, #tpu.memory_space<smem>>
      %c0_i32_98 = arith.constant 0 : i32
      %241 = tpu.memref_slice %arg3[%240, %c0_i32_98] : memref<512x128xf32, #tpu.memory_space<any>> -> memref<1x128xf32, #tpu.memory_space<any>>
      %c25_i32_99 = arith.constant 25 : i32
      %c0_i32_100 = arith.constant 0 : i32
      %242 = tpu.memref_slice %arg6[%34, %c25_i32_99, %c0_i32_100] : memref<2x40x128xf32, #tpu.memory_space<vmem>> -> memref<1x1x128xf32, #tpu.memory_space<vmem>>
      %243 = tpu.memref_squeeze %242 : memref<1x1x128xf32, #tpu.memory_space<vmem>> -> memref<1x128xf32, #tpu.memory_space<vmem>>
      %244 = tpu.memref_slice %arg7[%34] : memref<2x!tpu.dma_semaphore, #tpu.memory_space<semaphore_mem>> -> memref<1x!tpu.dma_semaphore, #tpu.memory_space<semaphore_mem>>
      %245 = tpu.memref_squeeze %244 : memref<1x!tpu.dma_semaphore, #tpu.memory_space<semaphore_mem>> -> memref<!tpu.dma_semaphore, #tpu.memory_space<semaphore_mem>>
      tpu.enqueue_dma source(%241 : memref<1x128xf32, #tpu.memory_space<any>>) target(%243 : memref<1x128xf32, #tpu.memory_space<vmem>>) target_semaphore(%245 : memref<!tpu.dma_semaphore, #tpu.memory_space<semaphore_mem>>)
      %c26_i32 = arith.constant 26 : i32
      %246 = arith.addi %37, %c26_i32 : i32
      %247 = arith.index_cast %246 : i32 to index
      %248 = memref.load %arg2[%247] : memref<160xi32, #tpu.memory_space<smem>>
      %c0_i32_101 = arith.constant 0 : i32
      %249 = tpu.memref_slice %arg3[%248, %c0_i32_101] : memref<512x128xf32, #tpu.memory_space<any>> -> memref<1x128xf32, #tpu.memory_space<any>>
      %c26_i32_102 = arith.constant 26 : i32
      %c0_i32_103 = arith.constant 0 : i32
      %250 = tpu.memref_slice %arg6[%34, %c26_i32_102, %c0_i32_103] : memref<2x40x128xf32, #tpu.memory_space<vmem>> -> memref<1x1x128xf32, #tpu.memory_space<vmem>>
      %251 = tpu.memref_squeeze %250 : memref<1x1x128xf32, #tpu.memory_space<vmem>> -> memref<1x128xf32, #tpu.memory_space<vmem>>
      %252 = tpu.memref_slice %arg7[%34] : memref<2x!tpu.dma_semaphore, #tpu.memory_space<semaphore_mem>> -> memref<1x!tpu.dma_semaphore, #tpu.memory_space<semaphore_mem>>
      %253 = tpu.memref_squeeze %252 : memref<1x!tpu.dma_semaphore, #tpu.memory_space<semaphore_mem>> -> memref<!tpu.dma_semaphore, #tpu.memory_space<semaphore_mem>>
      tpu.enqueue_dma source(%249 : memref<1x128xf32, #tpu.memory_space<any>>) target(%251 : memref<1x128xf32, #tpu.memory_space<vmem>>) target_semaphore(%253 : memref<!tpu.dma_semaphore, #tpu.memory_space<semaphore_mem>>)
      %c27_i32 = arith.constant 27 : i32
      %254 = arith.addi %37, %c27_i32 : i32
      %255 = arith.index_cast %254 : i32 to index
      %256 = memref.load %arg2[%255] : memref<160xi32, #tpu.memory_space<smem>>
      %c0_i32_104 = arith.constant 0 : i32
      %257 = tpu.memref_slice %arg3[%256, %c0_i32_104] : memref<512x128xf32, #tpu.memory_space<any>> -> memref<1x128xf32, #tpu.memory_space<any>>
      %c27_i32_105 = arith.constant 27 : i32
      %c0_i32_106 = arith.constant 0 : i32
      %258 = tpu.memref_slice %arg6[%34, %c27_i32_105, %c0_i32_106] : memref<2x40x128xf32, #tpu.memory_space<vmem>> -> memref<1x1x128xf32, #tpu.memory_space<vmem>>
      %259 = tpu.memref_squeeze %258 : memref<1x1x128xf32, #tpu.memory_space<vmem>> -> memref<1x128xf32, #tpu.memory_space<vmem>>
      %260 = tpu.memref_slice %arg7[%34] : memref<2x!tpu.dma_semaphore, #tpu.memory_space<semaphore_mem>> -> memref<1x!tpu.dma_semaphore, #tpu.memory_space<semaphore_mem>>
      %261 = tpu.memref_squeeze %260 : memref<1x!tpu.dma_semaphore, #tpu.memory_space<semaphore_mem>> -> memref<!tpu.dma_semaphore, #tpu.memory_space<semaphore_mem>>
      tpu.enqueue_dma source(%257 : memref<1x128xf32, #tpu.memory_space<any>>) target(%259 : memref<1x128xf32, #tpu.memory_space<vmem>>) target_semaphore(%261 : memref<!tpu.dma_semaphore, #tpu.memory_space<semaphore_mem>>)
      %c28_i32 = arith.constant 28 : i32
      %262 = arith.addi %37, %c28_i32 : i32
      %263 = arith.index_cast %262 : i32 to index
      %264 = memref.load %arg2[%263] : memref<160xi32, #tpu.memory_space<smem>>
      %c0_i32_107 = arith.constant 0 : i32
      %265 = tpu.memref_slice %arg3[%264, %c0_i32_107] : memref<512x128xf32, #tpu.memory_space<any>> -> memref<1x128xf32, #tpu.memory_space<any>>
      %c28_i32_108 = arith.constant 28 : i32
      %c0_i32_109 = arith.constant 0 : i32
      %266 = tpu.memref_slice %arg6[%34, %c28_i32_108, %c0_i32_109] : memref<2x40x128xf32, #tpu.memory_space<vmem>> -> memref<1x1x128xf32, #tpu.memory_space<vmem>>
      %267 = tpu.memref_squeeze %266 : memref<1x1x128xf32, #tpu.memory_space<vmem>> -> memref<1x128xf32, #tpu.memory_space<vmem>>
      %268 = tpu.memref_slice %arg7[%34] : memref<2x!tpu.dma_semaphore, #tpu.memory_space<semaphore_mem>> -> memref<1x!tpu.dma_semaphore, #tpu.memory_space<semaphore_mem>>
      %269 = tpu.memref_squeeze %268 : memref<1x!tpu.dma_semaphore, #tpu.memory_space<semaphore_mem>> -> memref<!tpu.dma_semaphore, #tpu.memory_space<semaphore_mem>>
      tpu.enqueue_dma source(%265 : memref<1x128xf32, #tpu.memory_space<any>>) target(%267 : memref<1x128xf32, #tpu.memory_space<vmem>>) target_semaphore(%269 : memref<!tpu.dma_semaphore, #tpu.memory_space<semaphore_mem>>)
      %c29_i32 = arith.constant 29 : i32
      %270 = arith.addi %37, %c29_i32 : i32
      %271 = arith.index_cast %270 : i32 to index
      %272 = memref.load %arg2[%271] : memref<160xi32, #tpu.memory_space<smem>>
      %c0_i32_110 = arith.constant 0 : i32
      %273 = tpu.memref_slice %arg3[%272, %c0_i32_110] : memref<512x128xf32, #tpu.memory_space<any>> -> memref<1x128xf32, #tpu.memory_space<any>>
      %c29_i32_111 = arith.constant 29 : i32
      %c0_i32_112 = arith.constant 0 : i32
      %274 = tpu.memref_slice %arg6[%34, %c29_i32_111, %c0_i32_112] : memref<2x40x128xf32, #tpu.memory_space<vmem>> -> memref<1x1x128xf32, #tpu.memory_space<vmem>>
      %275 = tpu.memref_squeeze %274 : memref<1x1x128xf32, #tpu.memory_space<vmem>> -> memref<1x128xf32, #tpu.memory_space<vmem>>
      %276 = tpu.memref_slice %arg7[%34] : memref<2x!tpu.dma_semaphore, #tpu.memory_space<semaphore_mem>> -> memref<1x!tpu.dma_semaphore, #tpu.memory_space<semaphore_mem>>
      %277 = tpu.memref_squeeze %276 : memref<1x!tpu.dma_semaphore, #tpu.memory_space<semaphore_mem>> -> memref<!tpu.dma_semaphore, #tpu.memory_space<semaphore_mem>>
      tpu.enqueue_dma source(%273 : memref<1x128xf32, #tpu.memory_space<any>>) target(%275 : memref<1x128xf32, #tpu.memory_space<vmem>>) target_semaphore(%277 : memref<!tpu.dma_semaphore, #tpu.memory_space<semaphore_mem>>)
      %c30_i32 = arith.constant 30 : i32
      %278 = arith.addi %37, %c30_i32 : i32
      %279 = arith.index_cast %278 : i32 to index
      %280 = memref.load %arg2[%279] : memref<160xi32, #tpu.memory_space<smem>>
      %c0_i32_113 = arith.constant 0 : i32
      %281 = tpu.memref_slice %arg3[%280, %c0_i32_113] : memref<512x128xf32, #tpu.memory_space<any>> -> memref<1x128xf32, #tpu.memory_space<any>>
      %c30_i32_114 = arith.constant 30 : i32
      %c0_i32_115 = arith.constant 0 : i32
      %282 = tpu.memref_slice %arg6[%34, %c30_i32_114, %c0_i32_115] : memref<2x40x128xf32, #tpu.memory_space<vmem>> -> memref<1x1x128xf32, #tpu.memory_space<vmem>>
      %283 = tpu.memref_squeeze %282 : memref<1x1x128xf32, #tpu.memory_space<vmem>> -> memref<1x128xf32, #tpu.memory_space<vmem>>
      %284 = tpu.memref_slice %arg7[%34] : memref<2x!tpu.dma_semaphore, #tpu.memory_space<semaphore_mem>> -> memref<1x!tpu.dma_semaphore, #tpu.memory_space<semaphore_mem>>
      %285 = tpu.memref_squeeze %284 : memref<1x!tpu.dma_semaphore, #tpu.memory_space<semaphore_mem>> -> memref<!tpu.dma_semaphore, #tpu.memory_space<semaphore_mem>>
      tpu.enqueue_dma source(%281 : memref<1x128xf32, #tpu.memory_space<any>>) target(%283 : memref<1x128xf32, #tpu.memory_space<vmem>>) target_semaphore(%285 : memref<!tpu.dma_semaphore, #tpu.memory_space<semaphore_mem>>)
      %c31_i32 = arith.constant 31 : i32
      %286 = arith.addi %37, %c31_i32 : i32
      %287 = arith.index_cast %286 : i32 to index
      %288 = memref.load %arg2[%287] : memref<160xi32, #tpu.memory_space<smem>>
      %c0_i32_116 = arith.constant 0 : i32
      %289 = tpu.memref_slice %arg3[%288, %c0_i32_116] : memref<512x128xf32, #tpu.memory_space<any>> -> memref<1x128xf32, #tpu.memory_space<any>>
      %c31_i32_117 = arith.constant 31 : i32
      %c0_i32_118 = arith.constant 0 : i32
      %290 = tpu.memref_slice %arg6[%34, %c31_i32_117, %c0_i32_118] : memref<2x40x128xf32, #tpu.memory_space<vmem>> -> memref<1x1x128xf32, #tpu.memory_space<vmem>>
      %291 = tpu.memref_squeeze %290 : memref<1x1x128xf32, #tpu.memory_space<vmem>> -> memref<1x128xf32, #tpu.memory_space<vmem>>
      %292 = tpu.memref_slice %arg7[%34] : memref<2x!tpu.dma_semaphore, #tpu.memory_space<semaphore_mem>> -> memref<1x!tpu.dma_semaphore, #tpu.memory_space<semaphore_mem>>
      %293 = tpu.memref_squeeze %292 : memref<1x!tpu.dma_semaphore, #tpu.memory_space<semaphore_mem>> -> memref<!tpu.dma_semaphore, #tpu.memory_space<semaphore_mem>>
      tpu.enqueue_dma source(%289 : memref<1x128xf32, #tpu.memory_space<any>>) target(%291 : memref<1x128xf32, #tpu.memory_space<vmem>>) target_semaphore(%293 : memref<!tpu.dma_semaphore, #tpu.memory_space<semaphore_mem>>)
      %c32_i32 = arith.constant 32 : i32
      %294 = arith.addi %37, %c32_i32 : i32
      %295 = arith.index_cast %294 : i32 to index
      %296 = memref.load %arg2[%295] : memref<160xi32, #tpu.memory_space<smem>>
      %c0_i32_119 = arith.constant 0 : i32
      %297 = tpu.memref_slice %arg3[%296, %c0_i32_119] : memref<512x128xf32, #tpu.memory_space<any>> -> memref<1x128xf32, #tpu.memory_space<any>>
      %c32_i32_120 = arith.constant 32 : i32
      %c0_i32_121 = arith.constant 0 : i32
      %298 = tpu.memref_slice %arg6[%34, %c32_i32_120, %c0_i32_121] : memref<2x40x128xf32, #tpu.memory_space<vmem>> -> memref<1x1x128xf32, #tpu.memory_space<vmem>>
      %299 = tpu.memref_squeeze %298 : memref<1x1x128xf32, #tpu.memory_space<vmem>> -> memref<1x128xf32, #tpu.memory_space<vmem>>
      %300 = tpu.memref_slice %arg7[%34] : memref<2x!tpu.dma_semaphore, #tpu.memory_space<semaphore_mem>> -> memref<1x!tpu.dma_semaphore, #tpu.memory_space<semaphore_mem>>
      %301 = tpu.memref_squeeze %300 : memref<1x!tpu.dma_semaphore, #tpu.memory_space<semaphore_mem>> -> memref<!tpu.dma_semaphore, #tpu.memory_space<semaphore_mem>>
      tpu.enqueue_dma source(%297 : memref<1x128xf32, #tpu.memory_space<any>>) target(%299 : memref<1x128xf32, #tpu.memory_space<vmem>>) target_semaphore(%301 : memref<!tpu.dma_semaphore, #tpu.memory_space<semaphore_mem>>)
      %c33_i32 = arith.constant 33 : i32
      %302 = arith.addi %37, %c33_i32 : i32
      %303 = arith.index_cast %302 : i32 to index
      %304 = memref.load %arg2[%303] : memref<160xi32, #tpu.memory_space<smem>>
      %c0_i32_122 = arith.constant 0 : i32
      %305 = tpu.memref_slice %arg3[%304, %c0_i32_122] : memref<512x128xf32, #tpu.memory_space<any>> -> memref<1x128xf32, #tpu.memory_space<any>>
      %c33_i32_123 = arith.constant 33 : i32
      %c0_i32_124 = arith.constant 0 : i32
      %306 = tpu.memref_slice %arg6[%34, %c33_i32_123, %c0_i32_124] : memref<2x40x128xf32, #tpu.memory_space<vmem>> -> memref<1x1x128xf32, #tpu.memory_space<vmem>>
      %307 = tpu.memref_squeeze %306 : memref<1x1x128xf32, #tpu.memory_space<vmem>> -> memref<1x128xf32, #tpu.memory_space<vmem>>
      %308 = tpu.memref_slice %arg7[%34] : memref<2x!tpu.dma_semaphore, #tpu.memory_space<semaphore_mem>> -> memref<1x!tpu.dma_semaphore, #tpu.memory_space<semaphore_mem>>
      %309 = tpu.memref_squeeze %308 : memref<1x!tpu.dma_semaphore, #tpu.memory_space<semaphore_mem>> -> memref<!tpu.dma_semaphore, #tpu.memory_space<semaphore_mem>>
      tpu.enqueue_dma source(%305 : memref<1x128xf32, #tpu.memory_space<any>>) target(%307 : memref<1x128xf32, #tpu.memory_space<vmem>>) target_semaphore(%309 : memref<!tpu.dma_semaphore, #tpu.memory_space<semaphore_mem>>)
      %c34_i32 = arith.constant 34 : i32
      %310 = arith.addi %37, %c34_i32 : i32
      %311 = arith.index_cast %310 : i32 to index
      %312 = memref.load %arg2[%311] : memref<160xi32, #tpu.memory_space<smem>>
      %c0_i32_125 = arith.constant 0 : i32
      %313 = tpu.memref_slice %arg3[%312, %c0_i32_125] : memref<512x128xf32, #tpu.memory_space<any>> -> memref<1x128xf32, #tpu.memory_space<any>>
      %c34_i32_126 = arith.constant 34 : i32
      %c0_i32_127 = arith.constant 0 : i32
      %314 = tpu.memref_slice %arg6[%34, %c34_i32_126, %c0_i32_127] : memref<2x40x128xf32, #tpu.memory_space<vmem>> -> memref<1x1x128xf32, #tpu.memory_space<vmem>>
      %315 = tpu.memref_squeeze %314 : memref<1x1x128xf32, #tpu.memory_space<vmem>> -> memref<1x128xf32, #tpu.memory_space<vmem>>
      %316 = tpu.memref_slice %arg7[%34] : memref<2x!tpu.dma_semaphore, #tpu.memory_space<semaphore_mem>> -> memref<1x!tpu.dma_semaphore, #tpu.memory_space<semaphore_mem>>
      %317 = tpu.memref_squeeze %316 : memref<1x!tpu.dma_semaphore, #tpu.memory_space<semaphore_mem>> -> memref<!tpu.dma_semaphore, #tpu.memory_space<semaphore_mem>>
      tpu.enqueue_dma source(%313 : memref<1x128xf32, #tpu.memory_space<any>>) target(%315 : memref<1x128xf32, #tpu.memory_space<vmem>>) target_semaphore(%317 : memref<!tpu.dma_semaphore, #tpu.memory_space<semaphore_mem>>)
      %c35_i32 = arith.constant 35 : i32
      %318 = arith.addi %37, %c35_i32 : i32
      %319 = arith.index_cast %318 : i32 to index
      %320 = memref.load %arg2[%319] : memref<160xi32, #tpu.memory_space<smem>>
      %c0_i32_128 = arith.constant 0 : i32
      %321 = tpu.memref_slice %arg3[%320, %c0_i32_128] : memref<512x128xf32, #tpu.memory_space<any>> -> memref<1x128xf32, #tpu.memory_space<any>>
      %c35_i32_129 = arith.constant 35 : i32
      %c0_i32_130 = arith.constant 0 : i32
      %322 = tpu.memref_slice %arg6[%34, %c35_i32_129, %c0_i32_130] : memref<2x40x128xf32, #tpu.memory_space<vmem>> -> memref<1x1x128xf32, #tpu.memory_space<vmem>>
      %323 = tpu.memref_squeeze %322 : memref<1x1x128xf32, #tpu.memory_space<vmem>> -> memref<1x128xf32, #tpu.memory_space<vmem>>
      %324 = tpu.memref_slice %arg7[%34] : memref<2x!tpu.dma_semaphore, #tpu.memory_space<semaphore_mem>> -> memref<1x!tpu.dma_semaphore, #tpu.memory_space<semaphore_mem>>
      %325 = tpu.memref_squeeze %324 : memref<1x!tpu.dma_semaphore, #tpu.memory_space<semaphore_mem>> -> memref<!tpu.dma_semaphore, #tpu.memory_space<semaphore_mem>>
      tpu.enqueue_dma source(%321 : memref<1x128xf32, #tpu.memory_space<any>>) target(%323 : memref<1x128xf32, #tpu.memory_space<vmem>>) target_semaphore(%325 : memref<!tpu.dma_semaphore, #tpu.memory_space<semaphore_mem>>)
      %c36_i32 = arith.constant 36 : i32
      %326 = arith.addi %37, %c36_i32 : i32
      %327 = arith.index_cast %326 : i32 to index
      %328 = memref.load %arg2[%327] : memref<160xi32, #tpu.memory_space<smem>>
      %c0_i32_131 = arith.constant 0 : i32
      %329 = tpu.memref_slice %arg3[%328, %c0_i32_131] : memref<512x128xf32, #tpu.memory_space<any>> -> memref<1x128xf32, #tpu.memory_space<any>>
      %c36_i32_132 = arith.constant 36 : i32
      %c0_i32_133 = arith.constant 0 : i32
      %330 = tpu.memref_slice %arg6[%34, %c36_i32_132, %c0_i32_133] : memref<2x40x128xf32, #tpu.memory_space<vmem>> -> memref<1x1x128xf32, #tpu.memory_space<vmem>>
      %331 = tpu.memref_squeeze %330 : memref<1x1x128xf32, #tpu.memory_space<vmem>> -> memref<1x128xf32, #tpu.memory_space<vmem>>
      %332 = tpu.memref_slice %arg7[%34] : memref<2x!tpu.dma_semaphore, #tpu.memory_space<semaphore_mem>> -> memref<1x!tpu.dma_semaphore, #tpu.memory_space<semaphore_mem>>
      %333 = tpu.memref_squeeze %332 : memref<1x!tpu.dma_semaphore, #tpu.memory_space<semaphore_mem>> -> memref<!tpu.dma_semaphore, #tpu.memory_space<semaphore_mem>>
      tpu.enqueue_dma source(%329 : memref<1x128xf32, #tpu.memory_space<any>>) target(%331 : memref<1x128xf32, #tpu.memory_space<vmem>>) target_semaphore(%333 : memref<!tpu.dma_semaphore, #tpu.memory_space<semaphore_mem>>)
      %c37_i32 = arith.constant 37 : i32
      %334 = arith.addi %37, %c37_i32 : i32
      %335 = arith.index_cast %334 : i32 to index
      %336 = memref.load %arg2[%335] : memref<160xi32, #tpu.memory_space<smem>>
      %c0_i32_134 = arith.constant 0 : i32
      %337 = tpu.memref_slice %arg3[%336, %c0_i32_134] : memref<512x128xf32, #tpu.memory_space<any>> -> memref<1x128xf32, #tpu.memory_space<any>>
      %c37_i32_135 = arith.constant 37 : i32
      %c0_i32_136 = arith.constant 0 : i32
      %338 = tpu.memref_slice %arg6[%34, %c37_i32_135, %c0_i32_136] : memref<2x40x128xf32, #tpu.memory_space<vmem>> -> memref<1x1x128xf32, #tpu.memory_space<vmem>>
      %339 = tpu.memref_squeeze %338 : memref<1x1x128xf32, #tpu.memory_space<vmem>> -> memref<1x128xf32, #tpu.memory_space<vmem>>
      %340 = tpu.memref_slice %arg7[%34] : memref<2x!tpu.dma_semaphore, #tpu.memory_space<semaphore_mem>> -> memref<1x!tpu.dma_semaphore, #tpu.memory_space<semaphore_mem>>
      %341 = tpu.memref_squeeze %340 : memref<1x!tpu.dma_semaphore, #tpu.memory_space<semaphore_mem>> -> memref<!tpu.dma_semaphore, #tpu.memory_space<semaphore_mem>>
      tpu.enqueue_dma source(%337 : memref<1x128xf32, #tpu.memory_space<any>>) target(%339 : memref<1x128xf32, #tpu.memory_space<vmem>>) target_semaphore(%341 : memref<!tpu.dma_semaphore, #tpu.memory_space<semaphore_mem>>)
      %c38_i32 = arith.constant 38 : i32
      %342 = arith.addi %37, %c38_i32 : i32
      %343 = arith.index_cast %342 : i32 to index
      %344 = memref.load %arg2[%343] : memref<160xi32, #tpu.memory_space<smem>>
      %c0_i32_137 = arith.constant 0 : i32
      %345 = tpu.memref_slice %arg3[%344, %c0_i32_137] : memref<512x128xf32, #tpu.memory_space<any>> -> memref<1x128xf32, #tpu.memory_space<any>>
      %c38_i32_138 = arith.constant 38 : i32
      %c0_i32_139 = arith.constant 0 : i32
      %346 = tpu.memref_slice %arg6[%34, %c38_i32_138, %c0_i32_139] : memref<2x40x128xf32, #tpu.memory_space<vmem>> -> memref<1x1x128xf32, #tpu.memory_space<vmem>>
      %347 = tpu.memref_squeeze %346 : memref<1x1x128xf32, #tpu.memory_space<vmem>> -> memref<1x128xf32, #tpu.memory_space<vmem>>
      %348 = tpu.memref_slice %arg7[%34] : memref<2x!tpu.dma_semaphore, #tpu.memory_space<semaphore_mem>> -> memref<1x!tpu.dma_semaphore, #tpu.memory_space<semaphore_mem>>
      %349 = tpu.memref_squeeze %348 : memref<1x!tpu.dma_semaphore, #tpu.memory_space<semaphore_mem>> -> memref<!tpu.dma_semaphore, #tpu.memory_space<semaphore_mem>>
      tpu.enqueue_dma source(%345 : memref<1x128xf32, #tpu.memory_space<any>>) target(%347 : memref<1x128xf32, #tpu.memory_space<vmem>>) target_semaphore(%349 : memref<!tpu.dma_semaphore, #tpu.memory_space<semaphore_mem>>)
      %c39_i32 = arith.constant 39 : i32
      %350 = arith.addi %37, %c39_i32 : i32
      %351 = arith.index_cast %350 : i32 to index
      %352 = memref.load %arg2[%351] : memref<160xi32, #tpu.memory_space<smem>>
      %c0_i32_140 = arith.constant 0 : i32
      %353 = tpu.memref_slice %arg3[%352, %c0_i32_140] : memref<512x128xf32, #tpu.memory_space<any>> -> memref<1x128xf32, #tpu.memory_space<any>>
      %c39_i32_141 = arith.constant 39 : i32
      %c0_i32_142 = arith.constant 0 : i32
      %354 = tpu.memref_slice %arg6[%34, %c39_i32_141, %c0_i32_142] : memref<2x40x128xf32, #tpu.memory_space<vmem>> -> memref<1x1x128xf32, #tpu.memory_space<vmem>>
      %355 = tpu.memref_squeeze %354 : memref<1x1x128xf32, #tpu.memory_space<vmem>> -> memref<1x128xf32, #tpu.memory_space<vmem>>
      %356 = tpu.memref_slice %arg7[%34] : memref<2x!tpu.dma_semaphore, #tpu.memory_space<semaphore_mem>> -> memref<1x!tpu.dma_semaphore, #tpu.memory_space<semaphore_mem>>
      %357 = tpu.memref_squeeze %356 : memref<1x!tpu.dma_semaphore, #tpu.memory_space<semaphore_mem>> -> memref<!tpu.dma_semaphore, #tpu.memory_space<semaphore_mem>>
      tpu.enqueue_dma source(%353 : memref<1x128xf32, #tpu.memory_space<any>>) target(%355 : memref<1x128xf32, #tpu.memory_space<vmem>>) target_semaphore(%357 : memref<!tpu.dma_semaphore, #tpu.memory_space<semaphore_mem>>)
    } else {
    }
    %c0_i32_8 = arith.constant 0 : i32
    %c0_i32_9 = arith.constant 0 : i32
    %17 = tpu.memref_slice %arg3[%c0_i32_8, %c0_i32_9] : memref<512x128xf32, #tpu.memory_space<any>> -> memref<40x128xf32, #tpu.memory_space<any>>
    %c0_i32_10 = arith.constant 0 : i32
    %c0_i32_11 = arith.constant 0 : i32
    %18 = tpu.memref_slice %arg6[%9, %c0_i32_10, %c0_i32_11] : memref<2x40x128xf32, #tpu.memory_space<vmem>> -> memref<1x40x128xf32, #tpu.memory_space<vmem>>
    %19 = tpu.memref_squeeze %18 : memref<1x40x128xf32, #tpu.memory_space<vmem>> -> memref<40x128xf32, #tpu.memory_space<vmem>>
    %20 = tpu.memref_slice %arg7[%9] : memref<2x!tpu.dma_semaphore, #tpu.memory_space<semaphore_mem>> -> memref<1x!tpu.dma_semaphore, #tpu.memory_space<semaphore_mem>>
    %21 = tpu.memref_squeeze %20 : memref<1x!tpu.dma_semaphore, #tpu.memory_space<semaphore_mem>> -> memref<!tpu.dma_semaphore, #tpu.memory_space<semaphore_mem>>
    tpu.wait_dma2 semaphore(%21 : memref<!tpu.dma_semaphore, #tpu.memory_space<semaphore_mem>>) src(%17 : memref<40x128xf32, #tpu.memory_space<any>>) dst(%19 : memref<40x128xf32, #tpu.memory_space<vmem>>)
    %22 = arith.index_cast %9 : i32 to index
    %c0 = arith.constant 0 : index
    %c0_12 = arith.constant 0 : index
    %23 = vector.load %arg6[%22, %c0, %c0_12] : memref<2x40x128xf32, #tpu.memory_space<vmem>>, vector<1x40x128xf32>
    %24 = vector.shape_cast %23 : vector<1x40x128xf32> to vector<40x128xf32>
    %c40_i32 = arith.constant 40 : i32
    %25 = arith.muli %arg1, %c40_i32 : i32
    %26 = tpu.assume_multiple %25, 40 : i32
    %27 = arith.index_cast %26 : i32 to index
    %c0_13 = arith.constant 0 : index
    %28 = vector.load %arg4[%27, %c0_13] : memref<80x128xf32, #tpu.memory_space<vmem>>, vector<40x128xf32>
    %29 = arith.addf %24, %28 : vector<40x128xf32>
    %c0_14 = arith.constant 0 : index
    %c0_15 = arith.constant 0 : index
    %c0_16 = arith.constant 0 : index
    %30 = vector.load %arg5[%c0_14, %c0_15, %c0_16] : memref<1x40x128xf32, #tpu.memory_space<vmem>>, vector<1x40x128xf32>
    %31 = vector.shape_cast %30 : vector<1x40x128xf32> to vector<40x128xf32>
    %32 = vector.shape_cast %29 : vector<40x128xf32> to vector<1x40x128xf32>
    tpu.vector_store %arg5[%c0_14, %c0_15, %c0_16], %32 {strides = array<i32>} : memref<1x40x128xf32, #tpu.memory_space<vmem>>, vector<1x40x128xf32>,
    return
  }
  func.func @transform_1(%arg0: i32, %arg1: i32, %arg2: memref<160xi32, #tpu.memory_space<smem>>) -> (i32, i32) {
    %c0_i32 = arith.constant 0 : i32
    %c0_i32_0 = arith.constant 0 : i32
    %c0_i32_1 = arith.constant 0 : i32
    return %c0_i32, %c0_i32_0 : i32, i32
  }
  func.func @transform_2(%arg0: i32, %arg1: i32, %arg2: memref<160xi32, #tpu.memory_space<smem>>) -> (i32, i32, i32) {
    %c0_i32 = arith.constant 0 : i32
    %c0_i32_0 = arith.constant 0 : i32
    return %arg0, %arg1, %c0_i32 : i32, i32, i32
  }
}

</mosaic_0001>

<llo_original>
// kernel: tpu_custom_call.1
$region0: #{tpu_custom_call.1}
  #allocation0 [shape = 'u32[]', space=smem, size = 0x4, offset = 0x4, fixed_abs, tag = 'smem constant byte address 0x4 - core index']
  #allocation1 [shape = 'u32[72,128]{1,0:T(1,128)}', space=vmem, size = 0x9000, scoped, tag = 'internal scratch']
  #allocation2 [shape = 'f32[2,40,128]{2,1,0:T(8,128)}', space=vmem, size = 0xa000, scoped, tag = 'scratch operand']
  #allocation3 [shape = 's32[2]{0}', space=sflag, size = 0x8, scoped, tag = 'scratch operand']
  #allocation4 [shape = 's32[1]{0}', space=sflag, size = 0x4, scoped, tag = 'scoped memory for tpu_custom_call.1']
  #allocation5 [shape = 'u8[1024]{0}', space=smem, size = 0x400, scoped, tag = 'prefetched SMEM operand 0']
  #allocation10 [shape = 's32[]', space=sflag, size = 0x4, offset = 0, fixed_abs, tag = 'sflag constant byte address 0x0 - dummy sync flag']
  #allocation11 [shape = 's32[]', space=sflag, size = 0x4, offset = 0, fixed_abs, tag = 'sflag constant byte address 0x0 - dummy sync flag']
  #allocation12 [shape = 'u32[]', space=smem, size = 0x4, offset = 0x44, fixed_abs, tag = 'smem constant byte address 0x44 - assertion arg 0']
  #allocation13 [shape = 'u32[]', space=smem, size = 0x4, offset = 0x48, fixed_abs, tag = 'smem constant byte address 0x48 - assertion arg 1']
  #allocation14 [shape = 's32[]', space=sflag, size = 0x4, offset = 0, fixed_abs, tag = 'sflag constant byte address 0x0 - dummy sync flag']
  #allocation15 [shape = 's32[]', space=sflag, size = 0x4, offset = 0, fixed_abs, tag = 'sflag constant byte address 0x0 - dummy sync flag']
  #allocation16 [shape = 's32[]', space=sflag, size = 0x4, offset = 0, fixed_abs, tag = 'sflag constant byte address 0x0 - dummy sync flag']
  #allocation17 [shape = 's32[]', space=sflag, size = 0x4, offset = 0, fixed_abs, tag = 'sflag constant byte address 0x0 - dummy sync flag']
  #allocation18 [shape = 's32[]', space=sflag, size = 0x4, offset = 0, fixed_abs, tag = 'sflag constant byte address 0x0 - dummy sync flag']
  #allocation19 [shape = 's32[]', space=sflag, size = 0x4, offset = 0, fixed_abs, tag = 'sflag constant byte address 0x0 - dummy sync flag']
  #allocation20 [shape = 's32[]', space=sflag, size = 0x4, offset = 0, fixed_abs, tag = 'sflag constant byte address 0x0 - dummy sync flag']
  #allocation21 [shape = 's32[]', space=sflag, size = 0x4, offset = 0, fixed_abs, tag = 'sflag constant byte address 0x0 - dummy sync flag']
  #allocation22 [shape = 's32[]', space=sflag, size = 0x4, offset = 0, fixed_abs, tag = 'sflag constant byte address 0x0 - dummy sync flag']
  #allocation23 [shape = 's32[]', space=sflag, size = 0x4, offset = 0, fixed_abs, tag = 'sflag constant byte address 0x0 - dummy sync flag']
  #allocation24 [shape = 's32[]', space=sflag, size = 0x4, offset = 0, fixed_abs, tag = 'sflag constant byte address 0x0 - dummy sync flag']
  #allocation25 [shape = 's32[]', space=sflag, size = 0x4, offset = 0, fixed_abs, tag = 'sflag constant byte address 0x0 - dummy sync flag']
  #allocation26 [shape = 's32[]', space=sflag, size = 0x4, offset = 0, fixed_abs, tag = 'sflag constant byte address 0x0 - dummy sync flag']
  #allocation27 [shape = 's32[]', space=sflag, size = 0x4, offset = 0, fixed_abs, tag = 'sflag constant byte address 0x0 - dummy sync flag']
  #allocation28 [shape = 's32[]', space=sflag, size = 0x4, offset = 0, fixed_abs, tag = 'sflag constant byte address 0x0 - dummy sync flag']
  #allocation29 [shape = 's32[]', space=sflag, size = 0x4, offset = 0, fixed_abs, tag = 'sflag constant byte address 0x0 - dummy sync flag']
  #allocation30 [shape = 's32[]', space=sflag, size = 0x4, offset = 0, fixed_abs, tag = 'sflag constant byte address 0x0 - dummy sync flag']
  #allocation31 [shape = 's32[]', space=sflag, size = 0x4, offset = 0, fixed_abs, tag = 'sflag constant byte address 0x0 - dummy sync flag']
  #allocation32 [shape = 's32[]', space=sflag, size = 0x4, offset = 0, fixed_abs, tag = 'sflag constant byte address 0x0 - dummy sync flag']
  #allocation33 [shape = 's32[]', space=sflag, size = 0x4, offset = 0, fixed_abs, tag = 'sflag constant byte address 0x0 - dummy sync flag']
  #allocation34 [shape = 's32[]', space=sflag, size = 0x4, offset = 0, fixed_abs, tag = 'sflag constant byte address 0x0 - dummy sync flag']
  #allocation35 [shape = 's32[]', space=sflag, size = 0x4, offset = 0, fixed_abs, tag = 'sflag constant byte address 0x0 - dummy sync flag']
  #allocation36 [shape = 's32[]', space=sflag, size = 0x4, offset = 0, fixed_abs, tag = 'sflag constant byte address 0x0 - dummy sync flag']
  #allocation37 [shape = 's32[]', space=sflag, size = 0x4, offset = 0, fixed_abs, tag = 'sflag constant byte address 0x0 - dummy sync flag']
  #allocation38 [shape = 's32[]', space=sflag, size = 0x4, offset = 0, fixed_abs, tag = 'sflag constant byte address 0x0 - dummy sync flag']
  #allocation39 [shape = 's32[]', space=sflag, size = 0x4, offset = 0, fixed_abs, tag = 'sflag constant byte address 0x0 - dummy sync flag']
  #allocation40 [shape = 's32[]', space=sflag, size = 0x4, offset = 0, fixed_abs, tag = 'sflag constant byte address 0x0 - dummy sync flag']
  #allocation41 [shape = 's32[]', space=sflag, size = 0x4, offset = 0, fixed_abs, tag = 'sflag constant byte address 0x0 - dummy sync flag']
  #allocation42 [shape = 's32[]', space=sflag, size = 0x4, offset = 0, fixed_abs, tag = 'sflag constant byte address 0x0 - dummy sync flag']
  #allocation43 [shape = 's32[]', space=sflag, size = 0x4, offset = 0, fixed_abs, tag = 'sflag constant byte address 0x0 - dummy sync flag']
  #allocation44 [shape = 's32[]', space=sflag, size = 0x4, offset = 0, fixed_abs, tag = 'sflag constant byte address 0x0 - dummy sync flag']
  #allocation45 [shape = 's32[]', space=sflag, size = 0x4, offset = 0, fixed_abs, tag = 'sflag constant byte address 0x0 - dummy sync flag']
  #allocation46 [shape = 's32[]', space=sflag, size = 0x4, offset = 0, fixed_abs, tag = 'sflag constant byte address 0x0 - dummy sync flag']
  #allocation47 [shape = 's32[]', space=sflag, size = 0x4, offset = 0, fixed_abs, tag = 'sflag constant byte address 0x0 - dummy sync flag']
  #allocation48 [shape = 's32[]', space=sflag, size = 0x4, offset = 0, fixed_abs, tag = 'sflag constant byte address 0x0 - dummy sync flag']
  #allocation49 [shape = 's32[]', space=sflag, size = 0x4, offset = 0, fixed_abs, tag = 'sflag constant byte address 0x0 - dummy sync flag']
  #allocation50 [shape = 's32[]', space=sflag, size = 0x4, offset = 0, fixed_abs, tag = 'sflag constant byte address 0x0 - dummy sync flag']
  #allocation51 [shape = 's32[]', space=sflag, size = 0x4, offset = 0, fixed_abs, tag = 'sflag constant byte address 0x0 - dummy sync flag']
  #allocation52 [shape = 's32[]', space=sflag, size = 0x4, offset = 0, fixed_abs, tag = 'sflag constant byte address 0x0 - dummy sync flag']
  #allocation53 [shape = 's32[]', space=sflag, size = 0x4, offset = 0, fixed_abs, tag = 'sflag constant byte address 0x0 - dummy sync flag']
  #allocation54 [shape = 's32[]', space=sflag, size = 0x4, offset = 0, fixed_abs, tag = 'sflag constant byte address 0x0 - dummy sync flag']
  #allocation55 [shape = 's32[]', space=sflag, size = 0x4, offset = 0, fixed_abs, tag = 'sflag constant byte address 0x0 - dummy sync flag']
  #allocation56 [shape = 's32[]', space=sflag, size = 0x4, offset = 0, fixed_abs, tag = 'sflag constant byte address 0x0 - dummy sync flag']
  #allocation57 [shape = 's32[]', space=sflag, size = 0x4, offset = 0, fixed_abs, tag = 'sflag constant byte address 0x0 - dummy sync flag']
  #allocation58 [shape = 's32[]', space=sflag, size = 0x4, offset = 0, fixed_abs, tag = 'sflag constant byte address 0x0 - dummy sync flag']
  #allocation59 [shape = 's32[]', space=sflag, size = 0x4, offset = 0, fixed_abs, tag = 'sflag constant byte address 0x0 - dummy sync flag']
  #allocation60 [shape = 's32[]', space=sflag, size = 0x4, offset = 0, fixed_abs, tag = 'sflag constant byte address 0x0 - dummy sync flag']
  #allocation61 [shape = 's32[]', space=sflag, size = 0x4, offset = 0, fixed_abs, tag = 'sflag constant byte address 0x0 - dummy sync flag']
  #allocation62 [shape = 's32[]', space=sflag, size = 0x4, offset = 0, fixed_abs, tag = 'sflag constant byte address 0x0 - dummy sync flag']
  #allocation63 [shape = 's32[]', space=sflag, size = 0x4, offset = 0, fixed_abs, tag = 'sflag constant byte address 0x0 - dummy sync flag']
  #allocation64 [shape = 's32[]', space=sflag, size = 0x4, offset = 0, fixed_abs, tag = 'sflag constant byte address 0x0 - dummy sync flag']
  #allocation65 [shape = 's32[]', space=sflag, size = 0x4, offset = 0, fixed_abs, tag = 'sflag constant byte address 0x0 - dummy sync flag']
  #allocation66 [shape = 's32[]', space=sflag, size = 0x4, offset = 0, fixed_abs, tag = 'sflag constant byte address 0x0 - dummy sync flag']
  #allocation67 [shape = 's32[]', space=sflag, size = 0x4, offset = 0, fixed_abs, tag = 'sflag constant byte address 0x0 - dummy sync flag']
  #allocation68 [shape = 's32[]', space=sflag, size = 0x4, offset = 0, fixed_abs, tag = 'sflag constant byte address 0x0 - dummy sync flag']
  #allocation69 [shape = 's32[]', space=sflag, size = 0x4, offset = 0, fixed_abs, tag = 'sflag constant byte address 0x0 - dummy sync flag']
  #allocation70 [shape = 's32[]', space=sflag, size = 0x4, offset = 0, fixed_abs, tag = 'sflag constant byte address 0x0 - dummy sync flag']
  #allocation71 [shape = 's32[]', space=sflag, size = 0x4, offset = 0, fixed_abs, tag = 'sflag constant byte address 0x0 - dummy sync flag']
  #allocation72 [shape = 's32[]', space=sflag, size = 0x4, offset = 0, fixed_abs, tag = 'sflag constant byte address 0x0 - dummy sync flag']
  #allocation73 [shape = 's32[]', space=sflag, size = 0x4, offset = 0, fixed_abs, tag = 'sflag constant byte address 0x0 - dummy sync flag']
  #allocation74 [shape = 's32[]', space=sflag, size = 0x4, offset = 0, fixed_abs, tag = 'sflag constant byte address 0x0 - dummy sync flag']
  #allocation75 [shape = 's32[]', space=sflag, size = 0x4, offset = 0, fixed_abs, tag = 'sflag constant byte address 0x0 - dummy sync flag']
  #allocation76 [shape = 's32[]', space=sflag, size = 0x4, offset = 0, fixed_abs, tag = 'sflag constant byte address 0x0 - dummy sync flag']
  #allocation77 [shape = 's32[]', space=sflag, size = 0x4, offset = 0, fixed_abs, tag = 'sflag constant byte address 0x0 - dummy sync flag']
  #allocation78 [shape = 's32[]', space=sflag, size = 0x4, offset = 0, fixed_abs, tag = 'sflag constant byte address 0x0 - dummy sync flag']
  #allocation79 [shape = 's32[]', space=sflag, size = 0x4, offset = 0, fixed_abs, tag = 'sflag constant byte address 0x0 - dummy sync flag']
  #allocation80 [shape = 's32[]', space=sflag, size = 0x4, offset = 0, fixed_abs, tag = 'sflag constant byte address 0x0 - dummy sync flag']
  #allocation81 [shape = 's32[]', space=sflag, size = 0x4, offset = 0, fixed_abs, tag = 'sflag constant byte address 0x0 - dummy sync flag']
  #allocation82 [shape = 's32[]', space=sflag, size = 0x4, offset = 0, fixed_abs, tag = 'sflag constant byte address 0x0 - dummy sync flag']
  #allocation83 [shape = 's32[]', space=sflag, size = 0x4, offset = 0, fixed_abs, tag = 'sflag constant byte address 0x0 - dummy sync flag']
  #allocation84 [shape = 's32[]', space=sflag, size = 0x4, offset = 0, fixed_abs, tag = 'sflag constant byte address 0x0 - dummy sync flag']
  #allocation85 [shape = 's32[]', space=sflag, size = 0x4, offset = 0, fixed_abs, tag = 'sflag constant byte address 0x0 - dummy sync flag']
  #allocation86 [shape = 's32[]', space=sflag, size = 0x4, offset = 0, fixed_abs, tag = 'sflag constant byte address 0x0 - dummy sync flag']
  #allocation87 [shape = 's32[]', space=sflag, size = 0x4, offset = 0, fixed_abs, tag = 'sflag constant byte address 0x0 - dummy sync flag']
  #allocation88 [shape = 's32[]', space=sflag, size = 0x4, offset = 0, fixed_abs, tag = 'sflag constant byte address 0x0 - dummy sync flag']
  #allocation89 [shape = 's32[]', space=sflag, size = 0x4, offset = 0, fixed_abs, tag = 'sflag constant byte address 0x0 - dummy sync flag']
  #allocation90 [shape = 's32[]', space=sflag, size = 0x4, offset = 0, fixed_abs, tag = 'sflag constant byte address 0x0 - dummy sync flag']
  #allocation91 [shape = 's32[]', space=sflag, size = 0x4, offset = 0, fixed_abs, tag = 'sflag constant byte address 0x0 - dummy sync flag']
  #allocation92 [shape = 's32[]', space=sflag, size = 0x4, offset = 0, fixed_abs, tag = 'sflag constant byte address 0x0 - dummy sync flag']
  #allocation93 [shape = 's32[]', space=sflag, size = 0x4, offset = 0, fixed_abs, tag = 'sflag constant byte address 0x0 - dummy sync flag']
  #allocation94 [shape = 's32[]', space=sflag, size = 0x4, offset = 0, fixed_abs, tag = 'sflag constant byte address 0x0 - dummy sync flag']
  #allocation95 [shape = 's32[]', space=sflag, size = 0x4, offset = 0, fixed_abs, tag = 'sflag constant byte address 0x0 - dummy sync flag']
  #allocation96 [shape = 's32[]', space=sflag, size = 0x4, offset = 0, fixed_abs, tag = 'sflag constant byte address 0x0 - dummy sync flag']
  #allocation97 [shape = 's32[]', space=sflag, size = 0x4, offset = 0, fixed_abs, tag = 'sflag constant byte address 0x0 - dummy sync flag']
  #allocation98 [shape = 's32[]', space=sflag, size = 0x4, offset = 0, fixed_abs, tag = 'sflag constant byte address 0x0 - dummy sync flag']
  #allocation99 [shape = 's32[]', space=sflag, size = 0x4, offset = 0, fixed_abs, tag = 'sflag constant byte address 0x0 - dummy sync flag']
  #allocation100 [shape = 's32[]', space=sflag, size = 0x4, offset = 0, fixed_abs, tag = 'sflag constant byte address 0x0 - dummy sync flag']
  #allocation101 [shape = 's32[]', space=sflag, size = 0x4, offset = 0, fixed_abs, tag = 'sflag constant byte address 0x0 - dummy sync flag']
  #allocation102 [shape = 's32[]', space=sflag, size = 0x4, offset = 0, fixed_abs, tag = 'sflag constant byte address 0x0 - dummy sync flag']
  #allocation103 [shape = 's32[]', space=sflag, size = 0x4, offset = 0, fixed_abs, tag = 'sflag constant byte address 0x0 - dummy sync flag']
  #allocation104 [shape = 's32[]', space=sflag, size = 0x4, offset = 0, fixed_abs, tag = 'sflag constant byte address 0x0 - dummy sync flag']
  #allocation105 [shape = 's32[]', space=sflag, size = 0x4, offset = 0, fixed_abs, tag = 'sflag constant byte address 0x0 - dummy sync flag']
  #allocation106 [shape = 's32[]', space=sflag, size = 0x4, offset = 0, fixed_abs, tag = 'sflag constant byte address 0x0 - dummy sync flag']
  #allocation107 [shape = 's32[]', space=sflag, size = 0x4, offset = 0, fixed_abs, tag = 'sflag constant byte address 0x0 - dummy sync flag']
  #allocation108 [shape = 's32[]', space=sflag, size = 0x4, offset = 0, fixed_abs, tag = 'sflag constant byte address 0x0 - dummy sync flag']
  #allocation109 [shape = 's32[]', space=sflag, size = 0x4, offset = 0, fixed_abs, tag = 'sflag constant byte address 0x0 - dummy sync flag']
  #allocation110 [shape = 's32[]', space=sflag, size = 0x4, offset = 0, fixed_abs, tag = 'sflag constant byte address 0x0 - dummy sync flag']
  #allocation111 [shape = 's32[]', space=sflag, size = 0x4, offset = 0, fixed_abs, tag = 'sflag constant byte address 0x0 - dummy sync flag']
  #allocation112 [shape = 's32[]', space=sflag, size = 0x4, offset = 0, fixed_abs, tag = 'sflag constant byte address 0x0 - dummy sync flag']
  #allocation113 [shape = 's32[]', space=sflag, size = 0x4, offset = 0, fixed_abs, tag = 'sflag constant byte address 0x0 - dummy sync flag']
  #allocation114 [shape = 's32[]', space=sflag, size = 0x4, offset = 0, fixed_abs, tag = 'sflag constant byte address 0x0 - dummy sync flag']
  #allocation115 [shape = 's32[]', space=sflag, size = 0x4, offset = 0, fixed_abs, tag = 'sflag constant byte address 0x0 - dummy sync flag']
  #allocation116 [shape = 's32[]', space=sflag, size = 0x4, offset = 0, fixed_abs, tag = 'sflag constant byte address 0x0 - dummy sync flag']
  #allocation117 [shape = 's32[]', space=sflag, size = 0x4, offset = 0, fixed_abs, tag = 'sflag constant byte address 0x0 - dummy sync flag']
  #allocation118 [shape = 's32[]', space=sflag, size = 0x4, offset = 0, fixed_abs, tag = 'sflag constant byte address 0x0 - dummy sync flag']
  #allocation119 [shape = 's32[]', space=sflag, size = 0x4, offset = 0, fixed_abs, tag = 'sflag constant byte address 0x0 - dummy sync flag']
  #allocation120 [shape = 's32[]', space=sflag, size = 0x4, offset = 0, fixed_abs, tag = 'sflag constant byte address 0x0 - dummy sync flag']
  #allocation121 [shape = 's32[]', space=sflag, size = 0x4, offset = 0, fixed_abs, tag = 'sflag constant byte address 0x0 - dummy sync flag']
  #allocation122 [shape = 's32[]', space=sflag, size = 0x4, offset = 0, fixed_abs, tag = 'sflag constant byte address 0x0 - dummy sync flag']
  #allocation123 [shape = 's32[]', space=sflag, size = 0x4, offset = 0, fixed_abs, tag = 'sflag constant byte address 0x0 - dummy sync flag']
  #allocation124 [shape = 's32[]', space=sflag, size = 0x4, offset = 0, fixed_abs, tag = 'sflag constant byte address 0x0 - dummy sync flag']
  #allocation125 [shape = 's32[]', space=sflag, size = 0x4, offset = 0, fixed_abs, tag = 'sflag constant byte address 0x0 - dummy sync flag']
  #allocation126 [shape = 's32[]', space=sflag, size = 0x4, offset = 0, fixed_abs, tag = 'sflag constant byte address 0x0 - dummy sync flag']
  #allocation127 [shape = 's32[]', space=sflag, size = 0x4, offset = 0, fixed_abs, tag = 'sflag constant byte address 0x0 - dummy sync flag']
  #allocation128 [shape = 's32[]', space=sflag, size = 0x4, offset = 0, fixed_abs, tag = 'sflag constant byte address 0x0 - dummy sync flag']
  #allocation129 [shape = 's32[]', space=sflag, size = 0x4, offset = 0, fixed_abs, tag = 'sflag constant byte address 0x0 - dummy sync flag']
  #allocation130 [shape = 's32[]', space=sflag, size = 0x4, offset = 0, fixed_abs, tag = 'sflag constant byte address 0x0 - dummy sync flag']
  #allocation131 [shape = 's32[]', space=sflag, size = 0x4, offset = 0, fixed_abs, tag = 'sflag constant byte address 0x0 - dummy sync flag']
  #allocation132 [shape = 's32[]', space=sflag, size = 0x4, offset = 0, fixed_abs, tag = 'sflag constant byte address 0x0 - dummy sync flag']
  #allocation133 [shape = 's32[]', space=sflag, size = 0x4, offset = 0, fixed_abs, tag = 'sflag constant byte address 0x0 - dummy sync flag']
  #allocation134 [shape = 's32[]', space=sflag, size = 0x4, offset = 0, fixed_abs, tag = 'sflag constant byte address 0x0 - dummy sync flag']
  #allocation135 [shape = 's32[]', space=sflag, size = 0x4, offset = 0, fixed_abs, tag = 'sflag constant byte address 0x0 - dummy sync flag']
  #allocation136 [shape = 's32[]', space=sflag, size = 0x4, offset = 0, fixed_abs, tag = 'sflag constant byte address 0x0 - dummy sync flag']
  #allocation137 [shape = 's32[]', space=sflag, size = 0x4, offset = 0, fixed_abs, tag = 'sflag constant byte address 0x0 - dummy sync flag']
  #allocation138 [shape = 's32[]', space=sflag, size = 0x4, offset = 0, fixed_abs, tag = 'sflag constant byte address 0x0 - dummy sync flag']
  #allocation139 [shape = 's32[]', space=sflag, size = 0x4, offset = 0, fixed_abs, tag = 'sflag constant byte address 0x0 - dummy sync flag']
  #allocation140 [shape = 's32[]', space=sflag, size = 0x4, offset = 0, fixed_abs, tag = 'sflag constant byte address 0x0 - dummy sync flag']
  #allocation141 [shape = 's32[]', space=sflag, size = 0x4, offset = 0, fixed_abs, tag = 'sflag constant byte address 0x0 - dummy sync flag']
  #allocation142 [shape = 's32[]', space=sflag, size = 0x4, offset = 0, fixed_abs, tag = 'sflag constant byte address 0x0 - dummy sync flag']
  #allocation143 [shape = 's32[]', space=sflag, size = 0x4, offset = 0, fixed_abs, tag = 'sflag constant byte address 0x0 - dummy sync flag']
  #allocation144 [shape = 's32[]', space=sflag, size = 0x4, offset = 0, fixed_abs, tag = 'sflag constant byte address 0x0 - dummy sync flag']
  #allocation145 [shape = 's32[]', space=sflag, size = 0x4, offset = 0, fixed_abs, tag = 'sflag constant byte address 0x0 - dummy sync flag']
  #allocation146 [shape = 's32[]', space=sflag, size = 0x4, offset = 0, fixed_abs, tag = 'sflag constant byte address 0x0 - dummy sync flag']
  #allocation147 [shape = 's32[]', space=sflag, size = 0x4, offset = 0, fixed_abs, tag = 'sflag constant byte address 0x0 - dummy sync flag']
  #allocation148 [shape = 's32[]', space=sflag, size = 0x4, offset = 0, fixed_abs, tag = 'sflag constant byte address 0x0 - dummy sync flag']
  #allocation149 [shape = 's32[]', space=sflag, size = 0x4, offset = 0, fixed_abs, tag = 'sflag constant byte address 0x0 - dummy sync flag']
  #allocation150 [shape = 's32[]', space=sflag, size = 0x4, offset = 0, fixed_abs, tag = 'sflag constant byte address 0x0 - dummy sync flag']
  #allocation151 [shape = 's32[]', space=sflag, size = 0x4, offset = 0, fixed_abs, tag = 'sflag constant byte address 0x0 - dummy sync flag']
  #allocation152 [shape = 's32[]', space=sflag, size = 0x4, offset = 0, fixed_abs, tag = 'sflag constant byte address 0x0 - dummy sync flag']
  #allocation153 [shape = 's32[]', space=sflag, size = 0x4, offset = 0, fixed_abs, tag = 'sflag constant byte address 0x0 - dummy sync flag']
  #allocation154 [shape = 's32[]', space=sflag, size = 0x4, offset = 0, fixed_abs, tag = 'sflag constant byte address 0x0 - dummy sync flag']
  #allocation155 [shape = 's32[]', space=sflag, size = 0x4, offset = 0, fixed_abs, tag = 'sflag constant byte address 0x0 - dummy sync flag']
  #allocation156 [shape = 's32[]', space=sflag, size = 0x4, offset = 0, fixed_abs, tag = 'sflag constant byte address 0x0 - dummy sync flag']
  #allocation157 [shape = 's32[]', space=sflag, size = 0x4, offset = 0, fixed_abs, tag = 'sflag constant byte address 0x0 - dummy sync flag']
  #allocation158 [shape = 's32[]', space=sflag, size = 0x4, offset = 0, fixed_abs, tag = 'sflag constant byte address 0x0 - dummy sync flag']
  #allocation159 [shape = 's32[]', space=sflag, size = 0x4, offset = 0, fixed_abs, tag = 'sflag constant byte address 0x0 - dummy sync flag']
  #allocation160 [shape = 's32[]', space=sflag, size = 0x4, offset = 0, fixed_abs, tag = 'sflag constant byte address 0x0 - dummy sync flag']
  #allocation161 [shape = 's32[]', space=sflag, size = 0x4, offset = 0, fixed_abs, tag = 'sflag constant byte address 0x0 - dummy sync flag']
  #allocation162 [shape = 's32[]', space=sflag, size = 0x4, offset = 0, fixed_abs, tag = 'sflag constant byte address 0x0 - dummy sync flag']
  #allocation163 [shape = 's32[]', space=sflag, size = 0x4, offset = 0, fixed_abs, tag = 'sflag constant byte address 0x0 - dummy sync flag']
  #allocation164 [shape = 's32[]', space=sflag, size = 0x4, offset = 0, fixed_abs, tag = 'sflag constant byte address 0x0 - dummy sync flag']
  #allocation165 [shape = 's32[]', space=sflag, size = 0x4, offset = 0, fixed_abs, tag = 'sflag constant byte address 0x0 - dummy sync flag']
  #allocation166 [shape = 's32[]', space=sflag, size = 0x4, offset = 0, fixed_abs, tag = 'sflag constant byte address 0x0 - dummy sync flag']
  #allocation167 [shape = 's32[]', space=sflag, size = 0x4, offset = 0, fixed_abs, tag = 'sflag constant byte address 0x0 - dummy sync flag']
  #allocation168 [shape = 's32[]', space=sflag, size = 0x4, offset = 0, fixed_abs, tag = 'sflag constant byte address 0x0 - dummy sync flag']
  #allocation169 [shape = 's32[]', space=sflag, size = 0x4, offset = 0, fixed_abs, tag = 'sflag constant byte address 0x0 - dummy sync flag']
  #allocation170 [shape = 's32[]', space=sflag, size = 0x4, offset = 0, fixed_abs, tag = 'sflag constant byte address 0x0 - dummy sync flag']
  #allocation171 [shape = 's32[]', space=sflag, size = 0x4, offset = 0, fixed_abs, tag = 'sflag constant byte address 0x0 - dummy sync flag']
  %s0 = inlined_call_operand.hbm [shape: s32[160], index: 0, kind: input, shape index: {}]
  %s1 = inlined_call_operand.hbm [shape: f32[512,128], index: 1, kind: input, shape index: {}]
  %s2 = inlined_call_operand.hbm [shape: f32[80,128], index: 2, kind: input, shape index: {}]
  %s3 = inlined_call_operand.hbm [shape: f32[2,80,128], index: 3, kind: output, shape index: {}]
  %s4 = sld [smem:[#allocation0]]
  $region369: #{tpu_custom_call.1} parent=0
    _
  %s6 = ssub.s32 1, %s4
  %s7 = scalar_select 0, %s6, %s4
  %s9 = sshll.u32 %s0, 4
  %s10 = int_to_ptr.hbm [resolvable:$true] %s9
  %12 = dma.hbm_to_smem %s10, 32, [#allocation5], [#allocation4]
  %14 = dma.done [#allocation4], 32
  %15 = sfence
  $region1: #{tpu_custom_call.1} parent=0
    #allocation6 [shape = 'u8[40960]{0}', space=vmem, size = 0xa000, scoped, tag = 'input window, operand 2, single buffered']
    #allocation7 [shape = 's32[2]{0}', space=sflag, size = 0x8, scoped, tag = 'scoped memory for tpu_custom_call.1']
    #allocation8 [shape = 's32[2]{0}', space=sflag, size = 0x8, scoped, tag = 'scoped memory for tpu_custom_call.1']
    #allocation9 [shape = 'u8[40960]{0}', space=vmem, size = 0xa000, scoped, tag = 'output window, operand 0']
    %16 = vsyncpa [#allocation7], 0
    %17 = vsyncpa [#allocation8], 0
    %s18 = scalar_lea.sflag [#allocation8], 1
    %19 = vsyncpa %s18, 0
    loop: start=0, step=1, limit=6
    $region2: #{tpu_custom_call.1} parent=1 // loop_pre_header
      _
    $region3: #{tpu_custom_call.1} parent=1 // loop_header
      %s21 = sphi 0, %s25
      %p22 = scmp.ge.s32.totalorder %s21, 6
      %s28 = sphi 0, %s40
      %s29 = sphi 0, %s36
      %s30 = sphi 0, %s28
      %s31 = sphi 0, %s29
      %s32 = sphi 0, %s30
      %s33 = sphi 0, %s31
      %s41 = sphi 0, %s41
      %s43 = sphi 0, %s41
      %s44 = sphi 0, %s43
      %s58 = sphi 0, %s44
      %s66 = sphi 0, %s68
      %s69 = sphi 0, %s66
      %s70 = sphi 0, %s69
      %s86 = sphi 0, %s70
    $region4: #{tpu_custom_call.1} parent=1 // loop_header_branch
      %24 = sbr.rel (%p22) target = $region8
    $region5: #{tpu_custom_call.1} parent=1 // loop_body
      %s26 = ssub.s32 %s21, 1
      %s27 = ssub.s32 %s21, 2
      %s34 = sadd.s32 1, %s29
      %p35 = scmp.ge.s32.totalorder %s34, 2
      %s36 = scalar_select %p35, 0, %s34
      %s37 = sadd.s32 1, %s28
      %s38 = scalar_select %p35, %s37, %s28
      %p39 = scmp.ge.s32.totalorder %s38, 2
      %s40 = scalar_select %p39, 0, %s38
      %s42 = sadd.s32 %s41, 1
      %p45 = scmp.eq.s32.totalorder %s21, 3
      %p46 = scmp.ne.s32.totalorder %s41, %s43
      %p47 = scmp.eq.s32.totalorder %s21, 0
      %p48 = por %p46, %p47
      %p49 = scmp.ne.s32.totalorder %s41, %s43
      %p50 = scmp.eq.s32.totalorder %s26, 3
      %p51 = por %p49, %p50
      %p52 = scmp.ne.s32.totalorder %s43, %s44
      %p53 = scmp.eq.s32.totalorder %s26, 0
      %p54 = por %p52, %p53
      %p55 = scmp.ne.s32.totalorder %s43, %s44
      %p56 = scmp.eq.s32.totalorder %s27, 3
      %p57 = por %p55, %p56
      %p59 = scmp.ne.s32.totalorder %s44, %s58
      %p60 = scmp.eq.s32.totalorder %s27, 0
      %p61 = por %p59, %p60
      %s62 = ssub.s32 %s28, %s40
      %s63 = ssub.s32 %s29, %s36
      %s64 = sor.u32 %s62, %s63
      %p65 = scmp.eq.s32.totalorder %s64, 0
      %s67 = sadd.s32 %s66, 1
      %s68 = scalar_select %p65, %s66, %s67
      %p71 = pneg %p65
      %p72 = scmp.eq.s32.totalorder %s21, 3
      %p73 = por %p71, %p72
      %p74 = scmp.ne.s32.totalorder %s66, %s69
      %p75 = scmp.eq.s32.totalorder %s21, 0
      %p76 = por %p74, %p75
      %p77 = scmp.ne.s32.totalorder %s66, %s69
      %p78 = scmp.eq.s32.totalorder %s26, 3
      %p79 = por %p77, %p78
      %p80 = scmp.ne.s32.totalorder %s69, %s70
      %p81 = scmp.eq.s32.totalorder %s26, 0
      %p82 = por %p80, %p81
      %p83 = scmp.ne.s32.totalorder %s69, %s70
      %p84 = scmp.eq.s32.totalorder %s27, 3
      %p85 = por %p83, %p84
      %p87 = scmp.ne.s32.totalorder %s70, %s86
      %p88 = scmp.eq.s32.totalorder %s27, 0
      %p89 = por %p87, %p88
      %p90 = scmp.le.s32.totalorder 1, %s21
      %p91 = scmp.lt.s32.totalorder %s21, 5
      %p92 = pnand %p90, %p91
      %p93 = pneg %p92
      // Predicated region
      $region9: #{tpu_custom_call.1} parent=5 // pred_check
        _
      $region10: #{tpu_custom_call.1} parent=5 // pred_check_branch
        %95 = sbr.rel (%p92) target = $region12
      $region11: #{tpu_custom_call.1} parent=5 // pred_region
        %s96 = ssub.s32 %s21, 1
        // Predicated region
        $region13: #{tpu_custom_call.1} parent=11 // pred_check
          %p97 = pneg %p54
        $region14: #{tpu_custom_call.1} parent=11 // pred_check_branch
          %99 = sbr.rel (%p97) target = $region16
        $region15: #{tpu_custom_call.1} parent=11 // pred_region
          %101 = vsyncadd [#allocation7], 0
          %s102 = sshll.u32 %s2, 4
          %s103 = int_to_ptr.hbm [resolvable:$true] %s102
          %s104 = sshll.u32 [#allocation6], 4
          %s105 = int_to_ptr.vmem [resolvable:$true] %s104
          %110 = dma.hbm_to_vmem [thread:$0]  %s103, 1280, %s105, [#allocation7], 128, 128, 8
        $region16: #{tpu_custom_call.1} parent=11 // pred_fallthru
          _
      $region12: #{tpu_custom_call.1} parent=5 // pred_fallthru
        _
      %p111 = scmp.lt.s32.totalorder %s21, 4
      // Predicated region
      $region17: #{tpu_custom_call.1} parent=5 // pred_check
        %p112 = pneg %p111
      $region18: #{tpu_custom_call.1} parent=5 // pred_check_branch
        %114 = sbr.rel (%p112) target = $region20
      $region19: #{tpu_custom_call.1} parent=5 // pred_region
        _
      $region20: #{tpu_custom_call.1} parent=5 // pred_fallthru
        _
      %p115 = scmp.le.s32.totalorder 1, %s21
      %p116 = scmp.lt.s32.totalorder %s21, 5
      %p117 = pnand %p115, %p116
      %p118 = pneg %p117
      // Predicated region
      $region21: #{tpu_custom_call.1} parent=5 // pred_check
        _
      $region22: #{tpu_custom_call.1} parent=5 // pred_check_branch
        %120 = sbr.rel (%p117) target = $region24
      $region23: #{tpu_custom_call.1} parent=5 // pred_region
        %s121 = ssub.s32 %s21, 1
        // Predicated region
        $region25: #{tpu_custom_call.1} parent=23 // pred_check
          %p122 = pneg %p54
        $region26: #{tpu_custom_call.1} parent=23 // pred_check_branch
          %124 = sbr.rel (%p122) target = $region28
        $region27: #{tpu_custom_call.1} parent=23 // pred_region
          %126 = dma.done [#allocation7], 1280
        $region28: #{tpu_custom_call.1} parent=23 // pred_fallthru
          _
        %p127 = pneg %p54
        %p128 = pneg %p51
        %p129 = pneg %p82
        %p130 = pneg %p79
        %s131 = sand.u32 %s69, 1
        %s132 = scalar_lea.sflag [#allocation8], %s131
        %s133 = sand.u32 %s69, 1
        %s134 = smul.addr %s133, 40
        %s135 = scalar_lea.vmem [#allocation9], %s134
        %s136 = smul.u32 5, %s31
        %p137 = scmp.lt.s32.totalorder %s31, 0
        %s138 = ssub.s32 0, %s31
        %s139 = scalar_select %p137, %s138, %s31
        %s140 = sand.u32 %s139, 1
        %s141 = ssub.s32 0, %s140
        %s142 = scalar_select %p137, %s141, %s140
        %p143 = scmp.ne.s32.totalorder %s142, 0
        %p144 = scmp.lt.s32.totalorder %s142, 0
        %p145 = pnand %p144, %p143
        %p146 = pneg %p145
        %s147 = sadd.s32 %s142, 2
        %s148 = scalar_select %p146, %s147, %s142
        %p149 = scmp.eq.s32.totalorder %s31, 0
        // Predicated region
        $region29: #{tpu_custom_call.1} parent=23 // pred_check
          %p150 = pneg %p149
        $region30: #{tpu_custom_call.1} parent=23 // pred_check_branch
          %152 = sbr.rel (%p150) target = $region32
        $region31: #{tpu_custom_call.1} parent=23 // pred_region
          %s153 = smul.u32 %s30, 80
          %s154 = sld [smem:[#allocation5 + %s153]]
          %s155 = scalar_lea.hbm %s1, %s154
          // Predicated region
          $region33: #{tpu_custom_call.1} parent=31 // pred_check
            _
          $region34: #{tpu_custom_call.1} parent=31 // pred_check_branch
            %157 = sbr.rel target = $region36
          $region35: #{tpu_custom_call.1} parent=31 // pred_region
            %158 = sst [smem:[#allocation12]] [#allocation11]
            %159 = sst [smem:[#allocation13]] [#allocation10]
          $region36: #{tpu_custom_call.1} parent=31 // pred_fallthru
            _
          %161 = shalt.err (0)
          %s163 = sshll.u32 %s155, 4
          %s164 = int_to_ptr.hbm [resolvable:$true] %s163
          %s165 = sshll.u32 [#allocation2], 4
          %s166 = int_to_ptr.vmem [resolvable:$true] %s165
          %168 = dma.hbm_to_vmem [thread:$0]  %s164, 16, %s166, [#allocation3]
          %s169 = sadd.s32 %s153, 1
          %s170 = sld [smem:[#allocation5 + %s169]]
          %s171 = scalar_lea.hbm %s1, %s170
          %s172 = scalar_lea.vmem [#allocation2], 1
          // Predicated region
          $region37: #{tpu_custom_call.1} parent=31 // pred_check
            _
          $region38: #{tpu_custom_call.1} parent=31 // pred_check_branch
            %174 = sbr.rel target = $region40
          $region39: #{tpu_custom_call.1} parent=31 // pred_region
            %175 = sst [smem:[#allocation12]] [#allocation15]
            %176 = sst [smem:[#allocation13]] [#allocation14]
          $region40: #{tpu_custom_call.1} parent=31 // pred_fallthru
            _
          %178 = shalt.err (0)
          %s180 = sshll.u32 %s171, 4
          %s181 = int_to_ptr.hbm [resolvable:$true] %s180
          %s182 = sshll.u32 %s172, 4
          %s183 = int_to_ptr.vmem [resolvable:$true] %s182
          %185 = dma.hbm_to_vmem [thread:$0]  %s181, 16, %s183, [#allocation3]
          %s186 = sadd.s32 %s153, 2
          %s187 = sld [smem:[#allocation5 + %s186]]
          %s188 = scalar_lea.hbm %s1, %s187
          %s189 = scalar_lea.vmem [#allocation2], 2
          // Predicated region
          $region41: #{tpu_custom_call.1} parent=31 // pred_check
            _
          $region42: #{tpu_custom_call.1} parent=31 // pred_check_branch
            %191 = sbr.rel target = $region44
          $region43: #{tpu_custom_call.1} parent=31 // pred_region
            %192 = sst [smem:[#allocation12]] [#allocation17]
            %193 = sst [smem:[#allocation13]] [#allocation16]
          $region44: #{tpu_custom_call.1} parent=31 // pred_fallthru
            _
          %195 = shalt.err (0)
          %s197 = sshll.u32 %s188, 4
          %s198 = int_to_ptr.hbm [resolvable:$true] %s197
          %s199 = sshll.u32 %s189, 4
          %s200 = int_to_ptr.vmem [resolvable:$true] %s199
          %202 = dma.hbm_to_vmem [thread:$0]  %s198, 16, %s200, [#allocation3]
          %s203 = sadd.s32 %s153, 3
          %s204 = sld [smem:[#allocation5 + %s203]]
          %s205 = scalar_lea.hbm %s1, %s204
          %s206 = scalar_lea.vmem [#allocation2], 3
          // Predicated region
          $region45: #{tpu_custom_call.1} parent=31 // pred_check
            _
          $region46: #{tpu_custom_call.1} parent=31 // pred_check_branch
            %208 = sbr.rel target = $region48
          $region47: #{tpu_custom_call.1} parent=31 // pred_region
            %209 = sst [smem:[#allocation12]] [#allocation19]
            %210 = sst [smem:[#allocation13]] [#allocation18]
          $region48: #{tpu_custom_call.1} parent=31 // pred_fallthru
            _
          %212 = shalt.err (0)
          %s214 = sshll.u32 %s205, 4
          %s215 = int_to_ptr.hbm [resolvable:$true] %s214
          %s216 = sshll.u32 %s206, 4
          %s217 = int_to_ptr.vmem [resolvable:$true] %s216
          %219 = dma.hbm_to_vmem [thread:$0]  %s215, 16, %s217, [#allocation3]
          %s220 = sadd.s32 %s153, 4
          %s221 = sld [smem:[#allocation5 + %s220]]
          %s222 = scalar_lea.hbm %s1, %s221
          %s223 = scalar_lea.vmem [#allocation2], 4
          // Predicated region
          $region49: #{tpu_custom_call.1} parent=31 // pred_check
            _
          $region50: #{tpu_custom_call.1} parent=31 // pred_check_branch
            %225 = sbr.rel target = $region52
          $region51: #{tpu_custom_call.1} parent=31 // pred_region
            %226 = sst [smem:[#allocation12]] [#allocation21]
            %227 = sst [smem:[#allocation13]] [#allocation20]
          $region52: #{tpu_custom_call.1} parent=31 // pred_fallthru
            _
          %229 = shalt.err (0)
          %s231 = sshll.u32 %s222, 4
          %s232 = int_to_ptr.hbm [resolvable:$true] %s231
          %s233 = sshll.u32 %s223, 4
          %s234 = int_to_ptr.vmem [resolvable:$true] %s233
          %236 = dma.hbm_to_vmem [thread:$0]  %s232, 16, %s234, [#allocation3]
          %s237 = sadd.s32 %s153, 5
          %s238 = sld [smem:[#allocation5 + %s237]]
          %s239 = scalar_lea.hbm %s1, %s238
          %s240 = scalar_lea.vmem [#allocation2], 5
          // Predicated region
          $region53: #{tpu_custom_call.1} parent=31 // pred_check
            _
          $region54: #{tpu_custom_call.1} parent=31 // pred_check_branch
            %242 = sbr.rel target = $region56
          $region55: #{tpu_custom_call.1} parent=31 // pred_region
            %243 = sst [smem:[#allocation12]] [#allocation23]
            %244 = sst [smem:[#allocation13]] [#allocation22]
          $region56: #{tpu_custom_call.1} parent=31 // pred_fallthru
            _
          %246 = shalt.err (0)
          %s248 = sshll.u32 %s239, 4
          %s249 = int_to_ptr.hbm [resolvable:$true] %s248
          %s250 = sshll.u32 %s240, 4
          %s251 = int_to_ptr.vmem [resolvable:$true] %s250
          %253 = dma.hbm_to_vmem [thread:$0]  %s249, 16, %s251, [#allocation3]
          %s254 = sadd.s32 %s153, 6
          %s255 = sld [smem:[#allocation5 + %s254]]
          %s256 = scalar_lea.hbm %s1, %s255
          %s257 = scalar_lea.vmem [#allocation2], 6
          // Predicated region
          $region57: #{tpu_custom_call.1} parent=31 // pred_check
            _
          $region58: #{tpu_custom_call.1} parent=31 // pred_check_branch
            %259 = sbr.rel target = $region60
          $region59: #{tpu_custom_call.1} parent=31 // pred_region
            %260 = sst [smem:[#allocation12]] [#allocation25]
            %261 = sst [smem:[#allocation13]] [#allocation24]
          $region60: #{tpu_custom_call.1} parent=31 // pred_fallthru
            _
          %263 = shalt.err (0)
          %s265 = sshll.u32 %s256, 4
          %s266 = int_to_ptr.hbm [resolvable:$true] %s265
          %s267 = sshll.u32 %s257, 4
          %s268 = int_to_ptr.vmem [resolvable:$true] %s267
          %270 = dma.hbm_to_vmem [thread:$0]  %s266, 16, %s268, [#allocation3]
          %s271 = sadd.s32 %s153, 7
          %s272 = sld [smem:[#allocation5 + %s271]]
          %s273 = scalar_lea.hbm %s1, %s272
          %s274 = scalar_lea.vmem [#allocation2], 7
          // Predicated region
          $region61: #{tpu_custom_call.1} parent=31 // pred_check
            _
          $region62: #{tpu_custom_call.1} parent=31 // pred_check_branch
            %276 = sbr.rel target = $region64
          $region63: #{tpu_custom_call.1} parent=31 // pred_region
            %277 = sst [smem:[#allocation12]] [#allocation27]
            %278 = sst [smem:[#allocation13]] [#allocation26]
          $region64: #{tpu_custom_call.1} parent=31 // pred_fallthru
            _
          %280 = shalt.err (0)
          %s282 = sshll.u32 %s273, 4
          %s283 = int_to_ptr.hbm [resolvable:$true] %s282
          %s284 = sshll.u32 %s274, 4
          %s285 = int_to_ptr.vmem [resolvable:$true] %s284
          %287 = dma.hbm_to_vmem [thread:$0]  %s283, 16, %s285, [#allocation3]
          %s288 = sadd.s32 %s153, 8
          %s289 = sld [smem:[#allocation5 + %s288]]
          %s290 = scalar_lea.hbm %s1, %s289
          %s291 = scalar_lea.vmem [#allocation2], 8
          // Predicated region
          $region65: #{tpu_custom_call.1} parent=31 // pred_check
            _
          $region66: #{tpu_custom_call.1} parent=31 // pred_check_branch
            %293 = sbr.rel target = $region68
          $region67: #{tpu_custom_call.1} parent=31 // pred_region
            %294 = sst [smem:[#allocation12]] [#allocation29]
            %295 = sst [smem:[#allocation13]] [#allocation28]
          $region68: #{tpu_custom_call.1} parent=31 // pred_fallthru
            _
          %297 = shalt.err (0)
          %s299 = sshll.u32 %s290, 4
          %s300 = int_to_ptr.hbm [resolvable:$true] %s299
          %s301 = sshll.u32 %s291, 4
          %s302 = int_to_ptr.vmem [resolvable:$true] %s301
          %304 = dma.hbm_to_vmem [thread:$0]  %s300, 16, %s302, [#allocation3]
          %s305 = sadd.s32 %s153, 9
          %s306 = sld [smem:[#allocation5 + %s305]]
          %s307 = scalar_lea.hbm %s1, %s306
          %s308 = scalar_lea.vmem [#allocation2], 9
          // Predicated region
          $region69: #{tpu_custom_call.1} parent=31 // pred_check
            _
          $region70: #{tpu_custom_call.1} parent=31 // pred_check_branch
            %310 = sbr.rel target = $region72
          $region71: #{tpu_custom_call.1} parent=31 // pred_region
            %311 = sst [smem:[#allocation12]] [#allocation31]
            %312 = sst [smem:[#allocation13]] [#allocation30]
          $region72: #{tpu_custom_call.1} parent=31 // pred_fallthru
            _
          %314 = shalt.err (0)
          %s316 = sshll.u32 %s307, 4
          %s317 = int_to_ptr.hbm [resolvable:$true] %s316
          %s318 = sshll.u32 %s308, 4
          %s319 = int_to_ptr.vmem [resolvable:$true] %s318
          %321 = dma.hbm_to_vmem [thread:$0]  %s317, 16, %s319, [#allocation3]
          %s322 = sadd.s32 %s153, 10
          %s323 = sld [smem:[#allocation5 + %s322]]
          %s324 = scalar_lea.hbm %s1, %s323
          %s325 = scalar_lea.vmem [#allocation2], 10
          // Predicated region
          $region73: #{tpu_custom_call.1} parent=31 // pred_check
            _
          $region74: #{tpu_custom_call.1} parent=31 // pred_check_branch
            %327 = sbr.rel target = $region76
          $region75: #{tpu_custom_call.1} parent=31 // pred_region
            %328 = sst [smem:[#allocation12]] [#allocation33]
            %329 = sst [smem:[#allocation13]] [#allocation32]
          $region76: #{tpu_custom_call.1} parent=31 // pred_fallthru
            _
          %331 = shalt.err (0)
          %s333 = sshll.u32 %s324, 4
          %s334 = int_to_ptr.hbm [resolvable:$true] %s333
          %s335 = sshll.u32 %s325, 4
          %s336 = int_to_ptr.vmem [resolvable:$true] %s335
          %338 = dma.hbm_to_vmem [thread:$0]  %s334, 16, %s336, [#allocation3]
          %s339 = sadd.s32 %s153, 11
          %s340 = sld [smem:[#allocation5 + %s339]]
          %s341 = scalar_lea.hbm %s1, %s340
          %s342 = scalar_lea.vmem [#allocation2], 11
          // Predicated region
          $region77: #{tpu_custom_call.1} parent=31 // pred_check
            _
          $region78: #{tpu_custom_call.1} parent=31 // pred_check_branch
            %344 = sbr.rel target = $region80
          $region79: #{tpu_custom_call.1} parent=31 // pred_region
            %345 = sst [smem:[#allocation12]] [#allocation35]
            %346 = sst [smem:[#allocation13]] [#allocation34]
          $region80: #{tpu_custom_call.1} parent=31 // pred_fallthru
            _
          %348 = shalt.err (0)
          %s350 = sshll.u32 %s341, 4
          %s351 = int_to_ptr.hbm [resolvable:$true] %s350
          %s352 = sshll.u32 %s342, 4
          %s353 = int_to_ptr.vmem [resolvable:$true] %s352
          %355 = dma.hbm_to_vmem [thread:$0]  %s351, 16, %s353, [#allocation3]
          %s356 = sadd.s32 %s153, 12
          %s357 = sld [smem:[#allocation5 + %s356]]
          %s358 = scalar_lea.hbm %s1, %s357
          %s359 = scalar_lea.vmem [#allocation2], 12
          // Predicated region
          $region81: #{tpu_custom_call.1} parent=31 // pred_check
            _
          $region82: #{tpu_custom_call.1} parent=31 // pred_check_branch
            %361 = sbr.rel target = $region84
          $region83: #{tpu_custom_call.1} parent=31 // pred_region
            %362 = sst [smem:[#allocation12]] [#allocation37]
            %363 = sst [smem:[#allocation13]] [#allocation36]
          $region84: #{tpu_custom_call.1} parent=31 // pred_fallthru
            _
          %365 = shalt.err (0)
          %s367 = sshll.u32 %s358, 4
          %s368 = int_to_ptr.hbm [resolvable:$true] %s367
          %s369 = sshll.u32 %s359, 4
          %s370 = int_to_ptr.vmem [resolvable:$true] %s369
          %372 = dma.hbm_to_vmem [thread:$0]  %s368, 16, %s370, [#allocation3]
          %s373 = sadd.s32 %s153, 13
          %s374 = sld [smem:[#allocation5 + %s373]]
          %s375 = scalar_lea.hbm %s1, %s374
          %s376 = scalar_lea.vmem [#allocation2], 13
          // Predicated region
          $region85: #{tpu_custom_call.1} parent=31 // pred_check
            _
          $region86: #{tpu_custom_call.1} parent=31 // pred_check_branch
            %378 = sbr.rel target = $region88
          $region87: #{tpu_custom_call.1} parent=31 // pred_region
            %379 = sst [smem:[#allocation12]] [#allocation39]
            %380 = sst [smem:[#allocation13]] [#allocation38]
          $region88: #{tpu_custom_call.1} parent=31 // pred_fallthru
            _
          %382 = shalt.err (0)
          %s384 = sshll.u32 %s375, 4
          %s385 = int_to_ptr.hbm [resolvable:$true] %s384
          %s386 = sshll.u32 %s376, 4
          %s387 = int_to_ptr.vmem [resolvable:$true] %s386
          %389 = dma.hbm_to_vmem [thread:$0]  %s385, 16, %s387, [#allocation3]
          %s390 = sadd.s32 %s153, 14
          %s391 = sld [smem:[#allocation5 + %s390]]
          %s392 = scalar_lea.hbm %s1, %s391
          %s393 = scalar_lea.vmem [#allocation2], 14
          // Predicated region
          $region89: #{tpu_custom_call.1} parent=31 // pred_check
            _
          $region90: #{tpu_custom_call.1} parent=31 // pred_check_branch
            %395 = sbr.rel target = $region92
          $region91: #{tpu_custom_call.1} parent=31 // pred_region
            %396 = sst [smem:[#allocation12]] [#allocation41]
            %397 = sst [smem:[#allocation13]] [#allocation40]
          $region92: #{tpu_custom_call.1} parent=31 // pred_fallthru
            _
          %399 = shalt.err (0)
          %s401 = sshll.u32 %s392, 4
          %s402 = int_to_ptr.hbm [resolvable:$true] %s401
          %s403 = sshll.u32 %s393, 4
          %s404 = int_to_ptr.vmem [resolvable:$true] %s403
          %406 = dma.hbm_to_vmem [thread:$0]  %s402, 16, %s404, [#allocation3]
          %s407 = sadd.s32 %s153, 15
          %s408 = sld [smem:[#allocation5 + %s407]]
          %s409 = scalar_lea.hbm %s1, %s408
          %s410 = scalar_lea.vmem [#allocation2], 15
          // Predicated region
          $region93: #{tpu_custom_call.1} parent=31 // pred_check
            _
          $region94: #{tpu_custom_call.1} parent=31 // pred_check_branch
            %412 = sbr.rel target = $region96
          $region95: #{tpu_custom_call.1} parent=31 // pred_region
            %413 = sst [smem:[#allocation12]] [#allocation43]
            %414 = sst [smem:[#allocation13]] [#allocation42]
          $region96: #{tpu_custom_call.1} parent=31 // pred_fallthru
            _
          %416 = shalt.err (0)
          %s418 = sshll.u32 %s409, 4
          %s419 = int_to_ptr.hbm [resolvable:$true] %s418
          %s420 = sshll.u32 %s410, 4
          %s421 = int_to_ptr.vmem [resolvable:$true] %s420
          %423 = dma.hbm_to_vmem [thread:$0]  %s419, 16, %s421, [#allocation3]
          %s424 = sadd.s32 %s153, 16
          %s425 = sld [smem:[#allocation5 + %s424]]
          %s426 = scalar_lea.hbm %s1, %s425
          %s427 = scalar_lea.vmem [#allocation2], 16
          // Predicated region
          $region97: #{tpu_custom_call.1} parent=31 // pred_check
            _
          $region98: #{tpu_custom_call.1} parent=31 // pred_check_branch
            %429 = sbr.rel target = $region100
          $region99: #{tpu_custom_call.1} parent=31 // pred_region
            %430 = sst [smem:[#allocation12]] [#allocation45]
            %431 = sst [smem:[#allocation13]] [#allocation44]
          $region100: #{tpu_custom_call.1} parent=31 // pred_fallthru
            _
          %433 = shalt.err (0)
          %s435 = sshll.u32 %s426, 4
          %s436 = int_to_ptr.hbm [resolvable:$true] %s435
          %s437 = sshll.u32 %s427, 4
          %s438 = int_to_ptr.vmem [resolvable:$true] %s437
          %440 = dma.hbm_to_vmem [thread:$0]  %s436, 16, %s438, [#allocation3]
          %s441 = sadd.s32 %s153, 17
          %s442 = sld [smem:[#allocation5 + %s441]]
          %s443 = scalar_lea.hbm %s1, %s442
          %s444 = scalar_lea.vmem [#allocation2], 17
          // Predicated region
          $region101: #{tpu_custom_call.1} parent=31 // pred_check
            _
          $region102: #{tpu_custom_call.1} parent=31 // pred_check_branch
            %446 = sbr.rel target = $region104
          $region103: #{tpu_custom_call.1} parent=31 // pred_region
            %447 = sst [smem:[#allocation12]] [#allocation47]
            %448 = sst [smem:[#allocation13]] [#allocation46]
          $region104: #{tpu_custom_call.1} parent=31 // pred_fallthru
            _
          %450 = shalt.err (0)
          %s452 = sshll.u32 %s443, 4
          %s453 = int_to_ptr.hbm [resolvable:$true] %s452
          %s454 = sshll.u32 %s444, 4
          %s455 = int_to_ptr.vmem [resolvable:$true] %s454
          %457 = dma.hbm_to_vmem [thread:$0]  %s453, 16, %s455, [#allocation3]
          %s458 = sadd.s32 %s153, 18
          %s459 = sld [smem:[#allocation5 + %s458]]
          %s460 = scalar_lea.hbm %s1, %s459
          %s461 = scalar_lea.vmem [#allocation2], 18
          // Predicated region
          $region105: #{tpu_custom_call.1} parent=31 // pred_check
            _
          $region106: #{tpu_custom_call.1} parent=31 // pred_check_branch
            %463 = sbr.rel target = $region108
          $region107: #{tpu_custom_call.1} parent=31 // pred_region
            %464 = sst [smem:[#allocation12]] [#allocation49]
            %465 = sst [smem:[#allocation13]] [#allocation48]
          $region108: #{tpu_custom_call.1} parent=31 // pred_fallthru
            _
          %467 = shalt.err (0)
          %s469 = sshll.u32 %s460, 4
          %s470 = int_to_ptr.hbm [resolvable:$true] %s469
          %s471 = sshll.u32 %s461, 4
          %s472 = int_to_ptr.vmem [resolvable:$true] %s471
          %474 = dma.hbm_to_vmem [thread:$0]  %s470, 16, %s472, [#allocation3]
          %s475 = sadd.s32 %s153, 19
          %s476 = sld [smem:[#allocation5 + %s475]]
          %s477 = scalar_lea.hbm %s1, %s476
          %s478 = scalar_lea.vmem [#allocation2], 19
          // Predicated region
          $region109: #{tpu_custom_call.1} parent=31 // pred_check
            _
          $region110: #{tpu_custom_call.1} parent=31 // pred_check_branch
            %480 = sbr.rel target = $region112
          $region111: #{tpu_custom_call.1} parent=31 // pred_region
            %481 = sst [smem:[#allocation12]] [#allocation51]
            %482 = sst [smem:[#allocation13]] [#allocation50]
          $region112: #{tpu_custom_call.1} parent=31 // pred_fallthru
            _
          %484 = shalt.err (0)
          %s486 = sshll.u32 %s477, 4
          %s487 = int_to_ptr.hbm [resolvable:$true] %s486
          %s488 = sshll.u32 %s478, 4
          %s489 = int_to_ptr.vmem [resolvable:$true] %s488
          %491 = dma.hbm_to_vmem [thread:$0]  %s487, 16, %s489, [#allocation3]
          %s492 = sadd.s32 %s153, 20
          %s493 = sld [smem:[#allocation5 + %s492]]
          %s494 = scalar_lea.hbm %s1, %s493
          %s495 = scalar_lea.vmem [#allocation2], 20
          // Predicated region
          $region113: #{tpu_custom_call.1} parent=31 // pred_check
            _
          $region114: #{tpu_custom_call.1} parent=31 // pred_check_branch
            %497 = sbr.rel target = $region116
          $region115: #{tpu_custom_call.1} parent=31 // pred_region
            %498 = sst [smem:[#allocation12]] [#allocation53]
            %499 = sst [smem:[#allocation13]] [#allocation52]
          $region116: #{tpu_custom_call.1} parent=31 // pred_fallthru
            _
          %501 = shalt.err (0)
          %s503 = sshll.u32 %s494, 4
          %s504 = int_to_ptr.hbm [resolvable:$true] %s503
          %s505 = sshll.u32 %s495, 4
          %s506 = int_to_ptr.vmem [resolvable:$true] %s505
          %508 = dma.hbm_to_vmem [thread:$0]  %s504, 16, %s506, [#allocation3]
          %s509 = sadd.s32 %s153, 21
          %s510 = sld [smem:[#allocation5 + %s509]]
          %s511 = scalar_lea.hbm %s1, %s510
          %s512 = scalar_lea.vmem [#allocation2], 21
          // Predicated region
          $region117: #{tpu_custom_call.1} parent=31 // pred_check
            _
          $region118: #{tpu_custom_call.1} parent=31 // pred_check_branch
            %514 = sbr.rel target = $region120
          $region119: #{tpu_custom_call.1} parent=31 // pred_region
            %515 = sst [smem:[#allocation12]] [#allocation55]
            %516 = sst [smem:[#allocation13]] [#allocation54]
          $region120: #{tpu_custom_call.1} parent=31 // pred_fallthru
            _
          %518 = shalt.err (0)
          %s520 = sshll.u32 %s511, 4
          %s521 = int_to_ptr.hbm [resolvable:$true] %s520
          %s522 = sshll.u32 %s512, 4
          %s523 = int_to_ptr.vmem [resolvable:$true] %s522
          %525 = dma.hbm_to_vmem [thread:$0]  %s521, 16, %s523, [#allocation3]
          %s526 = sadd.s32 %s153, 22
          %s527 = sld [smem:[#allocation5 + %s526]]
          %s528 = scalar_lea.hbm %s1, %s527
          %s529 = scalar_lea.vmem [#allocation2], 22
          // Predicated region
          $region121: #{tpu_custom_call.1} parent=31 // pred_check
            _
          $region122: #{tpu_custom_call.1} parent=31 // pred_check_branch
            %531 = sbr.rel target = $region124
          $region123: #{tpu_custom_call.1} parent=31 // pred_region
            %532 = sst [smem:[#allocation12]] [#allocation57]
            %533 = sst [smem:[#allocation13]] [#allocation56]
          $region124: #{tpu_custom_call.1} parent=31 // pred_fallthru
            _
          %535 = shalt.err (0)
          %s537 = sshll.u32 %s528, 4
          %s538 = int_to_ptr.hbm [resolvable:$true] %s537
          %s539 = sshll.u32 %s529, 4
          %s540 = int_to_ptr.vmem [resolvable:$true] %s539
          %542 = dma.hbm_to_vmem [thread:$0]  %s538, 16, %s540, [#allocation3]
          %s543 = sadd.s32 %s153, 23
          %s544 = sld [smem:[#allocation5 + %s543]]
          %s545 = scalar_lea.hbm %s1, %s544
          %s546 = scalar_lea.vmem [#allocation2], 23
          // Predicated region
          $region125: #{tpu_custom_call.1} parent=31 // pred_check
            _
          $region126: #{tpu_custom_call.1} parent=31 // pred_check_branch
            %548 = sbr.rel target = $region128
          $region127: #{tpu_custom_call.1} parent=31 // pred_region
            %549 = sst [smem:[#allocation12]] [#allocation59]
            %550 = sst [smem:[#allocation13]] [#allocation58]
          $region128: #{tpu_custom_call.1} parent=31 // pred_fallthru
            _
          %552 = shalt.err (0)
          %s554 = sshll.u32 %s545, 4
          %s555 = int_to_ptr.hbm [resolvable:$true] %s554
          %s556 = sshll.u32 %s546, 4
          %s557 = int_to_ptr.vmem [resolvable:$true] %s556
          %559 = dma.hbm_to_vmem [thread:$0]  %s555, 16, %s557, [#allocation3]
          %s560 = sadd.s32 %s153, 24
          %s561 = sld [smem:[#allocation5 + %s560]]
          %s562 = scalar_lea.hbm %s1, %s561
          %s563 = scalar_lea.vmem [#allocation2], 24
          // Predicated region
          $region129: #{tpu_custom_call.1} parent=31 // pred_check
            _
          $region130: #{tpu_custom_call.1} parent=31 // pred_check_branch
            %565 = sbr.rel target = $region132
          $region131: #{tpu_custom_call.1} parent=31 // pred_region
            %566 = sst [smem:[#allocation12]] [#allocation61]
            %567 = sst [smem:[#allocation13]] [#allocation60]
          $region132: #{tpu_custom_call.1} parent=31 // pred_fallthru
            _
          %569 = shalt.err (0)
          %s571 = sshll.u32 %s562, 4
          %s572 = int_to_ptr.hbm [resolvable:$true] %s571
          %s573 = sshll.u32 %s563, 4
          %s574 = int_to_ptr.vmem [resolvable:$true] %s573
          %576 = dma.hbm_to_vmem [thread:$0]  %s572, 16, %s574, [#allocation3]
          %s577 = sadd.s32 %s153, 25
          %s578 = sld [smem:[#allocation5 + %s577]]
          %s579 = scalar_lea.hbm %s1, %s578
          %s580 = scalar_lea.vmem [#allocation2], 25
          // Predicated region
          $region133: #{tpu_custom_call.1} parent=31 // pred_check
            _
          $region134: #{tpu_custom_call.1} parent=31 // pred_check_branch
            %582 = sbr.rel target = $region136
          $region135: #{tpu_custom_call.1} parent=31 // pred_region
            %583 = sst [smem:[#allocation12]] [#allocation63]
            %584 = sst [smem:[#allocation13]] [#allocation62]
          $region136: #{tpu_custom_call.1} parent=31 // pred_fallthru
            _
          %586 = shalt.err (0)
          %s588 = sshll.u32 %s579, 4
          %s589 = int_to_ptr.hbm [resolvable:$true] %s588
          %s590 = sshll.u32 %s580, 4
          %s591 = int_to_ptr.vmem [resolvable:$true] %s590
          %593 = dma.hbm_to_vmem [thread:$0]  %s589, 16, %s591, [#allocation3]
          %s594 = sadd.s32 %s153, 26
          %s595 = sld [smem:[#allocation5 + %s594]]
          %s596 = scalar_lea.hbm %s1, %s595
          %s597 = scalar_lea.vmem [#allocation2], 26
          // Predicated region
          $region137: #{tpu_custom_call.1} parent=31 // pred_check
            _
          $region138: #{tpu_custom_call.1} parent=31 // pred_check_branch
            %599 = sbr.rel target = $region140
          $region139: #{tpu_custom_call.1} parent=31 // pred_region
            %600 = sst [smem:[#allocation12]] [#allocation65]
            %601 = sst [smem:[#allocation13]] [#allocation64]
          $region140: #{tpu_custom_call.1} parent=31 // pred_fallthru
            _
          %603 = shalt.err (0)
          %s605 = sshll.u32 %s596, 4
          %s606 = int_to_ptr.hbm [resolvable:$true] %s605
          %s607 = sshll.u32 %s597, 4
          %s608 = int_to_ptr.vmem [resolvable:$true] %s607
          %610 = dma.hbm_to_vmem [thread:$0]  %s606, 16, %s608, [#allocation3]
          %s611 = sadd.s32 %s153, 27
          %s612 = sld [smem:[#allocation5 + %s611]]
          %s613 = scalar_lea.hbm %s1, %s612
          %s614 = scalar_lea.vmem [#allocation2], 27
          // Predicated region
          $region141: #{tpu_custom_call.1} parent=31 // pred_check
            _
          $region142: #{tpu_custom_call.1} parent=31 // pred_check_branch
            %616 = sbr.rel target = $region144
          $region143: #{tpu_custom_call.1} parent=31 // pred_region
            %617 = sst [smem:[#allocation12]] [#allocation67]
            %618 = sst [smem:[#allocation13]] [#allocation66]
          $region144: #{tpu_custom_call.1} parent=31 // pred_fallthru
            _
          %620 = shalt.err (0)
          %s622 = sshll.u32 %s613, 4
          %s623 = int_to_ptr.hbm [resolvable:$true] %s622
          %s624 = sshll.u32 %s614, 4
          %s625 = int_to_ptr.vmem [resolvable:$true] %s624
          %627 = dma.hbm_to_vmem [thread:$0]  %s623, 16, %s625, [#allocation3]
          %s628 = sadd.s32 %s153, 28
          %s629 = sld [smem:[#allocation5 + %s628]]
          %s630 = scalar_lea.hbm %s1, %s629
          %s631 = scalar_lea.vmem [#allocation2], 28
          // Predicated region
          $region145: #{tpu_custom_call.1} parent=31 // pred_check
            _
          $region146: #{tpu_custom_call.1} parent=31 // pred_check_branch
            %633 = sbr.rel target = $region148
          $region147: #{tpu_custom_call.1} parent=31 // pred_region
            %634 = sst [smem:[#allocation12]] [#allocation69]
            %635 = sst [smem:[#allocation13]] [#allocation68]
          $region148: #{tpu_custom_call.1} parent=31 // pred_fallthru
            _
          %637 = shalt.err (0)
          %s639 = sshll.u32 %s630, 4
          %s640 = int_to_ptr.hbm [resolvable:$true] %s639
          %s641 = sshll.u32 %s631, 4
          %s642 = int_to_ptr.vmem [resolvable:$true] %s641
          %644 = dma.hbm_to_vmem [thread:$0]  %s640, 16, %s642, [#allocation3]
          %s645 = sadd.s32 %s153, 29
          %s646 = sld [smem:[#allocation5 + %s645]]
          %s647 = scalar_lea.hbm %s1, %s646
          %s648 = scalar_lea.vmem [#allocation2], 29
          // Predicated region
          $region149: #{tpu_custom_call.1} parent=31 // pred_check
            _
          $region150: #{tpu_custom_call.1} parent=31 // pred_check_branch
            %650 = sbr.rel target = $region152
          $region151: #{tpu_custom_call.1} parent=31 // pred_region
            %651 = sst [smem:[#allocation12]] [#allocation71]
            %652 = sst [smem:[#allocation13]] [#allocation70]
          $region152: #{tpu_custom_call.1} parent=31 // pred_fallthru
            _
          %654 = shalt.err (0)
          %s656 = sshll.u32 %s647, 4
          %s657 = int_to_ptr.hbm [resolvable:$true] %s656
          %s658 = sshll.u32 %s648, 4
          %s659 = int_to_ptr.vmem [resolvable:$true] %s658
          %661 = dma.hbm_to_vmem [thread:$0]  %s657, 16, %s659, [#allocation3]
          %s662 = sadd.s32 %s153, 30
          %s663 = sld [smem:[#allocation5 + %s662]]
          %s664 = scalar_lea.hbm %s1, %s663
          %s665 = scalar_lea.vmem [#allocation2], 30
          // Predicated region
          $region153: #{tpu_custom_call.1} parent=31 // pred_check
            _
          $region154: #{tpu_custom_call.1} parent=31 // pred_check_branch
            %667 = sbr.rel target = $region156
          $region155: #{tpu_custom_call.1} parent=31 // pred_region
            %668 = sst [smem:[#allocation12]] [#allocation73]
            %669 = sst [smem:[#allocation13]] [#allocation72]
          $region156: #{tpu_custom_call.1} parent=31 // pred_fallthru
            _
          %671 = shalt.err (0)
          %s673 = sshll.u32 %s664, 4
          %s674 = int_to_ptr.hbm [resolvable:$true] %s673
          %s675 = sshll.u32 %s665, 4
          %s676 = int_to_ptr.vmem [resolvable:$true] %s675
          %678 = dma.hbm_to_vmem [thread:$0]  %s674, 16, %s676, [#allocation3]
          %s679 = sadd.s32 %s153, 31
          %s680 = sld [smem:[#allocation5 + %s679]]
          %s681 = scalar_lea.hbm %s1, %s680
          %s682 = scalar_lea.vmem [#allocation2], 31
          // Predicated region
          $region157: #{tpu_custom_call.1} parent=31 // pred_check
            _
          $region158: #{tpu_custom_call.1} parent=31 // pred_check_branch
            %684 = sbr.rel target = $region160
          $region159: #{tpu_custom_call.1} parent=31 // pred_region
            %685 = sst [smem:[#allocation12]] [#allocation75]
            %686 = sst [smem:[#allocation13]] [#allocation74]
          $region160: #{tpu_custom_call.1} parent=31 // pred_fallthru
            _
          %688 = shalt.err (0)
          %s690 = sshll.u32 %s681, 4
          %s691 = int_to_ptr.hbm [resolvable:$true] %s690
          %s692 = sshll.u32 %s682, 4
          %s693 = int_to_ptr.vmem [resolvable:$true] %s692
          %695 = dma.hbm_to_vmem [thread:$0]  %s691, 16, %s693, [#allocation3]
          %s696 = sadd.s32 %s153, 32
          %s697 = sld [smem:[#allocation5 + %s696]]
          %s698 = scalar_lea.hbm %s1, %s697
          %s699 = scalar_lea.vmem [#allocation2], 32
          // Predicated region
          $region161: #{tpu_custom_call.1} parent=31 // pred_check
            _
          $region162: #{tpu_custom_call.1} parent=31 // pred_check_branch
            %701 = sbr.rel target = $region164
          $region163: #{tpu_custom_call.1} parent=31 // pred_region
            %702 = sst [smem:[#allocation12]] [#allocation77]
            %703 = sst [smem:[#allocation13]] [#allocation76]
          $region164: #{tpu_custom_call.1} parent=31 // pred_fallthru
            _
          %705 = shalt.err (0)
          %s707 = sshll.u32 %s698, 4
          %s708 = int_to_ptr.hbm [resolvable:$true] %s707
          %s709 = sshll.u32 %s699, 4
          %s710 = int_to_ptr.vmem [resolvable:$true] %s709
          %712 = dma.hbm_to_vmem [thread:$0]  %s708, 16, %s710, [#allocation3]
          %s713 = sadd.s32 %s153, 33
          %s714 = sld [smem:[#allocation5 + %s713]]
          %s715 = scalar_lea.hbm %s1, %s714
          %s716 = scalar_lea.vmem [#allocation2], 33
          // Predicated region
          $region165: #{tpu_custom_call.1} parent=31 // pred_check
            _
          $region166: #{tpu_custom_call.1} parent=31 // pred_check_branch
            %718 = sbr.rel target = $region168
          $region167: #{tpu_custom_call.1} parent=31 // pred_region
            %719 = sst [smem:[#allocation12]] [#allocation79]
            %720 = sst [smem:[#allocation13]] [#allocation78]
          $region168: #{tpu_custom_call.1} parent=31 // pred_fallthru
            _
          %722 = shalt.err (0)
          %s724 = sshll.u32 %s715, 4
          %s725 = int_to_ptr.hbm [resolvable:$true] %s724
          %s726 = sshll.u32 %s716, 4
          %s727 = int_to_ptr.vmem [resolvable:$true] %s726
          %729 = dma.hbm_to_vmem [thread:$0]  %s725, 16, %s727, [#allocation3]
          %s730 = sadd.s32 %s153, 34
          %s731 = sld [smem:[#allocation5 + %s730]]
          %s732 = scalar_lea.hbm %s1, %s731
          %s733 = scalar_lea.vmem [#allocation2], 34
          // Predicated region
          $region169: #{tpu_custom_call.1} parent=31 // pred_check
            _
          $region170: #{tpu_custom_call.1} parent=31 // pred_check_branch
            %735 = sbr.rel target = $region172
          $region171: #{tpu_custom_call.1} parent=31 // pred_region
            %736 = sst [smem:[#allocation12]] [#allocation81]
            %737 = sst [smem:[#allocation13]] [#allocation80]
          $region172: #{tpu_custom_call.1} parent=31 // pred_fallthru
            _
          %739 = shalt.err (0)
          %s741 = sshll.u32 %s732, 4
          %s742 = int_to_ptr.hbm [resolvable:$true] %s741
          %s743 = sshll.u32 %s733, 4
          %s744 = int_to_ptr.vmem [resolvable:$true] %s743
          %746 = dma.hbm_to_vmem [thread:$0]  %s742, 16, %s744, [#allocation3]
          %s747 = sadd.s32 %s153, 35
          %s748 = sld [smem:[#allocation5 + %s747]]
          %s749 = scalar_lea.hbm %s1, %s748
          %s750 = scalar_lea.vmem [#allocation2], 35
          // Predicated region
          $region173: #{tpu_custom_call.1} parent=31 // pred_check
            _
          $region174: #{tpu_custom_call.1} parent=31 // pred_check_branch
            %752 = sbr.rel target = $region176
          $region175: #{tpu_custom_call.1} parent=31 // pred_region
            %753 = sst [smem:[#allocation12]] [#allocation83]
            %754 = sst [smem:[#allocation13]] [#allocation82]
          $region176: #{tpu_custom_call.1} parent=31 // pred_fallthru
            _
          %756 = shalt.err (0)
          %s758 = sshll.u32 %s749, 4
          %s759 = int_to_ptr.hbm [resolvable:$true] %s758
          %s760 = sshll.u32 %s750, 4
          %s761 = int_to_ptr.vmem [resolvable:$true] %s760
          %763 = dma.hbm_to_vmem [thread:$0]  %s759, 16, %s761, [#allocation3]
          %s764 = sadd.s32 %s153, 36
          %s765 = sld [smem:[#allocation5 + %s764]]
          %s766 = scalar_lea.hbm %s1, %s765
          %s767 = scalar_lea.vmem [#allocation2], 36
          // Predicated region
          $region177: #{tpu_custom_call.1} parent=31 // pred_check
            _
          $region178: #{tpu_custom_call.1} parent=31 // pred_check_branch
            %769 = sbr.rel target = $region180
          $region179: #{tpu_custom_call.1} parent=31 // pred_region
            %770 = sst [smem:[#allocation12]] [#allocation85]
            %771 = sst [smem:[#allocation13]] [#allocation84]
          $region180: #{tpu_custom_call.1} parent=31 // pred_fallthru
            _
          %773 = shalt.err (0)
          %s775 = sshll.u32 %s766, 4
          %s776 = int_to_ptr.hbm [resolvable:$true] %s775
          %s777 = sshll.u32 %s767, 4
          %s778 = int_to_ptr.vmem [resolvable:$true] %s777
          %780 = dma.hbm_to_vmem [thread:$0]  %s776, 16, %s778, [#allocation3]
          %s781 = sadd.s32 %s153, 37
          %s782 = sld [smem:[#allocation5 + %s781]]
          %s783 = scalar_lea.hbm %s1, %s782
          %s784 = scalar_lea.vmem [#allocation2], 37
          // Predicated region
          $region181: #{tpu_custom_call.1} parent=31 // pred_check
            _
          $region182: #{tpu_custom_call.1} parent=31 // pred_check_branch
            %786 = sbr.rel target = $region184
          $region183: #{tpu_custom_call.1} parent=31 // pred_region
            %787 = sst [smem:[#allocation12]] [#allocation87]
            %788 = sst [smem:[#allocation13]] [#allocation86]
          $region184: #{tpu_custom_call.1} parent=31 // pred_fallthru
            _
          %790 = shalt.err (0)
          %s792 = sshll.u32 %s783, 4
          %s793 = int_to_ptr.hbm [resolvable:$true] %s792
          %s794 = sshll.u32 %s784, 4
          %s795 = int_to_ptr.vmem [resolvable:$true] %s794
          %797 = dma.hbm_to_vmem [thread:$0]  %s793, 16, %s795, [#allocation3]
          %s798 = sadd.s32 %s153, 38
          %s799 = sld [smem:[#allocation5 + %s798]]
          %s800 = scalar_lea.hbm %s1, %s799
          %s801 = scalar_lea.vmem [#allocation2], 38
          // Predicated region
          $region185: #{tpu_custom_call.1} parent=31 // pred_check
            _
          $region186: #{tpu_custom_call.1} parent=31 // pred_check_branch
            %803 = sbr.rel target = $region188
          $region187: #{tpu_custom_call.1} parent=31 // pred_region
            %804 = sst [smem:[#allocation12]] [#allocation89]
            %805 = sst [smem:[#allocation13]] [#allocation88]
          $region188: #{tpu_custom_call.1} parent=31 // pred_fallthru
            _
          %807 = shalt.err (0)
          %s809 = sshll.u32 %s800, 4
          %s810 = int_to_ptr.hbm [resolvable:$true] %s809
          %s811 = sshll.u32 %s801, 4
          %s812 = int_to_ptr.vmem [resolvable:$true] %s811
          %814 = dma.hbm_to_vmem [thread:$0]  %s810, 16, %s812, [#allocation3]
          %s815 = sadd.s32 %s153, 39
          %s816 = sld [smem:[#allocation5 + %s815]]
          %s817 = scalar_lea.hbm %s1, %s816
          %s818 = scalar_lea.vmem [#allocation2], 39
          // Predicated region
          $region189: #{tpu_custom_call.1} parent=31 // pred_check
            _
          $region190: #{tpu_custom_call.1} parent=31 // pred_check_branch
            %820 = sbr.rel target = $region192
          $region191: #{tpu_custom_call.1} parent=31 // pred_region
            %821 = sst [smem:[#allocation12]] [#allocation91]
            %822 = sst [smem:[#allocation13]] [#allocation90]
          $region192: #{tpu_custom_call.1} parent=31 // pred_fallthru
            _
          %824 = shalt.err (0)
          %s826 = sshll.u32 %s817, 4
          %s827 = int_to_ptr.hbm [resolvable:$true] %s826
          %s828 = sshll.u32 %s818, 4
          %s829 = int_to_ptr.vmem [resolvable:$true] %s828
          %831 = dma.hbm_to_vmem [thread:$0]  %s827, 16, %s829, [#allocation3]
        $region32: #{tpu_custom_call.1} parent=23 // pred_fallthru
          _
        %s832 = sadd.s32 %s31, 1
        %p833 = scmp.lt.s32.totalorder %s832, 2
        // Predicated region
        $region193: #{tpu_custom_call.1} parent=23 // pred_check
          %p834 = pneg %p833
        $region194: #{tpu_custom_call.1} parent=23 // pred_check_branch
          %836 = sbr.rel (%p834) target = $region196
        $region195: #{tpu_custom_call.1} parent=23 // pred_region
          %s837 = ssub.s32 1, %s148
          %s838 = smul.u32 %s30, 80
          %s839 = smul.u32 %s832, 40
          %s840 = sadd.s32 %s838, %s839
          %s841 = sld [smem:[#allocation5 + %s840]]
          %s842 = scalar_lea.hbm %s1, %s841
          %s843 = smul.u32 %s837, 40
          %s844 = scalar_lea.vmem [#allocation2], %s843
          %s845 = scalar_lea.sflag [#allocation3], %s837
          // Predicated region
          $region197: #{tpu_custom_call.1} parent=195 // pred_check
            _
          $region198: #{tpu_custom_call.1} parent=195 // pred_check_branch
            %847 = sbr.rel target = $region200
          $region199: #{tpu_custom_call.1} parent=195 // pred_region
            %848 = sst [smem:[#allocation12]] [#allocation93]
            %849 = sst [smem:[#allocation13]] [#allocation92]
          $region200: #{tpu_custom_call.1} parent=195 // pred_fallthru
            _
          %851 = shalt.err (0)
          %s853 = sshll.u32 %s842, 4
          %s854 = int_to_ptr.hbm [resolvable:$true] %s853
          %s855 = sshll.u32 %s844, 4
          %s856 = int_to_ptr.vmem [resolvable:$true] %s855
          %858 = dma.hbm_to_vmem [thread:$0]  %s854, 16, %s856, %s845
          %s859 = sadd.s32 %s840, 1
          %s860 = sld [smem:[#allocation5 + %s859]]
          %s861 = scalar_lea.hbm %s1, %s860
          %s862 = sadd.s32 1, %s843
          %s863 = scalar_lea.vmem [#allocation2], %s862
          // Predicated region
          $region201: #{tpu_custom_call.1} parent=195 // pred_check
            _
          $region202: #{tpu_custom_call.1} parent=195 // pred_check_branch
            %865 = sbr.rel target = $region204
          $region203: #{tpu_custom_call.1} parent=195 // pred_region
            %866 = sst [smem:[#allocation12]] [#allocation95]
            %867 = sst [smem:[#allocation13]] [#allocation94]
          $region204: #{tpu_custom_call.1} parent=195 // pred_fallthru
            _
          %869 = shalt.err (0)
          %s871 = sshll.u32 %s861, 4
          %s872 = int_to_ptr.hbm [resolvable:$true] %s871
          %s873 = sshll.u32 %s863, 4
          %s874 = int_to_ptr.vmem [resolvable:$true] %s873
          %876 = dma.hbm_to_vmem [thread:$0]  %s872, 16, %s874, %s845
          %s877 = sadd.s32 %s840, 2
          %s878 = sld [smem:[#allocation5 + %s877]]
          %s879 = scalar_lea.hbm %s1, %s878
          %s880 = sadd.s32 2, %s843
          %s881 = scalar_lea.vmem [#allocation2], %s880
          // Predicated region
          $region205: #{tpu_custom_call.1} parent=195 // pred_check
            _
          $region206: #{tpu_custom_call.1} parent=195 // pred_check_branch
            %883 = sbr.rel target = $region208
          $region207: #{tpu_custom_call.1} parent=195 // pred_region
            %884 = sst [smem:[#allocation12]] [#allocation97]
            %885 = sst [smem:[#allocation13]] [#allocation96]
          $region208: #{tpu_custom_call.1} parent=195 // pred_fallthru
            _
          %887 = shalt.err (0)
          %s889 = sshll.u32 %s879, 4
          %s890 = int_to_ptr.hbm [resolvable:$true] %s889
          %s891 = sshll.u32 %s881, 4
          %s892 = int_to_ptr.vmem [resolvable:$true] %s891
          %894 = dma.hbm_to_vmem [thread:$0]  %s890, 16, %s892, %s845
          %s895 = sadd.s32 %s840, 3
          %s896 = sld [smem:[#allocation5 + %s895]]
          %s897 = scalar_lea.hbm %s1, %s896
          %s898 = sadd.s32 3, %s843
          %s899 = scalar_lea.vmem [#allocation2], %s898
          // Predicated region
          $region209: #{tpu_custom_call.1} parent=195 // pred_check
            _
          $region210: #{tpu_custom_call.1} parent=195 // pred_check_branch
            %901 = sbr.rel target = $region212
          $region211: #{tpu_custom_call.1} parent=195 // pred_region
            %902 = sst [smem:[#allocation12]] [#allocation99]
            %903 = sst [smem:[#allocation13]] [#allocation98]
          $region212: #{tpu_custom_call.1} parent=195 // pred_fallthru
            _
          %905 = shalt.err (0)
          %s907 = sshll.u32 %s897, 4
          %s908 = int_to_ptr.hbm [resolvable:$true] %s907
          %s909 = sshll.u32 %s899, 4
          %s910 = int_to_ptr.vmem [resolvable:$true] %s909
          %912 = dma.hbm_to_vmem [thread:$0]  %s908, 16, %s910, %s845
          %s913 = sadd.s32 %s840, 4
          %s914 = sld [smem:[#allocation5 + %s913]]
          %s915 = scalar_lea.hbm %s1, %s914
          %s916 = sadd.s32 4, %s843
          %s917 = scalar_lea.vmem [#allocation2], %s916
          // Predicated region
          $region213: #{tpu_custom_call.1} parent=195 // pred_check
            _
          $region214: #{tpu_custom_call.1} parent=195 // pred_check_branch
            %919 = sbr.rel target = $region216
          $region215: #{tpu_custom_call.1} parent=195 // pred_region
            %920 = sst [smem:[#allocation12]] [#allocation101]
            %921 = sst [smem:[#allocation13]] [#allocation100]
          $region216: #{tpu_custom_call.1} parent=195 // pred_fallthru
            _
          %923 = shalt.err (0)
          %s925 = sshll.u32 %s915, 4
          %s926 = int_to_ptr.hbm [resolvable:$true] %s925
          %s927 = sshll.u32 %s917, 4
          %s928 = int_to_ptr.vmem [resolvable:$true] %s927
          %930 = dma.hbm_to_vmem [thread:$0]  %s926, 16, %s928, %s845
          %s931 = sadd.s32 %s840, 5
          %s932 = sld [smem:[#allocation5 + %s931]]
          %s933 = scalar_lea.hbm %s1, %s932
          %s934 = sadd.s32 5, %s843
          %s935 = scalar_lea.vmem [#allocation2], %s934
          // Predicated region
          $region217: #{tpu_custom_call.1} parent=195 // pred_check
            _
          $region218: #{tpu_custom_call.1} parent=195 // pred_check_branch
            %937 = sbr.rel target = $region220
          $region219: #{tpu_custom_call.1} parent=195 // pred_region
            %938 = sst [smem:[#allocation12]] [#allocation103]
            %939 = sst [smem:[#allocation13]] [#allocation102]
          $region220: #{tpu_custom_call.1} parent=195 // pred_fallthru
            _
          %941 = shalt.err (0)
          %s943 = sshll.u32 %s933, 4
          %s944 = int_to_ptr.hbm [resolvable:$true] %s943
          %s945 = sshll.u32 %s935, 4
          %s946 = int_to_ptr.vmem [resolvable:$true] %s945
          %948 = dma.hbm_to_vmem [thread:$0]  %s944, 16, %s946, %s845
          %s949 = sadd.s32 %s840, 6
          %s950 = sld [smem:[#allocation5 + %s949]]
          %s951 = scalar_lea.hbm %s1, %s950
          %s952 = sadd.s32 6, %s843
          %s953 = scalar_lea.vmem [#allocation2], %s952
          // Predicated region
          $region221: #{tpu_custom_call.1} parent=195 // pred_check
            _
          $region222: #{tpu_custom_call.1} parent=195 // pred_check_branch
            %955 = sbr.rel target = $region224
          $region223: #{tpu_custom_call.1} parent=195 // pred_region
            %956 = sst [smem:[#allocation12]] [#allocation105]
            %957 = sst [smem:[#allocation13]] [#allocation104]
          $region224: #{tpu_custom_call.1} parent=195 // pred_fallthru
            _
          %959 = shalt.err (0)
          %s961 = sshll.u32 %s951, 4
          %s962 = int_to_ptr.hbm [resolvable:$true] %s961
          %s963 = sshll.u32 %s953, 4
          %s964 = int_to_ptr.vmem [resolvable:$true] %s963
          %966 = dma.hbm_to_vmem [thread:$0]  %s962, 16, %s964, %s845
          %s967 = sadd.s32 %s840, 7
          %s968 = sld [smem:[#allocation5 + %s967]]
          %s969 = scalar_lea.hbm %s1, %s968
          %s970 = sadd.s32 7, %s843
          %s971 = scalar_lea.vmem [#allocation2], %s970
          // Predicated region
          $region225: #{tpu_custom_call.1} parent=195 // pred_check
            _
          $region226: #{tpu_custom_call.1} parent=195 // pred_check_branch
            %973 = sbr.rel target = $region228
          $region227: #{tpu_custom_call.1} parent=195 // pred_region
            %974 = sst [smem:[#allocation12]] [#allocation107]
            %975 = sst [smem:[#allocation13]] [#allocation106]
          $region228: #{tpu_custom_call.1} parent=195 // pred_fallthru
            _
          %977 = shalt.err (0)
          %s979 = sshll.u32 %s969, 4
          %s980 = int_to_ptr.hbm [resolvable:$true] %s979
          %s981 = sshll.u32 %s971, 4
          %s982 = int_to_ptr.vmem [resolvable:$true] %s981
          %984 = dma.hbm_to_vmem [thread:$0]  %s980, 16, %s982, %s845
          %s985 = sadd.s32 %s840, 8
          %s986 = sld [smem:[#allocation5 + %s985]]
          %s987 = scalar_lea.hbm %s1, %s986
          %s988 = sadd.s32 8, %s843
          %s989 = scalar_lea.vmem [#allocation2], %s988
          // Predicated region
          $region229: #{tpu_custom_call.1} parent=195 // pred_check
            _
          $region230: #{tpu_custom_call.1} parent=195 // pred_check_branch
            %991 = sbr.rel target = $region232
          $region231: #{tpu_custom_call.1} parent=195 // pred_region
            %992 = sst [smem:[#allocation12]] [#allocation109]
            %993 = sst [smem:[#allocation13]] [#allocation108]
          $region232: #{tpu_custom_call.1} parent=195 // pred_fallthru
            _
          %995 = shalt.err (0)
          %s997 = sshll.u32 %s987, 4
          %s998 = int_to_ptr.hbm [resolvable:$true] %s997
          %s999 = sshll.u32 %s989, 4
          %s1000 = int_to_ptr.vmem [resolvable:$true] %s999
          %1002 = dma.hbm_to_vmem [thread:$0]  %s998, 16, %s1000, %s845
          %s1003 = sadd.s32 %s840, 9
          %s1004 = sld [smem:[#allocation5 + %s1003]]
          %s1005 = scalar_lea.hbm %s1, %s1004
          %s1006 = sadd.s32 9, %s843
          %s1007 = scalar_lea.vmem [#allocation2], %s1006
          // Predicated region
          $region233: #{tpu_custom_call.1} parent=195 // pred_check
            _
          $region234: #{tpu_custom_call.1} parent=195 // pred_check_branch
            %1009 = sbr.rel target = $region236
          $region235: #{tpu_custom_call.1} parent=195 // pred_region
            %1010 = sst [smem:[#allocation12]] [#allocation111]
            %1011 = sst [smem:[#allocation13]] [#allocation110]
          $region236: #{tpu_custom_call.1} parent=195 // pred_fallthru
            _
          %1013 = shalt.err (0)
          %s1015 = sshll.u32 %s1005, 4
          %s1016 = int_to_ptr.hbm [resolvable:$true] %s1015
          %s1017 = sshll.u32 %s1007, 4
          %s1018 = int_to_ptr.vmem [resolvable:$true] %s1017
          %1020 = dma.hbm_to_vmem [thread:$0]  %s1016, 16, %s1018, %s845
          %s1021 = sadd.s32 %s840, 10
          %s1022 = sld [smem:[#allocation5 + %s1021]]
          %s1023 = scalar_lea.hbm %s1, %s1022
          %s1024 = sadd.s32 10, %s843
          %s1025 = scalar_lea.vmem [#allocation2], %s1024
          // Predicated region
          $region237: #{tpu_custom_call.1} parent=195 // pred_check
            _
          $region238: #{tpu_custom_call.1} parent=195 // pred_check_branch
            %1027 = sbr.rel target = $region240
          $region239: #{tpu_custom_call.1} parent=195 // pred_region
            %1028 = sst [smem:[#allocation12]] [#allocation113]
            %1029 = sst [smem:[#allocation13]] [#allocation112]
          $region240: #{tpu_custom_call.1} parent=195 // pred_fallthru
            _
          %1031 = shalt.err (0)
          %s1033 = sshll.u32 %s1023, 4
          %s1034 = int_to_ptr.hbm [resolvable:$true] %s1033
          %s1035 = sshll.u32 %s1025, 4
          %s1036 = int_to_ptr.vmem [resolvable:$true] %s1035
          %1038 = dma.hbm_to_vmem [thread:$0]  %s1034, 16, %s1036, %s845
          %s1039 = sadd.s32 %s840, 11
          %s1040 = sld [smem:[#allocation5 + %s1039]]
          %s1041 = scalar_lea.hbm %s1, %s1040
          %s1042 = sadd.s32 11, %s843
          %s1043 = scalar_lea.vmem [#allocation2], %s1042
          // Predicated region
          $region241: #{tpu_custom_call.1} parent=195 // pred_check
            _
          $region242: #{tpu_custom_call.1} parent=195 // pred_check_branch
            %1045 = sbr.rel target = $region244
          $region243: #{tpu_custom_call.1} parent=195 // pred_region
            %1046 = sst [smem:[#allocation12]] [#allocation115]
            %1047 = sst [smem:[#allocation13]] [#allocation114]
          $region244: #{tpu_custom_call.1} parent=195 // pred_fallthru
            _
          %1049 = shalt.err (0)
          %s1051 = sshll.u32 %s1041, 4
          %s1052 = int_to_ptr.hbm [resolvable:$true] %s1051
          %s1053 = sshll.u32 %s1043, 4
          %s1054 = int_to_ptr.vmem [resolvable:$true] %s1053
          %1056 = dma.hbm_to_vmem [thread:$0]  %s1052, 16, %s1054, %s845
          %s1057 = sadd.s32 %s840, 12
          %s1058 = sld [smem:[#allocation5 + %s1057]]
          %s1059 = scalar_lea.hbm %s1, %s1058
          %s1060 = sadd.s32 12, %s843
          %s1061 = scalar_lea.vmem [#allocation2], %s1060
          // Predicated region
          $region245: #{tpu_custom_call.1} parent=195 // pred_check
            _
          $region246: #{tpu_custom_call.1} parent=195 // pred_check_branch
            %1063 = sbr.rel target = $region248
          $region247: #{tpu_custom_call.1} parent=195 // pred_region
            %1064 = sst [smem:[#allocation12]] [#allocation117]
            %1065 = sst [smem:[#allocation13]] [#allocation116]
          $region248: #{tpu_custom_call.1} parent=195 // pred_fallthru
            _
          %1067 = shalt.err (0)
          %s1069 = sshll.u32 %s1059, 4
          %s1070 = int_to_ptr.hbm [resolvable:$true] %s1069
          %s1071 = sshll.u32 %s1061, 4
          %s1072 = int_to_ptr.vmem [resolvable:$true] %s1071
          %1074 = dma.hbm_to_vmem [thread:$0]  %s1070, 16, %s1072, %s845
          %s1075 = sadd.s32 %s840, 13
          %s1076 = sld [smem:[#allocation5 + %s1075]]
          %s1077 = scalar_lea.hbm %s1, %s1076
          %s1078 = sadd.s32 13, %s843
          %s1079 = scalar_lea.vmem [#allocation2], %s1078
          // Predicated region
          $region249: #{tpu_custom_call.1} parent=195 // pred_check
            _
          $region250: #{tpu_custom_call.1} parent=195 // pred_check_branch
            %1081 = sbr.rel target = $region252
          $region251: #{tpu_custom_call.1} parent=195 // pred_region
            %1082 = sst [smem:[#allocation12]] [#allocation119]
            %1083 = sst [smem:[#allocation13]] [#allocation118]
          $region252: #{tpu_custom_call.1} parent=195 // pred_fallthru
            _
          %1085 = shalt.err (0)
          %s1087 = sshll.u32 %s1077, 4
          %s1088 = int_to_ptr.hbm [resolvable:$true] %s1087
          %s1089 = sshll.u32 %s1079, 4
          %s1090 = int_to_ptr.vmem [resolvable:$true] %s1089
          %1092 = dma.hbm_to_vmem [thread:$0]  %s1088, 16, %s1090, %s845
          %s1093 = sadd.s32 %s840, 14
          %s1094 = sld [smem:[#allocation5 + %s1093]]
          %s1095 = scalar_lea.hbm %s1, %s1094
          %s1096 = sadd.s32 14, %s843
          %s1097 = scalar_lea.vmem [#allocation2], %s1096
          // Predicated region
          $region253: #{tpu_custom_call.1} parent=195 // pred_check
            _
          $region254: #{tpu_custom_call.1} parent=195 // pred_check_branch
            %1099 = sbr.rel target = $region256
          $region255: #{tpu_custom_call.1} parent=195 // pred_region
            %1100 = sst [smem:[#allocation12]] [#allocation121]
            %1101 = sst [smem:[#allocation13]] [#allocation120]
          $region256: #{tpu_custom_call.1} parent=195 // pred_fallthru
            _
          %1103 = shalt.err (0)
          %s1105 = sshll.u32 %s1095, 4
          %s1106 = int_to_ptr.hbm [resolvable:$true] %s1105
          %s1107 = sshll.u32 %s1097, 4
          %s1108 = int_to_ptr.vmem [resolvable:$true] %s1107
          %1110 = dma.hbm_to_vmem [thread:$0]  %s1106, 16, %s1108, %s845
          %s1111 = sadd.s32 %s840, 15
          %s1112 = sld [smem:[#allocation5 + %s1111]]
          %s1113 = scalar_lea.hbm %s1, %s1112
          %s1114 = sadd.s32 15, %s843
          %s1115 = scalar_lea.vmem [#allocation2], %s1114
          // Predicated region
          $region257: #{tpu_custom_call.1} parent=195 // pred_check
            _
          $region258: #{tpu_custom_call.1} parent=195 // pred_check_branch
            %1117 = sbr.rel target = $region260
          $region259: #{tpu_custom_call.1} parent=195 // pred_region
            %1118 = sst [smem:[#allocation12]] [#allocation123]
            %1119 = sst [smem:[#allocation13]] [#allocation122]
          $region260: #{tpu_custom_call.1} parent=195 // pred_fallthru
            _
          %1121 = shalt.err (0)
          %s1123 = sshll.u32 %s1113, 4
          %s1124 = int_to_ptr.hbm [resolvable:$true] %s1123
          %s1125 = sshll.u32 %s1115, 4
          %s1126 = int_to_ptr.vmem [resolvable:$true] %s1125
          %1128 = dma.hbm_to_vmem [thread:$0]  %s1124, 16, %s1126, %s845
          %s1129 = sadd.s32 %s840, 16
          %s1130 = sld [smem:[#allocation5 + %s1129]]
          %s1131 = scalar_lea.hbm %s1, %s1130
          %s1132 = sadd.s32 16, %s843
          %s1133 = scalar_lea.vmem [#allocation2], %s1132
          // Predicated region
          $region261: #{tpu_custom_call.1} parent=195 // pred_check
            _
          $region262: #{tpu_custom_call.1} parent=195 // pred_check_branch
            %1135 = sbr.rel target = $region264
          $region263: #{tpu_custom_call.1} parent=195 // pred_region
            %1136 = sst [smem:[#allocation12]] [#allocation125]
            %1137 = sst [smem:[#allocation13]] [#allocation124]
          $region264: #{tpu_custom_call.1} parent=195 // pred_fallthru
            _
          %1139 = shalt.err (0)
          %s1141 = sshll.u32 %s1131, 4
          %s1142 = int_to_ptr.hbm [resolvable:$true] %s1141
          %s1143 = sshll.u32 %s1133, 4
          %s1144 = int_to_ptr.vmem [resolvable:$true] %s1143
          %1146 = dma.hbm_to_vmem [thread:$0]  %s1142, 16, %s1144, %s845
          %s1147 = sadd.s32 %s840, 17
          %s1148 = sld [smem:[#allocation5 + %s1147]]
          %s1149 = scalar_lea.hbm %s1, %s1148
          %s1150 = sadd.s32 17, %s843
          %s1151 = scalar_lea.vmem [#allocation2], %s1150
          // Predicated region
          $region265: #{tpu_custom_call.1} parent=195 // pred_check
            _
          $region266: #{tpu_custom_call.1} parent=195 // pred_check_branch
            %1153 = sbr.rel target = $region268
          $region267: #{tpu_custom_call.1} parent=195 // pred_region
            %1154 = sst [smem:[#allocation12]] [#allocation127]
            %1155 = sst [smem:[#allocation13]] [#allocation126]
          $region268: #{tpu_custom_call.1} parent=195 // pred_fallthru
            _
          %1157 = shalt.err (0)
          %s1159 = sshll.u32 %s1149, 4
          %s1160 = int_to_ptr.hbm [resolvable:$true] %s1159
          %s1161 = sshll.u32 %s1151, 4
          %s1162 = int_to_ptr.vmem [resolvable:$true] %s1161
          %1164 = dma.hbm_to_vmem [thread:$0]  %s1160, 16, %s1162, %s845
          %s1165 = sadd.s32 %s840, 18
          %s1166 = sld [smem:[#allocation5 + %s1165]]
          %s1167 = scalar_lea.hbm %s1, %s1166
          %s1168 = sadd.s32 18, %s843
          %s1169 = scalar_lea.vmem [#allocation2], %s1168
          // Predicated region
          $region269: #{tpu_custom_call.1} parent=195 // pred_check
            _
          $region270: #{tpu_custom_call.1} parent=195 // pred_check_branch
            %1171 = sbr.rel target = $region272
          $region271: #{tpu_custom_call.1} parent=195 // pred_region
            %1172 = sst [smem:[#allocation12]] [#allocation129]
            %1173 = sst [smem:[#allocation13]] [#allocation128]
          $region272: #{tpu_custom_call.1} parent=195 // pred_fallthru
            _
          %1175 = shalt.err (0)
          %s1177 = sshll.u32 %s1167, 4
          %s1178 = int_to_ptr.hbm [resolvable:$true] %s1177
          %s1179 = sshll.u32 %s1169, 4
          %s1180 = int_to_ptr.vmem [resolvable:$true] %s1179
          %1182 = dma.hbm_to_vmem [thread:$0]  %s1178, 16, %s1180, %s845
          %s1183 = sadd.s32 %s840, 19
          %s1184 = sld [smem:[#allocation5 + %s1183]]
          %s1185 = scalar_lea.hbm %s1, %s1184
          %s1186 = sadd.s32 19, %s843
          %s1187 = scalar_lea.vmem [#allocation2], %s1186
          // Predicated region
          $region273: #{tpu_custom_call.1} parent=195 // pred_check
            _
          $region274: #{tpu_custom_call.1} parent=195 // pred_check_branch
            %1189 = sbr.rel target = $region276
          $region275: #{tpu_custom_call.1} parent=195 // pred_region
            %1190 = sst [smem:[#allocation12]] [#allocation131]
            %1191 = sst [smem:[#allocation13]] [#allocation130]
          $region276: #{tpu_custom_call.1} parent=195 // pred_fallthru
            _
          %1193 = shalt.err (0)
          %s1195 = sshll.u32 %s1185, 4
          %s1196 = int_to_ptr.hbm [resolvable:$true] %s1195
          %s1197 = sshll.u32 %s1187, 4
          %s1198 = int_to_ptr.vmem [resolvable:$true] %s1197
          %1200 = dma.hbm_to_vmem [thread:$0]  %s1196, 16, %s1198, %s845
          %s1201 = sadd.s32 %s840, 20
          %s1202 = sld [smem:[#allocation5 + %s1201]]
          %s1203 = scalar_lea.hbm %s1, %s1202
          %s1204 = sadd.s32 20, %s843
          %s1205 = scalar_lea.vmem [#allocation2], %s1204
          // Predicated region
          $region277: #{tpu_custom_call.1} parent=195 // pred_check
            _
          $region278: #{tpu_custom_call.1} parent=195 // pred_check_branch
            %1207 = sbr.rel target = $region280
          $region279: #{tpu_custom_call.1} parent=195 // pred_region
            %1208 = sst [smem:[#allocation12]] [#allocation133]
            %1209 = sst [smem:[#allocation13]] [#allocation132]
          $region280: #{tpu_custom_call.1} parent=195 // pred_fallthru
            _
          %1211 = shalt.err (0)
          %s1213 = sshll.u32 %s1203, 4
          %s1214 = int_to_ptr.hbm [resolvable:$true] %s1213
          %s1215 = sshll.u32 %s1205, 4
          %s1216 = int_to_ptr.vmem [resolvable:$true] %s1215
          %1218 = dma.hbm_to_vmem [thread:$0]  %s1214, 16, %s1216, %s845
          %s1219 = sadd.s32 %s840, 21
          %s1220 = sld [smem:[#allocation5 + %s1219]]
          %s1221 = scalar_lea.hbm %s1, %s1220
          %s1222 = sadd.s32 21, %s843
          %s1223 = scalar_lea.vmem [#allocation2], %s1222
          // Predicated region
          $region281: #{tpu_custom_call.1} parent=195 // pred_check
            _
          $region282: #{tpu_custom_call.1} parent=195 // pred_check_branch
            %1225 = sbr.rel target = $region284
          $region283: #{tpu_custom_call.1} parent=195 // pred_region
            %1226 = sst [smem:[#allocation12]] [#allocation135]
            %1227 = sst [smem:[#allocation13]] [#allocation134]
          $region284: #{tpu_custom_call.1} parent=195 // pred_fallthru
            _
          %1229 = shalt.err (0)
          %s1231 = sshll.u32 %s1221, 4
          %s1232 = int_to_ptr.hbm [resolvable:$true] %s1231
          %s1233 = sshll.u32 %s1223, 4
          %s1234 = int_to_ptr.vmem [resolvable:$true] %s1233
          %1236 = dma.hbm_to_vmem [thread:$0]  %s1232, 16, %s1234, %s845
          %s1237 = sadd.s32 %s840, 22
          %s1238 = sld [smem:[#allocation5 + %s1237]]
          %s1239 = scalar_lea.hbm %s1, %s1238
          %s1240 = sadd.s32 22, %s843
          %s1241 = scalar_lea.vmem [#allocation2], %s1240
          // Predicated region
          $region285: #{tpu_custom_call.1} parent=195 // pred_check
            _
          $region286: #{tpu_custom_call.1} parent=195 // pred_check_branch
            %1243 = sbr.rel target = $region288
          $region287: #{tpu_custom_call.1} parent=195 // pred_region
            %1244 = sst [smem:[#allocation12]] [#allocation137]
            %1245 = sst [smem:[#allocation13]] [#allocation136]
          $region288: #{tpu_custom_call.1} parent=195 // pred_fallthru
            _
          %1247 = shalt.err (0)
          %s1249 = sshll.u32 %s1239, 4
          %s1250 = int_to_ptr.hbm [resolvable:$true] %s1249
          %s1251 = sshll.u32 %s1241, 4
          %s1252 = int_to_ptr.vmem [resolvable:$true] %s1251
          %1254 = dma.hbm_to_vmem [thread:$0]  %s1250, 16, %s1252, %s845
          %s1255 = sadd.s32 %s840, 23
          %s1256 = sld [smem:[#allocation5 + %s1255]]
          %s1257 = scalar_lea.hbm %s1, %s1256
          %s1258 = sadd.s32 23, %s843
          %s1259 = scalar_lea.vmem [#allocation2], %s1258
          // Predicated region
          $region289: #{tpu_custom_call.1} parent=195 // pred_check
            _
          $region290: #{tpu_custom_call.1} parent=195 // pred_check_branch
            %1261 = sbr.rel target = $region292
          $region291: #{tpu_custom_call.1} parent=195 // pred_region
            %1262 = sst [smem:[#allocation12]] [#allocation139]
            %1263 = sst [smem:[#allocation13]] [#allocation138]
          $region292: #{tpu_custom_call.1} parent=195 // pred_fallthru
            _
          %1265 = shalt.err (0)
          %s1267 = sshll.u32 %s1257, 4
          %s1268 = int_to_ptr.hbm [resolvable:$true] %s1267
          %s1269 = sshll.u32 %s1259, 4
          %s1270 = int_to_ptr.vmem [resolvable:$true] %s1269
          %1272 = dma.hbm_to_vmem [thread:$0]  %s1268, 16, %s1270, %s845
          %s1273 = sadd.s32 %s840, 24
          %s1274 = sld [smem:[#allocation5 + %s1273]]
          %s1275 = scalar_lea.hbm %s1, %s1274
          %s1276 = sadd.s32 24, %s843
          %s1277 = scalar_lea.vmem [#allocation2], %s1276
          // Predicated region
          $region293: #{tpu_custom_call.1} parent=195 // pred_check
            _
          $region294: #{tpu_custom_call.1} parent=195 // pred_check_branch
            %1279 = sbr.rel target = $region296
          $region295: #{tpu_custom_call.1} parent=195 // pred_region
            %1280 = sst [smem:[#allocation12]] [#allocation141]
            %1281 = sst [smem:[#allocation13]] [#allocation140]
          $region296: #{tpu_custom_call.1} parent=195 // pred_fallthru
            _
          %1283 = shalt.err (0)
          %s1285 = sshll.u32 %s1275, 4
          %s1286 = int_to_ptr.hbm [resolvable:$true] %s1285
          %s1287 = sshll.u32 %s1277, 4
          %s1288 = int_to_ptr.vmem [resolvable:$true] %s1287
          %1290 = dma.hbm_to_vmem [thread:$0]  %s1286, 16, %s1288, %s845
          %s1291 = sadd.s32 %s840, 25
          %s1292 = sld [smem:[#allocation5 + %s1291]]
          %s1293 = scalar_lea.hbm %s1, %s1292
          %s1294 = sadd.s32 25, %s843
          %s1295 = scalar_lea.vmem [#allocation2], %s1294
          // Predicated region
          $region297: #{tpu_custom_call.1} parent=195 // pred_check
            _
          $region298: #{tpu_custom_call.1} parent=195 // pred_check_branch
            %1297 = sbr.rel target = $region300
          $region299: #{tpu_custom_call.1} parent=195 // pred_region
            %1298 = sst [smem:[#allocation12]] [#allocation143]
            %1299 = sst [smem:[#allocation13]] [#allocation142]
          $region300: #{tpu_custom_call.1} parent=195 // pred_fallthru
            _
          %1301 = shalt.err (0)
          %s1303 = sshll.u32 %s1293, 4
          %s1304 = int_to_ptr.hbm [resolvable:$true] %s1303
          %s1305 = sshll.u32 %s1295, 4
          %s1306 = int_to_ptr.vmem [resolvable:$true] %s1305
          %1308 = dma.hbm_to_vmem [thread:$0]  %s1304, 16, %s1306, %s845
          %s1309 = sadd.s32 %s840, 26
          %s1310 = sld [smem:[#allocation5 + %s1309]]
          %s1311 = scalar_lea.hbm %s1, %s1310
          %s1312 = sadd.s32 26, %s843
          %s1313 = scalar_lea.vmem [#allocation2], %s1312
          // Predicated region
          $region301: #{tpu_custom_call.1} parent=195 // pred_check
            _
          $region302: #{tpu_custom_call.1} parent=195 // pred_check_branch
            %1315 = sbr.rel target = $region304
          $region303: #{tpu_custom_call.1} parent=195 // pred_region
            %1316 = sst [smem:[#allocation12]] [#allocation145]
            %1317 = sst [smem:[#allocation13]] [#allocation144]
          $region304: #{tpu_custom_call.1} parent=195 // pred_fallthru
            _
          %1319 = shalt.err (0)
          %s1321 = sshll.u32 %s1311, 4
          %s1322 = int_to_ptr.hbm [resolvable:$true] %s1321
          %s1323 = sshll.u32 %s1313, 4
          %s1324 = int_to_ptr.vmem [resolvable:$true] %s1323
          %1326 = dma.hbm_to_vmem [thread:$0]  %s1322, 16, %s1324, %s845
          %s1327 = sadd.s32 %s840, 27
          %s1328 = sld [smem:[#allocation5 + %s1327]]
          %s1329 = scalar_lea.hbm %s1, %s1328
          %s1330 = sadd.s32 27, %s843
          %s1331 = scalar_lea.vmem [#allocation2], %s1330
          // Predicated region
          $region305: #{tpu_custom_call.1} parent=195 // pred_check
            _
          $region306: #{tpu_custom_call.1} parent=195 // pred_check_branch
            %1333 = sbr.rel target = $region308
          $region307: #{tpu_custom_call.1} parent=195 // pred_region
            %1334 = sst [smem:[#allocation12]] [#allocation147]
            %1335 = sst [smem:[#allocation13]] [#allocation146]
          $region308: #{tpu_custom_call.1} parent=195 // pred_fallthru
            _
          %1337 = shalt.err (0)
          %s1339 = sshll.u32 %s1329, 4
          %s1340 = int_to_ptr.hbm [resolvable:$true] %s1339
          %s1341 = sshll.u32 %s1331, 4
          %s1342 = int_to_ptr.vmem [resolvable:$true] %s1341
          %1344 = dma.hbm_to_vmem [thread:$0]  %s1340, 16, %s1342, %s845
          %s1345 = sadd.s32 %s840, 28
          %s1346 = sld [smem:[#allocation5 + %s1345]]
          %s1347 = scalar_lea.hbm %s1, %s1346
          %s1348 = sadd.s32 28, %s843
          %s1349 = scalar_lea.vmem [#allocation2], %s1348
          // Predicated region
          $region309: #{tpu_custom_call.1} parent=195 // pred_check
            _
          $region310: #{tpu_custom_call.1} parent=195 // pred_check_branch
            %1351 = sbr.rel target = $region312
          $region311: #{tpu_custom_call.1} parent=195 // pred_region
            %1352 = sst [smem:[#allocation12]] [#allocation149]
            %1353 = sst [smem:[#allocation13]] [#allocation148]
          $region312: #{tpu_custom_call.1} parent=195 // pred_fallthru
            _
          %1355 = shalt.err (0)
          %s1357 = sshll.u32 %s1347, 4
          %s1358 = int_to_ptr.hbm [resolvable:$true] %s1357
          %s1359 = sshll.u32 %s1349, 4
          %s1360 = int_to_ptr.vmem [resolvable:$true] %s1359
          %1362 = dma.hbm_to_vmem [thread:$0]  %s1358, 16, %s1360, %s845
          %s1363 = sadd.s32 %s840, 29
          %s1364 = sld [smem:[#allocation5 + %s1363]]
          %s1365 = scalar_lea.hbm %s1, %s1364
          %s1366 = sadd.s32 29, %s843
          %s1367 = scalar_lea.vmem [#allocation2], %s1366
          // Predicated region
          $region313: #{tpu_custom_call.1} parent=195 // pred_check
            _
          $region314: #{tpu_custom_call.1} parent=195 // pred_check_branch
            %1369 = sbr.rel target = $region316
          $region315: #{tpu_custom_call.1} parent=195 // pred_region
            %1370 = sst [smem:[#allocation12]] [#allocation151]
            %1371 = sst [smem:[#allocation13]] [#allocation150]
          $region316: #{tpu_custom_call.1} parent=195 // pred_fallthru
            _
          %1373 = shalt.err (0)
          %s1375 = sshll.u32 %s1365, 4
          %s1376 = int_to_ptr.hbm [resolvable:$true] %s1375
          %s1377 = sshll.u32 %s1367, 4
          %s1378 = int_to_ptr.vmem [resolvable:$true] %s1377
          %1380 = dma.hbm_to_vmem [thread:$0]  %s1376, 16, %s1378, %s845
          %s1381 = sadd.s32 %s840, 30
          %s1382 = sld [smem:[#allocation5 + %s1381]]
          %s1383 = scalar_lea.hbm %s1, %s1382
          %s1384 = sadd.s32 30, %s843
          %s1385 = scalar_lea.vmem [#allocation2], %s1384
          // Predicated region
          $region317: #{tpu_custom_call.1} parent=195 // pred_check
            _
          $region318: #{tpu_custom_call.1} parent=195 // pred_check_branch
            %1387 = sbr.rel target = $region320
          $region319: #{tpu_custom_call.1} parent=195 // pred_region
            %1388 = sst [smem:[#allocation12]] [#allocation153]
            %1389 = sst [smem:[#allocation13]] [#allocation152]
          $region320: #{tpu_custom_call.1} parent=195 // pred_fallthru
            _
          %1391 = shalt.err (0)
          %s1393 = sshll.u32 %s1383, 4
          %s1394 = int_to_ptr.hbm [resolvable:$true] %s1393
          %s1395 = sshll.u32 %s1385, 4
          %s1396 = int_to_ptr.vmem [resolvable:$true] %s1395
          %1398 = dma.hbm_to_vmem [thread:$0]  %s1394, 16, %s1396, %s845
          %s1399 = sadd.s32 %s840, 31
          %s1400 = sld [smem:[#allocation5 + %s1399]]
          %s1401 = scalar_lea.hbm %s1, %s1400
          %s1402 = sadd.s32 31, %s843
          %s1403 = scalar_lea.vmem [#allocation2], %s1402
          // Predicated region
          $region321: #{tpu_custom_call.1} parent=195 // pred_check
            _
          $region322: #{tpu_custom_call.1} parent=195 // pred_check_branch
            %1405 = sbr.rel target = $region324
          $region323: #{tpu_custom_call.1} parent=195 // pred_region
            %1406 = sst [smem:[#allocation12]] [#allocation155]
            %1407 = sst [smem:[#allocation13]] [#allocation154]
          $region324: #{tpu_custom_call.1} parent=195 // pred_fallthru
            _
          %1409 = shalt.err (0)
          %s1411 = sshll.u32 %s1401, 4
          %s1412 = int_to_ptr.hbm [resolvable:$true] %s1411
          %s1413 = sshll.u32 %s1403, 4
          %s1414 = int_to_ptr.vmem [resolvable:$true] %s1413
          %1416 = dma.hbm_to_vmem [thread:$0]  %s1412, 16, %s1414, %s845
          %s1417 = sadd.s32 %s840, 32
          %s1418 = sld [smem:[#allocation5 + %s1417]]
          %s1419 = scalar_lea.hbm %s1, %s1418
          %s1420 = sadd.s32 32, %s843
          %s1421 = scalar_lea.vmem [#allocation2], %s1420
          // Predicated region
          $region325: #{tpu_custom_call.1} parent=195 // pred_check
            _
          $region326: #{tpu_custom_call.1} parent=195 // pred_check_branch
            %1423 = sbr.rel target = $region328
          $region327: #{tpu_custom_call.1} parent=195 // pred_region
            %1424 = sst [smem:[#allocation12]] [#allocation157]
            %1425 = sst [smem:[#allocation13]] [#allocation156]
          $region328: #{tpu_custom_call.1} parent=195 // pred_fallthru
            _
          %1427 = shalt.err (0)
          %s1429 = sshll.u32 %s1419, 4
          %s1430 = int_to_ptr.hbm [resolvable:$true] %s1429
          %s1431 = sshll.u32 %s1421, 4
          %s1432 = int_to_ptr.vmem [resolvable:$true] %s1431
          %1434 = dma.hbm_to_vmem [thread:$0]  %s1430, 16, %s1432, %s845
          %s1435 = sadd.s32 %s840, 33
          %s1436 = sld [smem:[#allocation5 + %s1435]]
          %s1437 = scalar_lea.hbm %s1, %s1436
          %s1438 = sadd.s32 33, %s843
          %s1439 = scalar_lea.vmem [#allocation2], %s1438
          // Predicated region
          $region329: #{tpu_custom_call.1} parent=195 // pred_check
            _
          $region330: #{tpu_custom_call.1} parent=195 // pred_check_branch
            %1441 = sbr.rel target = $region332
          $region331: #{tpu_custom_call.1} parent=195 // pred_region
            %1442 = sst [smem:[#allocation12]] [#allocation159]
            %1443 = sst [smem:[#allocation13]] [#allocation158]
          $region332: #{tpu_custom_call.1} parent=195 // pred_fallthru
            _
          %1445 = shalt.err (0)
          %s1447 = sshll.u32 %s1437, 4
          %s1448 = int_to_ptr.hbm [resolvable:$true] %s1447
          %s1449 = sshll.u32 %s1439, 4
          %s1450 = int_to_ptr.vmem [resolvable:$true] %s1449
          %1452 = dma.hbm_to_vmem [thread:$0]  %s1448, 16, %s1450, %s845
          %s1453 = sadd.s32 %s840, 34
          %s1454 = sld [smem:[#allocation5 + %s1453]]
          %s1455 = scalar_lea.hbm %s1, %s1454
          %s1456 = sadd.s32 34, %s843
          %s1457 = scalar_lea.vmem [#allocation2], %s1456
          // Predicated region
          $region333: #{tpu_custom_call.1} parent=195 // pred_check
            _
          $region334: #{tpu_custom_call.1} parent=195 // pred_check_branch
            %1459 = sbr.rel target = $region336
          $region335: #{tpu_custom_call.1} parent=195 // pred_region
            %1460 = sst [smem:[#allocation12]] [#allocation161]
            %1461 = sst [smem:[#allocation13]] [#allocation160]
          $region336: #{tpu_custom_call.1} parent=195 // pred_fallthru
            _
          %1463 = shalt.err (0)
          %s1465 = sshll.u32 %s1455, 4
          %s1466 = int_to_ptr.hbm [resolvable:$true] %s1465
          %s1467 = sshll.u32 %s1457, 4
          %s1468 = int_to_ptr.vmem [resolvable:$true] %s1467
          %1470 = dma.hbm_to_vmem [thread:$0]  %s1466, 16, %s1468, %s845
          %s1471 = sadd.s32 %s840, 35
          %s1472 = sld [smem:[#allocation5 + %s1471]]
          %s1473 = scalar_lea.hbm %s1, %s1472
          %s1474 = sadd.s32 35, %s843
          %s1475 = scalar_lea.vmem [#allocation2], %s1474
          // Predicated region
          $region337: #{tpu_custom_call.1} parent=195 // pred_check
            _
          $region338: #{tpu_custom_call.1} parent=195 // pred_check_branch
            %1477 = sbr.rel target = $region340
          $region339: #{tpu_custom_call.1} parent=195 // pred_region
            %1478 = sst [smem:[#allocation12]] [#allocation163]
            %1479 = sst [smem:[#allocation13]] [#allocation162]
          $region340: #{tpu_custom_call.1} parent=195 // pred_fallthru
            _
          %1481 = shalt.err (0)
          %s1483 = sshll.u32 %s1473, 4
          %s1484 = int_to_ptr.hbm [resolvable:$true] %s1483
          %s1485 = sshll.u32 %s1475, 4
          %s1486 = int_to_ptr.vmem [resolvable:$true] %s1485
          %1488 = dma.hbm_to_vmem [thread:$0]  %s1484, 16, %s1486, %s845
          %s1489 = sadd.s32 %s840, 36
          %s1490 = sld [smem:[#allocation5 + %s1489]]
          %s1491 = scalar_lea.hbm %s1, %s1490
          %s1492 = sadd.s32 36, %s843
          %s1493 = scalar_lea.vmem [#allocation2], %s1492
          // Predicated region
          $region341: #{tpu_custom_call.1} parent=195 // pred_check
            _
          $region342: #{tpu_custom_call.1} parent=195 // pred_check_branch
            %1495 = sbr.rel target = $region344
          $region343: #{tpu_custom_call.1} parent=195 // pred_region
            %1496 = sst [smem:[#allocation12]] [#allocation165]
            %1497 = sst [smem:[#allocation13]] [#allocation164]
          $region344: #{tpu_custom_call.1} parent=195 // pred_fallthru
            _
          %1499 = shalt.err (0)
          %s1501 = sshll.u32 %s1491, 4
          %s1502 = int_to_ptr.hbm [resolvable:$true] %s1501
          %s1503 = sshll.u32 %s1493, 4
          %s1504 = int_to_ptr.vmem [resolvable:$true] %s1503
          %1506 = dma.hbm_to_vmem [thread:$0]  %s1502, 16, %s1504, %s845
          %s1507 = sadd.s32 %s840, 37
          %s1508 = sld [smem:[#allocation5 + %s1507]]
          %s1509 = scalar_lea.hbm %s1, %s1508
          %s1510 = sadd.s32 37, %s843
          %s1511 = scalar_lea.vmem [#allocation2], %s1510
          // Predicated region
          $region345: #{tpu_custom_call.1} parent=195 // pred_check
            _
          $region346: #{tpu_custom_call.1} parent=195 // pred_check_branch
            %1513 = sbr.rel target = $region348
          $region347: #{tpu_custom_call.1} parent=195 // pred_region
            %1514 = sst [smem:[#allocation12]] [#allocation167]
            %1515 = sst [smem:[#allocation13]] [#allocation166]
          $region348: #{tpu_custom_call.1} parent=195 // pred_fallthru
            _
          %1517 = shalt.err (0)
          %s1519 = sshll.u32 %s1509, 4
          %s1520 = int_to_ptr.hbm [resolvable:$true] %s1519
          %s1521 = sshll.u32 %s1511, 4
          %s1522 = int_to_ptr.vmem [resolvable:$true] %s1521
          %1524 = dma.hbm_to_vmem [thread:$0]  %s1520, 16, %s1522, %s845
          %s1525 = sadd.s32 %s840, 38
          %s1526 = sld [smem:[#allocation5 + %s1525]]
          %s1527 = scalar_lea.hbm %s1, %s1526
          %s1528 = sadd.s32 38, %s843
          %s1529 = scalar_lea.vmem [#allocation2], %s1528
          // Predicated region
          $region349: #{tpu_custom_call.1} parent=195 // pred_check
            _
          $region350: #{tpu_custom_call.1} parent=195 // pred_check_branch
            %1531 = sbr.rel target = $region352
          $region351: #{tpu_custom_call.1} parent=195 // pred_region
            %1532 = sst [smem:[#allocation12]] [#allocation169]
            %1533 = sst [smem:[#allocation13]] [#allocation168]
          $region352: #{tpu_custom_call.1} parent=195 // pred_fallthru
            _
          %1535 = shalt.err (0)
          %s1537 = sshll.u32 %s1527, 4
          %s1538 = int_to_ptr.hbm [resolvable:$true] %s1537
          %s1539 = sshll.u32 %s1529, 4
          %s1540 = int_to_ptr.vmem [resolvable:$true] %s1539
          %1542 = dma.hbm_to_vmem [thread:$0]  %s1538, 16, %s1540, %s845
          %s1543 = sadd.s32 %s840, 39
          %s1544 = sld [smem:[#allocation5 + %s1543]]
          %s1545 = scalar_lea.hbm %s1, %s1544
          %s1546 = sadd.s32 39, %s843
          %s1547 = scalar_lea.vmem [#allocation2], %s1546
          // Predicated region
          $region353: #{tpu_custom_call.1} parent=195 // pred_check
            _
          $region354: #{tpu_custom_call.1} parent=195 // pred_check_branch
            %1549 = sbr.rel target = $region356
          $region355: #{tpu_custom_call.1} parent=195 // pred_region
            %1550 = sst [smem:[#allocation12]] [#allocation171]
            %1551 = sst [smem:[#allocation13]] [#allocation170]
          $region356: #{tpu_custom_call.1} parent=195 // pred_fallthru
            _
          %1553 = shalt.err (0)
          %s1555 = sshll.u32 %s1545, 4
          %s1556 = int_to_ptr.hbm [resolvable:$true] %s1555
          %s1557 = sshll.u32 %s1547, 4
          %s1558 = int_to_ptr.vmem [resolvable:$true] %s1557
          %1560 = dma.hbm_to_vmem [thread:$0]  %s1556, 16, %s1558, %s845
        $region196: #{tpu_custom_call.1} parent=23 // pred_fallthru
          _
        %s1561 = smul.u32 %s148, 40
        %s1562 = scalar_lea.vmem [#allocation2], %s1561
        %s1563 = scalar_lea.sflag [#allocation3], %s148
        %s1564 = smul.u32 40, 1
        %s1565 = sshll.u32 %s1564, 4
        %1566 = dma.done %s1563, %s1565
        %v1567 = vld [vmem:[%s1562] sm:$0xff]
        %v1568 = vld [vmem:[%s1562 + $0x8] sm:$0xff]
        %v1569 = vld [vmem:[%s1562 + $0x10] sm:$0xff]
        %v1570 = vld [vmem:[%s1562 + $0x18] sm:$0xff]
        %v1571 = vld [vmem:[%s1562 + $0x20] sm:$0xff]
        %s1572 = smul.u32 %s31, 40
        %s1573 = scalar_lea.vmem [#allocation6], %s1572
        %v1574 = vld [vmem:[%s1573] sm:$0xff]
        %v1575 = vld [vmem:[%s1573 + $0x8] sm:$0xff]
        %v1576 = vld [vmem:[%s1573 + $0x10] sm:$0xff]
        %v1577 = vld [vmem:[%s1573 + $0x18] sm:$0xff]
        %v1578 = vld [vmem:[%s1573 + $0x20] sm:$0xff]
        %v1579 = vadd.f32 %v1567, %v1574
        %v1580 = vadd.f32 %v1568, %v1575
        %v1581 = vadd.f32 %v1569, %v1576
        %v1582 = vadd.f32 %v1570, %v1577
        %v1583 = vadd.f32 %v1571, %v1578
        %1584 = vst [vmem:[%s135] sm:$0xff] %v1579
        %1585 = vst [vmem:[%s135 + $0x8] sm:$0xff] %v1580
        %1586 = vst [vmem:[%s135 + $0x10] sm:$0xff] %v1581
        %1587 = vst [vmem:[%s135 + $0x18] sm:$0xff] %v1582
        %1588 = vst [vmem:[%s135 + $0x20] sm:$0xff] %v1583
        %s1589 = sand.u32 %s69, 1
        %s1590 = scalar_lea.sflag [#allocation8], %s1589
        %s1591 = sand.u32 %s69, 1
        %s1592 = smul.addr %s1591, 40
        %s1593 = scalar_lea.vmem [#allocation9], %s1592
        // Predicated region
        $region357: #{tpu_custom_call.1} parent=23 // pred_check
          %p1594 = pneg %p79
        $region358: #{tpu_custom_call.1} parent=23 // pred_check_branch
          %1596 = sbr.rel (%p1594) target = $region360
        $region359: #{tpu_custom_call.1} parent=23 // pred_region
          %s1597 = smul.u32 5, %s31
          %1599 = vsyncadd %s1590, 0
          %s1600 = smul.addr %s30, 10
          %s1601 = sadd.s32 %s1597, %s1600
          %s1602 = smul.addr %s1601, 8
          %s1603 = scalar_lea.hbm %s3, %s1602
          %s1604 = sshll.u32 %s1593, 4
          %s1605 = int_to_ptr.vmem [resolvable:$true] %s1604
          %s1606 = sshll.u32 %s1603, 4
          %s1607 = int_to_ptr.hbm [resolvable:$true] %s1606
          %1612 = dma.vmem_to_hbm [thread:$0]  %s1605, 640, %s1607, %s1590, 128, 128, 8
        $region360: #{tpu_custom_call.1} parent=23 // pred_fallthru
          _
      $region24: #{tpu_custom_call.1} parent=5 // pred_fallthru
        _
      %p1613 = scmp.le.s32.totalorder 2, %s21
      // Predicated region
      $region361: #{tpu_custom_call.1} parent=5 // pred_check
        %p1614 = pneg %p1613
      $region362: #{tpu_custom_call.1} parent=5 // pred_check_branch
        %1616 = sbr.rel (%p1614) target = $region364
      $region363: #{tpu_custom_call.1} parent=5 // pred_region
        %s1617 = ssub.s32 %s21, 2
        // Predicated region
        $region365: #{tpu_custom_call.1} parent=363 // pred_check
          %p1618 = pneg %p85
        $region366: #{tpu_custom_call.1} parent=363 // pred_check_branch
          %1620 = sbr.rel (%p1618) target = $region368
        $region367: #{tpu_custom_call.1} parent=363 // pred_region
          %s1621 = sand.u32 %s70, 1
          %s1622 = scalar_lea.sflag [#allocation8], %s1621
          %s1623 = sand.u32 %s70, 1
          %s1624 = smul.addr %s1623, 40
          %s1625 = scalar_lea.vmem [#allocation9], %s1624
          %1627 = dma.done %s1622, 640
        $region368: #{tpu_custom_call.1} parent=363 // pred_fallthru
          _
      $region364: #{tpu_custom_call.1} parent=5 // pred_fallthru
        _
    $region6: #{tpu_custom_call.1} parent=1 // loop_footer
      %s25 = sadd.s32 1, %s21
    $region7: #{tpu_custom_call.1} parent=1 // loop_footer_branch
      %20 = sbr.rel target = $region3
    $region8: #{tpu_custom_call.1} parent=1 // loop_exit
      _
    %1628 = vsyncpa [#allocation7], 1
    %s1629 = scalar_lea.sflag [#allocation7], 1
    %1630 = vsyncpa %s1629, 1
    %1631 = vsyncpa [#allocation8], 1
    %s1632 = scalar_lea.sflag [#allocation8], 1
    %1633 = vsyncpa %s1632, 1
  %1634 = vsyncmov [#allocation3]
  %s1635 = vpop.sfrf %1634
  %p1636 = scmp.eq.s32.totalorder %s1635, 0
  %p1637 = pneg %p1636
  %1639 = shalt.err (%p1637)
  %s1640 = scalar_lea.sflag [#allocation3], 1
  %1641 = vsyncmov %s1640
  %s1642 = vpop.sfrf %1641
  %p1643 = scmp.eq.s32.totalorder %s1642, 0
  %p1644 = pneg %p1643
  %1646 = shalt.err (%p1644)

</llo_original>
